<compile_context>
chip_gen: v7x
topology: tpu7x:2x2x1
jax: 0.10.0
libtpu: 0.0.40
codegen_flags: <defaults>
</compile_context>

<pallas_src>
import jax
import jax.numpy as jnp
from jax import lax
from jax.experimental import pallas as pl
from jax.experimental.pallas import tpu as pltpu

WIDTH = 512            # lane-dense slab width (multiple of 128)
TILE_ROWS_MAX = 256    # ~15 MiB of double-buffered VMEM tile buffers
NEG_SENTINEL = -1.0    # CE >= 0, so the sentinel never enters the top-k window

# rows of the per-lane statistics accumulator
_N_POS_TM, _N_POS_T, _POS_CE_TM, _POS_CE_T, _N_NEG = 0, 1, 2, 3, 4
_TCL_WSUM_TM, _TCL_CNT_TM, _TCL_WSUM_T = 5, 6, 7
_SL1_UP, _SL1_DOWN, _SL1_LEFT, _SL1_RIGHT = 8, 9, 10, 11
_STAT_ROWS = 16        # padded to a friendly sublane multiple


def _ce2(l0, l1):
    """Both 2-class cross-entropy terms from ONE exp + ONE log (softplus)."""
    d = l1 - l0
    t = jnp.log(1.0 + jnp.exp(-jnp.abs(d)))
    ce0 = jnp.maximum(d, 0.0) + t      # target = 0
    ce1 = jnp.maximum(-d, 0.0) + t     # target = 1
    return ce0, ce1


def _smooth_l1(pred, target):
    d = pred - target
    ad = jnp.abs(d)
    return jnp.where(ad < 1.0, 0.5 * d * d, ad - 0.5)


def text_loss_kernel(tr0_ref, tr1_ref, tc0_ref, tc1_ref,
                     up_p_ref, dn_p_ref, lf_p_ref, rt_p_ref,
                     tr_m_ref, tcl_m_ref, trn_m_ref,
                     tcl_w_ref, up_m_ref, dn_m_ref, lf_m_ref, rt_m_ref,
                     neg_ref, stats_ref):
    step = pl.program_id(1)

    # stats block is resident across the inner ("arbitrary") axis: init once.
    @pl.when(step == 0)
    def _init():
        stats_ref[...] = jnp.zeros_like(stats_ref)

    f32 = jnp.float32
    tr_mask = tr_m_ref[...].astype(f32)
    tcl_mask = tcl_m_ref[...].astype(f32)
    train_mask = trn_m_ref[...].astype(f32)

    def acc(row, x):
        # per-lane partial sums only (sublane-axis reduce); cross-lane reduce
        # and the scalar extraction happen once in the JAX glue.
        stats_ref[row:row + 1, :] += jnp.sum(x, axis=0, keepdims=True)

    # ---------------- TR head: OHEM cross-entropy pieces -----------------
    ce0, ce1 = _ce2(tr0_ref[...].astype(f32), tr1_ref[...].astype(f32))
    pos_tm = tr_mask * train_mask              # pos = target * train_mask
    neg = (1.0 - tr_mask) * train_mask         # neg = (1 - target) * train_mask
    neg_ref[...] = jnp.where(neg > 0.0, ce0, f32(NEG_SENTINEL))

    acc(_N_POS_TM, pos_tm)
    acc(_N_POS_T, tr_mask)                     # fallback pos = target
    acc(_POS_CE_TM, pos_tm * ce1)              # target at positives is 1
    acc(_POS_CE_T, tr_mask * ce1)
    acc(_N_NEG, neg)

    # ---------------- TCL head: masked weighted cross-entropy ------------
    tce0, tce1 = _ce2(tc0_ref[...].astype(f32), tc1_ref[...].astype(f32))
    ce_tcl = jnp.where(tcl_mask > 0.0, tce1, tce0)
    w = tcl_w_ref[...].astype(f32)
    sel = train_mask * tr_mask                 # try-branch selection
    acc(_TCL_WSUM_TM, sel * w * ce_tcl)
    acc(_TCL_CNT_TM, sel)
    acc(_TCL_WSUM_T, tr_mask * w * ce_tcl)     # except-branch (tr-only) sum
    # (fallback count == sum(tr_mask), already accumulated in _N_POS_T)

    # ---------------- geometry heads: smooth-L1 partial sums -------------
    acc(_SL1_UP, _smooth_l1(up_p_ref[...].astype(f32), up_m_ref[...].astype(f32)))
    acc(_SL1_DOWN, _smooth_l1(dn_p_ref[...].astype(f32), dn_m_ref[...].astype(f32)))
    acc(_SL1_LEFT, _smooth_l1(lf_p_ref[...].astype(f32), lf_m_ref[...].astype(f32)))
    acc(_SL1_RIGHT, _smooth_l1(rt_p_ref[...].astype(f32), rt_m_ref[...].astype(f32)))


def _round_up(x, m):
    return ((x + m - 1) // m) * m


def text_loss(inp, tr_mask, tcl_mask, tcl_weight,
              up_mask, down_mask, left_mask, right_mask, train_mask,
              negative_ratio=3.0):
    B, C, H, W = inp.shape
    assert C >= 9
    N = B * H * W

    # ---- tiling: (num_slices, blocks_per_slice) grid of (tile_rows, 512) ----
    rows = _round_up(max(1, -(-N // WIDTH)), 32)      # int8-safe sublane mult.
    if rows <= TILE_ROWS_MAX:
        tile_rows, num_slices = rows, 1
    else:
        tile_rows, num_slices = TILE_ROWS_MAX, 2      # split across v7x cores
        rows = _round_up(rows, tile_rows * num_slices)
    bps = rows // (tile_rows * num_slices)            # blocks per slice
    n_pad = rows * WIDTH

    def slab(x, dtype=None):
        x = x.reshape(-1)
        if dtype is not None:
            x = x.astype(dtype)
        x = jnp.pad(x, (0, n_pad - N))                # zero pad is neutral
        return x.reshape(rows, WIDTH)

    # 8 used prediction channels (channel 8, rectangular_box, is unused) keep
    # the caller's dtype (bf16-friendly); binary masks travel as int8.
    preds = [slab(inp[:, c]) for c in range(8)]
    bin_masks = [slab(m, jnp.int8) for m in (tr_mask, tcl_mask, train_mask)]
    flt_masks = [slab(m) for m in (tcl_weight, up_mask, down_mask,
                                   left_mask, right_mask)]
    args = preds + bin_masks + flt_masks

    data_idx = lambda c, i: (c * bps + i, 0)
    stats_idx = lambda c, i: (c, 0, 0)

    neg_loss, stats3 = pl.pallas_call(
        text_loss_kernel,
        out_shape=(jax.ShapeDtypeStruct((rows, WIDTH), jnp.float32),
                   jax.ShapeDtypeStruct((num_slices, _STAT_ROWS, WIDTH),
                                        jnp.float32)),
        grid=(num_slices, bps),
        in_specs=[pl.BlockSpec((tile_rows, WIDTH), data_idx)
                  for _ in range(len(args))],
        out_specs=(pl.BlockSpec((tile_rows, WIDTH), data_idx),
                   pl.BlockSpec((None, _STAT_ROWS, WIDTH), stats_idx)),
        compiler_params=pltpu.CompilerParams(
            dimension_semantics=("parallel", "arbitrary"),
            vmem_limit_bytes=32 * 1024 * 1024),
    )(*args)

    # cross-lane + cross-slice reduce of the per-lane partials (tiny array)
    stats = jnp.sum(stats3, axis=(0, 2))

    # ----- OHEM for loss_tr ------------------------------------------------
    n_pos_tm, n_pos_t = stats[_N_POS_TM], stats[_N_POS_T]
    has_pos_tm = n_pos_tm > 0.0
    n_pos = jnp.where(has_pos_tm, n_pos_tm, n_pos_t)
    loss_pos = jnp.where(has_pos_tm, stats[_POS_CE_TM], stats[_POS_CE_T])
    n_neg = jnp.minimum(stats[_N_NEG], jnp.floor(negative_ratio * n_pos))

    # n_neg = min(#neg, 3*#pos) with #pos + #neg <= N  =>  n_neg <= 3N/4, so a
    # static top_k cap of 3N//4 is exact and replaces the full O(N log N) sort.
    # TODO(synk): dynamic-k top-k has no clean Pallas primitive; the rank
    # selection stays in XLA glue (lax.top_k with the static worst-case cap).
    flat_neg = neg_loss.reshape(-1)
    k_cap = max(1, min(flat_neg.shape[0], (3 * N) // 4))
    top_vals, _ = lax.top_k(flat_neg, k_cap)
    ranks = jnp.arange(k_cap, dtype=jnp.float32)
    topk_sum = jnp.sum(jnp.where(ranks < n_neg, top_vals, 0.0))
    loss_tr = (loss_pos + topk_sum) / jnp.maximum(n_pos + n_neg, 1.0)

    # ----- TCL weighted mean (with the reference's tr-only fallback) --------
    use_tm = stats[_TCL_CNT_TM] > 0.0
    tcl_sum = jnp.where(use_tm, stats[_TCL_WSUM_TM], stats[_TCL_WSUM_T])
    tcl_cnt = jnp.where(use_tm, stats[_TCL_CNT_TM], stats[_N_POS_T])
    loss_tcl = tcl_sum / jnp.maximum(tcl_cnt, 1.0)

    # ----- smooth-L1 means (F.smooth_l1_loss default: mean over all pixels) -
    Nf = jnp.float32(N)
    loss_up = stats[_SL1_UP] / Nf
    loss_down = stats[_SL1_DOWN] / Nf
    loss_left = stats[_SL1_LEFT] / Nf
    loss_right = stats[_SL1_RIGHT] / Nf

    return loss_tr, loss_tcl, loss_up, loss_down, loss_left, loss_right


if __name__ == "__main__":
    key = jax.random.PRNGKey(0)
    B, C, H, W = 2, 9, 16, 16
    k = jax.random.split(key, 10)

    inp = jax.random.normal(k[0], (B, C, H, W), dtype=jnp.float32)
    tr_mask = (jax.random.uniform(k[1], (B, H, W)) < 0.5).astype(jnp.float32)
    tcl_mask = (jax.random.uniform(k[2], (B, H, W)) < 0.5).astype(jnp.float32)
    train_mask = (jax.random.uniform(k[3], (B, H, W)) < 0.8).astype(jnp.float32)
    tcl_weight = jax.random.uniform(k[4], (B, H, W), dtype=jnp.float32) + 0.5
    up_mask = jax.random.normal(k[5], (B, H, W), dtype=jnp.float32)
    down_mask = jax.random.normal(k[6], (B, H, W), dtype=jnp.float32)
    left_mask = jax.random.normal(k[7], (B, H, W), dtype=jnp.float32)
    right_mask = jax.random.normal(k[8], (B, H, W), dtype=jnp.float32)

    losses = text_loss(inp, tr_mask, tcl_mask, tcl_weight,
                       up_mask, down_mask, left_mask, right_mask, train_mask)
    losses = jax.block_until_ready(losses)

    assert all(bool(jnp.isfinite(l)) for l in losses)
    print("KERNEL_OK")
</pallas_src>

<mosaic_0001>
module attributes {stable_mosaic.version = 11 : i64} {
  func.func @text_loss_kernel(%arg0: i32, %arg1: i32, %arg2: memref<32x512xf32, #tpu.memory_space<vmem>>, %arg3: memref<32x512xf32, #tpu.memory_space<vmem>>, %arg4: memref<32x512xf32, #tpu.memory_space<vmem>>, %arg5: memref<32x512xf32, #tpu.memory_space<vmem>>, %arg6: memref<32x512xf32, #tpu.memory_space<vmem>>, %arg7: memref<32x512xf32, #tpu.memory_space<vmem>>, %arg8: memref<32x512xf32, #tpu.memory_space<vmem>>, %arg9: memref<32x512xf32, #tpu.memory_space<vmem>>, %arg10: memref<32x512xi8, #tpu.memory_space<vmem>>, %arg11: memref<32x512xi8, #tpu.memory_space<vmem>>, %arg12: memref<32x512xi8, #tpu.memory_space<vmem>>, %arg13: memref<32x512xf32, #tpu.memory_space<vmem>>, %arg14: memref<32x512xf32, #tpu.memory_space<vmem>>, %arg15: memref<32x512xf32, #tpu.memory_space<vmem>>, %arg16: memref<32x512xf32, #tpu.memory_space<vmem>>, %arg17: memref<32x512xf32, #tpu.memory_space<vmem>>, %arg18: memref<32x512xf32, #tpu.memory_space<vmem>>, %arg19: memref<1x16x512xf32, #tpu.memory_space<vmem>>) attributes {dimension_semantics = [#tpu.dimension_semantics<parallel>, #tpu.dimension_semantics<arbitrary>], iteration_bounds = array<i64: 1, 1>, scalar_prefetch = 0 : i64, scratch_operands = 0 : i64, tpu.core_type = #tpu.core_type<tc>, window_params = [{transform_indices = @transform_0, window_bounds = array<i64: 32, 512>}, {transform_indices = @transform_1, window_bounds = array<i64: 32, 512>}, {transform_indices = @transform_2, window_bounds = array<i64: 32, 512>}, {transform_indices = @transform_3, window_bounds = array<i64: 32, 512>}, {transform_indices = @transform_4, window_bounds = array<i64: 32, 512>}, {transform_indices = @transform_5, window_bounds = array<i64: 32, 512>}, {transform_indices = @transform_6, window_bounds = array<i64: 32, 512>}, {transform_indices = @transform_7, window_bounds = array<i64: 32, 512>}, {transform_indices = @transform_8, window_bounds = array<i64: 32, 512>}, {transform_indices = @transform_9, window_bounds = array<i64: 32, 512>}, {transform_indices = @transform_10, window_bounds = array<i64: 32, 512>}, {transform_indices = @transform_11, window_bounds = array<i64: 32, 512>}, {transform_indices = @transform_12, window_bounds = array<i64: 32, 512>}, {transform_indices = @transform_13, window_bounds = array<i64: 32, 512>}, {transform_indices = @transform_14, window_bounds = array<i64: 32, 512>}, {transform_indices = @transform_15, window_bounds = array<i64: 32, 512>}, {transform_indices = @transform_16, window_bounds = array<i64: 32, 512>}, {transform_indices = @transform_17, window_bounds = array<i64: 1, 16, 512>}]} {
    %c0_i32 = arith.constant 0 : i32
    %0 = arith.cmpi eq, %arg1, %c0_i32 : i32
    %1 = arith.extui %0 : i1 to i32
    %c0_i32_0 = arith.constant 0 : i32
    %2 = arith.cmpi ne, %1, %c0_i32_0 : i32
    scf.if %2 {
      %cst_132 = arith.constant 0.000000e+00 : f32
      %209 = vector.broadcast %cst_132 : f32 to vector<16x512xf32>
      %c0_133 = arith.constant 0 : index
      %c0_134 = arith.constant 0 : index
      %c0_135 = arith.constant 0 : index
      %210 = vector.load %arg19[%c0_133, %c0_134, %c0_135] : memref<1x16x512xf32, #tpu.memory_space<vmem>>, vector<1x16x512xf32>
      %211 = vector.shape_cast %210 : vector<1x16x512xf32> to vector<16x512xf32>
      %212 = vector.shape_cast %209 : vector<16x512xf32> to vector<1x16x512xf32>
      tpu.vector_store %arg19[%c0_133, %c0_134, %c0_135], %212 {strides = array<i32>} : memref<1x16x512xf32, #tpu.memory_space<vmem>>, vector<1x16x512xf32>,
    } else {
    }
    %c0 = arith.constant 0 : index
    %c0_1 = arith.constant 0 : index
    %3 = vector.load %arg10[%c0, %c0_1] : memref<32x512xi8, #tpu.memory_space<vmem>>, vector<32x512xi8>
    %4 = arith.sitofp %3 : vector<32x512xi8> to vector<32x512xf32>
    %c0_2 = arith.constant 0 : index
    %c0_3 = arith.constant 0 : index
    %5 = vector.load %arg11[%c0_2, %c0_3] : memref<32x512xi8, #tpu.memory_space<vmem>>, vector<32x512xi8>
    %6 = arith.sitofp %5 : vector<32x512xi8> to vector<32x512xf32>
    %c0_4 = arith.constant 0 : index
    %c0_5 = arith.constant 0 : index
    %7 = vector.load %arg12[%c0_4, %c0_5] : memref<32x512xi8, #tpu.memory_space<vmem>>, vector<32x512xi8>
    %8 = arith.sitofp %7 : vector<32x512xi8> to vector<32x512xf32>
    %c0_6 = arith.constant 0 : index
    %c0_7 = arith.constant 0 : index
    %9 = vector.load %arg2[%c0_6, %c0_7] : memref<32x512xf32, #tpu.memory_space<vmem>>, vector<32x512xf32>
    %c0_8 = arith.constant 0 : index
    %c0_9 = arith.constant 0 : index
    %10 = vector.load %arg3[%c0_8, %c0_9] : memref<32x512xf32, #tpu.memory_space<vmem>>, vector<32x512xf32>
    %11 = arith.subf %10, %9 : vector<32x512xf32>
    %12 = math.absf %11 : vector<32x512xf32>
    %cst = arith.constant 0.000000e+00 : f32
    %13 = vector.broadcast %cst : f32 to vector<32x512xf32>
    %14 = arith.subf %13, %12 : vector<32x512xf32>
    %15 = math.exp %14 : vector<32x512xf32>
    %cst_10 = arith.constant 1.000000e+00 : f32
    %16 = vector.broadcast %cst_10 : f32 to vector<32x512xf32>
    %17 = arith.addf %16, %15 : vector<32x512xf32>
    %18 = math.log %17 : vector<32x512xf32>
    %cst_11 = arith.constant 0.000000e+00 : f32
    %19 = vector.broadcast %cst_11 : f32 to vector<32x512xf32>
    %20 = arith.maximumf %11, %19 : vector<32x512xf32>
    %21 = arith.addf %20, %18 : vector<32x512xf32>
    %cst_12 = arith.constant 0.000000e+00 : f32
    %22 = vector.broadcast %cst_12 : f32 to vector<32x512xf32>
    %23 = arith.subf %22, %11 : vector<32x512xf32>
    %cst_13 = arith.constant 0.000000e+00 : f32
    %24 = vector.broadcast %cst_13 : f32 to vector<32x512xf32>
    %25 = arith.maximumf %23, %24 : vector<32x512xf32>
    %26 = arith.addf %25, %18 : vector<32x512xf32>
    %27 = arith.mulf %4, %8 : vector<32x512xf32>
    %cst_14 = arith.constant 1.000000e+00 : f32
    %28 = vector.broadcast %cst_14 : f32 to vector<32x512xf32>
    %29 = arith.subf %28, %4 : vector<32x512xf32>
    %30 = arith.mulf %29, %8 : vector<32x512xf32>
    %cst_15 = arith.constant 0.000000e+00 : f32
    %31 = vector.broadcast %cst_15 : f32 to vector<32x512xf32>
    %32 = arith.cmpf ogt, %30, %31 : vector<32x512xf32>
    %cst_16 = arith.constant -1.000000e+00 : f32
    %33 = vector.broadcast %cst_16 : f32 to vector<32x512xf32>
    %34 = arith.select %32, %21, %33 : vector<32x512xi1>, vector<32x512xf32>
    %c0_17 = arith.constant 0 : index
    %c0_18 = arith.constant 0 : index
    %35 = vector.load %arg18[%c0_17, %c0_18] : memref<32x512xf32, #tpu.memory_space<vmem>>, vector<32x512xf32>
    tpu.vector_store %arg18[%c0_17, %c0_18], %34 {strides = array<i32>} : memref<32x512xf32, #tpu.memory_space<vmem>>, vector<32x512xf32>,
    %c0_19 = arith.constant 0 : index
    %c0_20 = arith.constant 0 : index
    %c0_21 = arith.constant 0 : index
    %36 = vector.load %arg19[%c0_19, %c0_20, %c0_21] : memref<1x16x512xf32, #tpu.memory_space<vmem>>, vector<1x1x512xf32>
    %37 = vector.shape_cast %36 : vector<1x1x512xf32> to vector<1x512xf32>
    %cst_22 = arith.constant dense<0.000000e+00> : vector<512xf32>
    %38 = vector.multi_reduction <add>, %27, %cst_22 [0] : vector<32x512xf32> to vector<512xf32>
    %39 = vector.shape_cast %38 : vector<512xf32> to vector<1x512xf32>
    %40 = arith.addf %37, %39 : vector<1x512xf32>
    %c0_23 = arith.constant 0 : index
    %c0_24 = arith.constant 0 : index
    %c0_25 = arith.constant 0 : index
    %41 = vector.load %arg19[%c0_23, %c0_24, %c0_25] : memref<1x16x512xf32, #tpu.memory_space<vmem>>, vector<1x1x512xf32>
    %42 = vector.shape_cast %41 : vector<1x1x512xf32> to vector<1x512xf32>
    %43 = vector.shape_cast %40 : vector<1x512xf32> to vector<1x1x512xf32>
    tpu.vector_store %arg19[%c0_23, %c0_24, %c0_25], %43 {strides = array<i32>} : memref<1x16x512xf32, #tpu.memory_space<vmem>>, vector<1x1x512xf32>,
    %c0_26 = arith.constant 0 : index
    %c1 = arith.constant 1 : index
    %c0_27 = arith.constant 0 : index
    %44 = vector.load %arg19[%c0_26, %c1, %c0_27] : memref<1x16x512xf32, #tpu.memory_space<vmem>>, vector<1x1x512xf32>
    %45 = vector.shape_cast %44 : vector<1x1x512xf32> to vector<1x512xf32>
    %cst_28 = arith.constant dense<0.000000e+00> : vector<512xf32>
    %46 = vector.multi_reduction <add>, %4, %cst_28 [0] : vector<32x512xf32> to vector<512xf32>
    %47 = vector.shape_cast %46 : vector<512xf32> to vector<1x512xf32>
    %48 = arith.addf %45, %47 : vector<1x512xf32>
    %c0_29 = arith.constant 0 : index
    %c1_30 = arith.constant 1 : index
    %c0_31 = arith.constant 0 : index
    %49 = vector.load %arg19[%c0_29, %c1_30, %c0_31] : memref<1x16x512xf32, #tpu.memory_space<vmem>>, vector<1x1x512xf32>
    %50 = vector.shape_cast %49 : vector<1x1x512xf32> to vector<1x512xf32>
    %51 = vector.shape_cast %48 : vector<1x512xf32> to vector<1x1x512xf32>
    tpu.vector_store %arg19[%c0_29, %c1_30, %c0_31], %51 {strides = array<i32>} : memref<1x16x512xf32, #tpu.memory_space<vmem>>, vector<1x1x512xf32>,
    %52 = arith.mulf %27, %26 : vector<32x512xf32>
    %c0_32 = arith.constant 0 : index
    %c2 = arith.constant 2 : index
    %c0_33 = arith.constant 0 : index
    %53 = vector.load %arg19[%c0_32, %c2, %c0_33] : memref<1x16x512xf32, #tpu.memory_space<vmem>>, vector<1x1x512xf32>
    %54 = vector.shape_cast %53 : vector<1x1x512xf32> to vector<1x512xf32>
    %cst_34 = arith.constant dense<0.000000e+00> : vector<512xf32>
    %55 = vector.multi_reduction <add>, %52, %cst_34 [0] : vector<32x512xf32> to vector<512xf32>
    %56 = vector.shape_cast %55 : vector<512xf32> to vector<1x512xf32>
    %57 = arith.addf %54, %56 : vector<1x512xf32>
    %c0_35 = arith.constant 0 : index
    %c2_36 = arith.constant 2 : index
    %c0_37 = arith.constant 0 : index
    %58 = vector.load %arg19[%c0_35, %c2_36, %c0_37] : memref<1x16x512xf32, #tpu.memory_space<vmem>>, vector<1x1x512xf32>
    %59 = vector.shape_cast %58 : vector<1x1x512xf32> to vector<1x512xf32>
    %60 = vector.shape_cast %57 : vector<1x512xf32> to vector<1x1x512xf32>
    tpu.vector_store %arg19[%c0_35, %c2_36, %c0_37], %60 {strides = array<i32>} : memref<1x16x512xf32, #tpu.memory_space<vmem>>, vector<1x1x512xf32>,
    %61 = arith.mulf %4, %26 : vector<32x512xf32>
    %c0_38 = arith.constant 0 : index
    %c3 = arith.constant 3 : index
    %c0_39 = arith.constant 0 : index
    %62 = vector.load %arg19[%c0_38, %c3, %c0_39] : memref<1x16x512xf32, #tpu.memory_space<vmem>>, vector<1x1x512xf32>
    %63 = vector.shape_cast %62 : vector<1x1x512xf32> to vector<1x512xf32>
    %cst_40 = arith.constant dense<0.000000e+00> : vector<512xf32>
    %64 = vector.multi_reduction <add>, %61, %cst_40 [0] : vector<32x512xf32> to vector<512xf32>
    %65 = vector.shape_cast %64 : vector<512xf32> to vector<1x512xf32>
    %66 = arith.addf %63, %65 : vector<1x512xf32>
    %c0_41 = arith.constant 0 : index
    %c3_42 = arith.constant 3 : index
    %c0_43 = arith.constant 0 : index
    %67 = vector.load %arg19[%c0_41, %c3_42, %c0_43] : memref<1x16x512xf32, #tpu.memory_space<vmem>>, vector<1x1x512xf32>
    %68 = vector.shape_cast %67 : vector<1x1x512xf32> to vector<1x512xf32>
    %69 = vector.shape_cast %66 : vector<1x512xf32> to vector<1x1x512xf32>
    tpu.vector_store %arg19[%c0_41, %c3_42, %c0_43], %69 {strides = array<i32>} : memref<1x16x512xf32, #tpu.memory_space<vmem>>, vector<1x1x512xf32>,
    %c0_44 = arith.constant 0 : index
    %c4 = arith.constant 4 : index
    %c0_45 = arith.constant 0 : index
    %70 = vector.load %arg19[%c0_44, %c4, %c0_45] : memref<1x16x512xf32, #tpu.memory_space<vmem>>, vector<1x1x512xf32>
    %71 = vector.shape_cast %70 : vector<1x1x512xf32> to vector<1x512xf32>
    %cst_46 = arith.constant dense<0.000000e+00> : vector<512xf32>
    %72 = vector.multi_reduction <add>, %30, %cst_46 [0] : vector<32x512xf32> to vector<512xf32>
    %73 = vector.shape_cast %72 : vector<512xf32> to vector<1x512xf32>
    %74 = arith.addf %71, %73 : vector<1x512xf32>
    %c0_47 = arith.constant 0 : index
    %c4_48 = arith.constant 4 : index
    %c0_49 = arith.constant 0 : index
    %75 = vector.load %arg19[%c0_47, %c4_48, %c0_49] : memref<1x16x512xf32, #tpu.memory_space<vmem>>, vector<1x1x512xf32>
    %76 = vector.shape_cast %75 : vector<1x1x512xf32> to vector<1x512xf32>
    %77 = vector.shape_cast %74 : vector<1x512xf32> to vector<1x1x512xf32>
    tpu.vector_store %arg19[%c0_47, %c4_48, %c0_49], %77 {strides = array<i32>} : memref<1x16x512xf32, #tpu.memory_space<vmem>>, vector<1x1x512xf32>,
    %c0_50 = arith.constant 0 : index
    %c0_51 = arith.constant 0 : index
    %78 = vector.load %arg4[%c0_50, %c0_51] : memref<32x512xf32, #tpu.memory_space<vmem>>, vector<32x512xf32>
    %c0_52 = arith.constant 0 : index
    %c0_53 = arith.constant 0 : index
    %79 = vector.load %arg5[%c0_52, %c0_53] : memref<32x512xf32, #tpu.memory_space<vmem>>, vector<32x512xf32>
    %80 = arith.subf %79, %78 : vector<32x512xf32>
    %81 = math.absf %80 : vector<32x512xf32>
    %cst_54 = arith.constant 0.000000e+00 : f32
    %82 = vector.broadcast %cst_54 : f32 to vector<32x512xf32>
    %83 = arith.subf %82, %81 : vector<32x512xf32>
    %84 = math.exp %83 : vector<32x512xf32>
    %cst_55 = arith.constant 1.000000e+00 : f32
    %85 = vector.broadcast %cst_55 : f32 to vector<32x512xf32>
    %86 = arith.addf %85, %84 : vector<32x512xf32>
    %87 = math.log %86 : vector<32x512xf32>
    %cst_56 = arith.constant 0.000000e+00 : f32
    %88 = vector.broadcast %cst_56 : f32 to vector<32x512xf32>
    %89 = arith.maximumf %80, %88 : vector<32x512xf32>
    %90 = arith.addf %89, %87 : vector<32x512xf32>
    %cst_57 = arith.constant 0.000000e+00 : f32
    %91 = vector.broadcast %cst_57 : f32 to vector<32x512xf32>
    %92 = arith.subf %91, %80 : vector<32x512xf32>
    %cst_58 = arith.constant 0.000000e+00 : f32
    %93 = vector.broadcast %cst_58 : f32 to vector<32x512xf32>
    %94 = arith.maximumf %92, %93 : vector<32x512xf32>
    %95 = arith.addf %94, %87 : vector<32x512xf32>
    %cst_59 = arith.constant 0.000000e+00 : f32
    %96 = vector.broadcast %cst_59 : f32 to vector<32x512xf32>
    %97 = arith.cmpf ogt, %6, %96 : vector<32x512xf32>
    %98 = arith.select %97, %95, %90 : vector<32x512xi1>, vector<32x512xf32>
    %c0_60 = arith.constant 0 : index
    %c0_61 = arith.constant 0 : index
    %99 = vector.load %arg13[%c0_60, %c0_61] : memref<32x512xf32, #tpu.memory_space<vmem>>, vector<32x512xf32>
    %100 = arith.mulf %8, %4 : vector<32x512xf32>
    %101 = arith.mulf %100, %99 : vector<32x512xf32>
    %102 = arith.mulf %101, %98 : vector<32x512xf32>
    %c0_62 = arith.constant 0 : index
    %c5 = arith.constant 5 : index
    %c0_63 = arith.constant 0 : index
    %103 = vector.load %arg19[%c0_62, %c5, %c0_63] : memref<1x16x512xf32, #tpu.memory_space<vmem>>, vector<1x1x512xf32>
    %104 = vector.shape_cast %103 : vector<1x1x512xf32> to vector<1x512xf32>
    %cst_64 = arith.constant dense<0.000000e+00> : vector<512xf32>
    %105 = vector.multi_reduction <add>, %102, %cst_64 [0] : vector<32x512xf32> to vector<512xf32>
    %106 = vector.shape_cast %105 : vector<512xf32> to vector<1x512xf32>
    %107 = arith.addf %104, %106 : vector<1x512xf32>
    %c0_65 = arith.constant 0 : index
    %c5_66 = arith.constant 5 : index
    %c0_67 = arith.constant 0 : index
    %108 = vector.load %arg19[%c0_65, %c5_66, %c0_67] : memref<1x16x512xf32, #tpu.memory_space<vmem>>, vector<1x1x512xf32>
    %109 = vector.shape_cast %108 : vector<1x1x512xf32> to vector<1x512xf32>
    %110 = vector.shape_cast %107 : vector<1x512xf32> to vector<1x1x512xf32>
    tpu.vector_store %arg19[%c0_65, %c5_66, %c0_67], %110 {strides = array<i32>} : memref<1x16x512xf32, #tpu.memory_space<vmem>>, vector<1x1x512xf32>,
    %c0_68 = arith.constant 0 : index
    %c6 = arith.constant 6 : index
    %c0_69 = arith.constant 0 : index
    %111 = vector.load %arg19[%c0_68, %c6, %c0_69] : memref<1x16x512xf32, #tpu.memory_space<vmem>>, vector<1x1x512xf32>
    %112 = vector.shape_cast %111 : vector<1x1x512xf32> to vector<1x512xf32>
    %cst_70 = arith.constant dense<0.000000e+00> : vector<512xf32>
    %113 = vector.multi_reduction <add>, %100, %cst_70 [0] : vector<32x512xf32> to vector<512xf32>
    %114 = vector.shape_cast %113 : vector<512xf32> to vector<1x512xf32>
    %115 = arith.addf %112, %114 : vector<1x512xf32>
    %c0_71 = arith.constant 0 : index
    %c6_72 = arith.constant 6 : index
    %c0_73 = arith.constant 0 : index
    %116 = vector.load %arg19[%c0_71, %c6_72, %c0_73] : memref<1x16x512xf32, #tpu.memory_space<vmem>>, vector<1x1x512xf32>
    %117 = vector.shape_cast %116 : vector<1x1x512xf32> to vector<1x512xf32>
    %118 = vector.shape_cast %115 : vector<1x512xf32> to vector<1x1x512xf32>
    tpu.vector_store %arg19[%c0_71, %c6_72, %c0_73], %118 {strides = array<i32>} : memref<1x16x512xf32, #tpu.memory_space<vmem>>, vector<1x1x512xf32>,
    %119 = arith.mulf %4, %99 : vector<32x512xf32>
    %120 = arith.mulf %119, %98 : vector<32x512xf32>
    %c0_74 = arith.constant 0 : index
    %c7 = arith.constant 7 : index
    %c0_75 = arith.constant 0 : index
    %121 = vector.load %arg19[%c0_74, %c7, %c0_75] : memref<1x16x512xf32, #tpu.memory_space<vmem>>, vector<1x1x512xf32>
    %122 = vector.shape_cast %121 : vector<1x1x512xf32> to vector<1x512xf32>
    %cst_76 = arith.constant dense<0.000000e+00> : vector<512xf32>
    %123 = vector.multi_reduction <add>, %120, %cst_76 [0] : vector<32x512xf32> to vector<512xf32>
    %124 = vector.shape_cast %123 : vector<512xf32> to vector<1x512xf32>
    %125 = arith.addf %122, %124 : vector<1x512xf32>
    %c0_77 = arith.constant 0 : index
    %c7_78 = arith.constant 7 : index
    %c0_79 = arith.constant 0 : index
    %126 = vector.load %arg19[%c0_77, %c7_78, %c0_79] : memref<1x16x512xf32, #tpu.memory_space<vmem>>, vector<1x1x512xf32>
    %127 = vector.shape_cast %126 : vector<1x1x512xf32> to vector<1x512xf32>
    %128 = vector.shape_cast %125 : vector<1x512xf32> to vector<1x1x512xf32>
    tpu.vector_store %arg19[%c0_77, %c7_78, %c0_79], %128 {strides = array<i32>} : memref<1x16x512xf32, #tpu.memory_space<vmem>>, vector<1x1x512xf32>,
    %c0_80 = arith.constant 0 : index
    %c0_81 = arith.constant 0 : index
    %129 = vector.load %arg6[%c0_80, %c0_81] : memref<32x512xf32, #tpu.memory_space<vmem>>, vector<32x512xf32>
    %c0_82 = arith.constant 0 : index
    %c0_83 = arith.constant 0 : index
    %130 = vector.load %arg14[%c0_82, %c0_83] : memref<32x512xf32, #tpu.memory_space<vmem>>, vector<32x512xf32>
    %131 = arith.subf %129, %130 : vector<32x512xf32>
    %132 = math.absf %131 : vector<32x512xf32>
    %cst_84 = arith.constant 1.000000e+00 : f32
    %133 = vector.broadcast %cst_84 : f32 to vector<32x512xf32>
    %134 = arith.cmpf olt, %132, %133 : vector<32x512xf32>
    %cst_85 = arith.constant 5.000000e-01 : f32
    %135 = vector.broadcast %cst_85 : f32 to vector<32x512xf32>
    %136 = arith.mulf %135, %131 : vector<32x512xf32>
    %137 = arith.mulf %136, %131 : vector<32x512xf32>
    %cst_86 = arith.constant 5.000000e-01 : f32
    %138 = vector.broadcast %cst_86 : f32 to vector<32x512xf32>
    %139 = arith.subf %132, %138 : vector<32x512xf32>
    %140 = arith.select %134, %137, %139 : vector<32x512xi1>, vector<32x512xf32>
    %c0_87 = arith.constant 0 : index
    %c8 = arith.constant 8 : index
    %c0_88 = arith.constant 0 : index
    %141 = vector.load %arg19[%c0_87, %c8, %c0_88] : memref<1x16x512xf32, #tpu.memory_space<vmem>>, vector<1x1x512xf32>
    %142 = vector.shape_cast %141 : vector<1x1x512xf32> to vector<1x512xf32>
    %cst_89 = arith.constant dense<0.000000e+00> : vector<512xf32>
    %143 = vector.multi_reduction <add>, %140, %cst_89 [0] : vector<32x512xf32> to vector<512xf32>
    %144 = vector.shape_cast %143 : vector<512xf32> to vector<1x512xf32>
    %145 = arith.addf %142, %144 : vector<1x512xf32>
    %c0_90 = arith.constant 0 : index
    %c8_91 = arith.constant 8 : index
    %c0_92 = arith.constant 0 : index
    %146 = vector.load %arg19[%c0_90, %c8_91, %c0_92] : memref<1x16x512xf32, #tpu.memory_space<vmem>>, vector<1x1x512xf32>
    %147 = vector.shape_cast %146 : vector<1x1x512xf32> to vector<1x512xf32>
    %148 = vector.shape_cast %145 : vector<1x512xf32> to vector<1x1x512xf32>
    tpu.vector_store %arg19[%c0_90, %c8_91, %c0_92], %148 {strides = array<i32>} : memref<1x16x512xf32, #tpu.memory_space<vmem>>, vector<1x1x512xf32>,
    %c0_93 = arith.constant 0 : index
    %c0_94 = arith.constant 0 : index
    %149 = vector.load %arg7[%c0_93, %c0_94] : memref<32x512xf32, #tpu.memory_space<vmem>>, vector<32x512xf32>
    %c0_95 = arith.constant 0 : index
    %c0_96 = arith.constant 0 : index
    %150 = vector.load %arg15[%c0_95, %c0_96] : memref<32x512xf32, #tpu.memory_space<vmem>>, vector<32x512xf32>
    %151 = arith.subf %149, %150 : vector<32x512xf32>
    %152 = math.absf %151 : vector<32x512xf32>
    %cst_97 = arith.constant 1.000000e+00 : f32
    %153 = vector.broadcast %cst_97 : f32 to vector<32x512xf32>
    %154 = arith.cmpf olt, %152, %153 : vector<32x512xf32>
    %cst_98 = arith.constant 5.000000e-01 : f32
    %155 = vector.broadcast %cst_98 : f32 to vector<32x512xf32>
    %156 = arith.mulf %155, %151 : vector<32x512xf32>
    %157 = arith.mulf %156, %151 : vector<32x512xf32>
    %cst_99 = arith.constant 5.000000e-01 : f32
    %158 = vector.broadcast %cst_99 : f32 to vector<32x512xf32>
    %159 = arith.subf %152, %158 : vector<32x512xf32>
    %160 = arith.select %154, %157, %159 : vector<32x512xi1>, vector<32x512xf32>
    %c0_100 = arith.constant 0 : index
    %c9 = arith.constant 9 : index
    %c0_101 = arith.constant 0 : index
    %161 = vector.load %arg19[%c0_100, %c9, %c0_101] : memref<1x16x512xf32, #tpu.memory_space<vmem>>, vector<1x1x512xf32>
    %162 = vector.shape_cast %161 : vector<1x1x512xf32> to vector<1x512xf32>
    %cst_102 = arith.constant dense<0.000000e+00> : vector<512xf32>
    %163 = vector.multi_reduction <add>, %160, %cst_102 [0] : vector<32x512xf32> to vector<512xf32>
    %164 = vector.shape_cast %163 : vector<512xf32> to vector<1x512xf32>
    %165 = arith.addf %162, %164 : vector<1x512xf32>
    %c0_103 = arith.constant 0 : index
    %c9_104 = arith.constant 9 : index
    %c0_105 = arith.constant 0 : index
    %166 = vector.load %arg19[%c0_103, %c9_104, %c0_105] : memref<1x16x512xf32, #tpu.memory_space<vmem>>, vector<1x1x512xf32>
    %167 = vector.shape_cast %166 : vector<1x1x512xf32> to vector<1x512xf32>
    %168 = vector.shape_cast %165 : vector<1x512xf32> to vector<1x1x512xf32>
    tpu.vector_store %arg19[%c0_103, %c9_104, %c0_105], %168 {strides = array<i32>} : memref<1x16x512xf32, #tpu.memory_space<vmem>>, vector<1x1x512xf32>,
    %c0_106 = arith.constant 0 : index
    %c0_107 = arith.constant 0 : index
    %169 = vector.load %arg8[%c0_106, %c0_107] : memref<32x512xf32, #tpu.memory_space<vmem>>, vector<32x512xf32>
    %c0_108 = arith.constant 0 : index
    %c0_109 = arith.constant 0 : index
    %170 = vector.load %arg16[%c0_108, %c0_109] : memref<32x512xf32, #tpu.memory_space<vmem>>, vector<32x512xf32>
    %171 = arith.subf %169, %170 : vector<32x512xf32>
    %172 = math.absf %171 : vector<32x512xf32>
    %cst_110 = arith.constant 1.000000e+00 : f32
    %173 = vector.broadcast %cst_110 : f32 to vector<32x512xf32>
    %174 = arith.cmpf olt, %172, %173 : vector<32x512xf32>
    %cst_111 = arith.constant 5.000000e-01 : f32
    %175 = vector.broadcast %cst_111 : f32 to vector<32x512xf32>
    %176 = arith.mulf %175, %171 : vector<32x512xf32>
    %177 = arith.mulf %176, %171 : vector<32x512xf32>
    %cst_112 = arith.constant 5.000000e-01 : f32
    %178 = vector.broadcast %cst_112 : f32 to vector<32x512xf32>
    %179 = arith.subf %172, %178 : vector<32x512xf32>
    %180 = arith.select %174, %177, %179 : vector<32x512xi1>, vector<32x512xf32>
    %c0_113 = arith.constant 0 : index
    %c10 = arith.constant 10 : index
    %c0_114 = arith.constant 0 : index
    %181 = vector.load %arg19[%c0_113, %c10, %c0_114] : memref<1x16x512xf32, #tpu.memory_space<vmem>>, vector<1x1x512xf32>
    %182 = vector.shape_cast %181 : vector<1x1x512xf32> to vector<1x512xf32>
    %cst_115 = arith.constant dense<0.000000e+00> : vector<512xf32>
    %183 = vector.multi_reduction <add>, %180, %cst_115 [0] : vector<32x512xf32> to vector<512xf32>
    %184 = vector.shape_cast %183 : vector<512xf32> to vector<1x512xf32>
    %185 = arith.addf %182, %184 : vector<1x512xf32>
    %c0_116 = arith.constant 0 : index
    %c10_117 = arith.constant 10 : index
    %c0_118 = arith.constant 0 : index
    %186 = vector.load %arg19[%c0_116, %c10_117, %c0_118] : memref<1x16x512xf32, #tpu.memory_space<vmem>>, vector<1x1x512xf32>
    %187 = vector.shape_cast %186 : vector<1x1x512xf32> to vector<1x512xf32>
    %188 = vector.shape_cast %185 : vector<1x512xf32> to vector<1x1x512xf32>
    tpu.vector_store %arg19[%c0_116, %c10_117, %c0_118], %188 {strides = array<i32>} : memref<1x16x512xf32, #tpu.memory_space<vmem>>, vector<1x1x512xf32>,
    %c0_119 = arith.constant 0 : index
    %c0_120 = arith.constant 0 : index
    %189 = vector.load %arg9[%c0_119, %c0_120] : memref<32x512xf32, #tpu.memory_space<vmem>>, vector<32x512xf32>
    %c0_121 = arith.constant 0 : index
    %c0_122 = arith.constant 0 : index
    %190 = vector.load %arg17[%c0_121, %c0_122] : memref<32x512xf32, #tpu.memory_space<vmem>>, vector<32x512xf32>
    %191 = arith.subf %189, %190 : vector<32x512xf32>
    %192 = math.absf %191 : vector<32x512xf32>
    %cst_123 = arith.constant 1.000000e+00 : f32
    %193 = vector.broadcast %cst_123 : f32 to vector<32x512xf32>
    %194 = arith.cmpf olt, %192, %193 : vector<32x512xf32>
    %cst_124 = arith.constant 5.000000e-01 : f32
    %195 = vector.broadcast %cst_124 : f32 to vector<32x512xf32>
    %196 = arith.mulf %195, %191 : vector<32x512xf32>
    %197 = arith.mulf %196, %191 : vector<32x512xf32>
    %cst_125 = arith.constant 5.000000e-01 : f32
    %198 = vector.broadcast %cst_125 : f32 to vector<32x512xf32>
    %199 = arith.subf %192, %198 : vector<32x512xf32>
    %200 = arith.select %194, %197, %199 : vector<32x512xi1>, vector<32x512xf32>
    %c0_126 = arith.constant 0 : index
    %c11 = arith.constant 11 : index
    %c0_127 = arith.constant 0 : index
    %201 = vector.load %arg19[%c0_126, %c11, %c0_127] : memref<1x16x512xf32, #tpu.memory_space<vmem>>, vector<1x1x512xf32>
    %202 = vector.shape_cast %201 : vector<1x1x512xf32> to vector<1x512xf32>
    %cst_128 = arith.constant dense<0.000000e+00> : vector<512xf32>
    %203 = vector.multi_reduction <add>, %200, %cst_128 [0] : vector<32x512xf32> to vector<512xf32>
    %204 = vector.shape_cast %203 : vector<512xf32> to vector<1x512xf32>
    %205 = arith.addf %202, %204 : vector<1x512xf32>
    %c0_129 = arith.constant 0 : index
    %c11_130 = arith.constant 11 : index
    %c0_131 = arith.constant 0 : index
    %206 = vector.load %arg19[%c0_129, %c11_130, %c0_131] : memref<1x16x512xf32, #tpu.memory_space<vmem>>, vector<1x1x512xf32>
    %207 = vector.shape_cast %206 : vector<1x1x512xf32> to vector<1x512xf32>
    %208 = vector.shape_cast %205 : vector<1x512xf32> to vector<1x1x512xf32>
    tpu.vector_store %arg19[%c0_129, %c11_130, %c0_131], %208 {strides = array<i32>} : memref<1x16x512xf32, #tpu.memory_space<vmem>>, vector<1x1x512xf32>,
    return
  }
  func.func @transform_0(%arg0: i32, %arg1: i32) -> (i32, i32) {
    %c1_i32 = arith.constant 1 : i32
    %0 = arith.muli %arg0, %c1_i32 : i32
    %1 = arith.addi %0, %arg1 : i32
    %c0_i32 = arith.constant 0 : i32
    %c0_i32_0 = arith.constant 0 : i32
    return %1, %c0_i32 : i32, i32
  }
  func.func @transform_1(%arg0: i32, %arg1: i32) -> (i32, i32) {
    %c1_i32 = arith.constant 1 : i32
    %0 = arith.muli %arg0, %c1_i32 : i32
    %1 = arith.addi %0, %arg1 : i32
    %c0_i32 = arith.constant 0 : i32
    %c0_i32_0 = arith.constant 0 : i32
    return %1, %c0_i32 : i32, i32
  }
  func.func @transform_2(%arg0: i32, %arg1: i32) -> (i32, i32) {
    %c1_i32 = arith.constant 1 : i32
    %0 = arith.muli %arg0, %c1_i32 : i32
    %1 = arith.addi %0, %arg1 : i32
    %c0_i32 = arith.constant 0 : i32
    %c0_i32_0 = arith.constant 0 : i32
    return %1, %c0_i32 : i32, i32
  }
  func.func @transform_3(%arg0: i32, %arg1: i32) -> (i32, i32) {
    %c1_i32 = arith.constant 1 : i32
    %0 = arith.muli %arg0, %c1_i32 : i32
    %1 = arith.addi %0, %arg1 : i32
    %c0_i32 = arith.constant 0 : i32
    %c0_i32_0 = arith.constant 0 : i32
    return %1, %c0_i32 : i32, i32
  }
  func.func @transform_4(%arg0: i32, %arg1: i32) -> (i32, i32) {
    %c1_i32 = arith.constant 1 : i32
    %0 = arith.muli %arg0, %c1_i32 : i32
    %1 = arith.addi %0, %arg1 : i32
    %c0_i32 = arith.constant 0 : i32
    %c0_i32_0 = arith.constant 0 : i32
    return %1, %c0_i32 : i32, i32
  }
  func.func @transform_5(%arg0: i32, %arg1: i32) -> (i32, i32) {
    %c1_i32 = arith.constant 1 : i32
    %0 = arith.muli %arg0, %c1_i32 : i32
    %1 = arith.addi %0, %arg1 : i32
    %c0_i32 = arith.constant 0 : i32
    %c0_i32_0 = arith.constant 0 : i32
    return %1, %c0_i32 : i32, i32
  }
  func.func @transform_6(%arg0: i32, %arg1: i32) -> (i32, i32) {
    %c1_i32 = arith.constant 1 : i32
    %0 = arith.muli %arg0, %c1_i32 : i32
    %1 = arith.addi %0, %arg1 : i32
    %c0_i32 = arith.constant 0 : i32
    %c0_i32_0 = arith.constant 0 : i32
    return %1, %c0_i32 : i32, i32
  }
  func.func @transform_7(%arg0: i32, %arg1: i32) -> (i32, i32) {
    %c1_i32 = arith.constant 1 : i32
    %0 = arith.muli %arg0, %c1_i32 : i32
    %1 = arith.addi %0, %arg1 : i32
    %c0_i32 = arith.constant 0 : i32
    %c0_i32_0 = arith.constant 0 : i32
    return %1, %c0_i32 : i32, i32
  }
  func.func @transform_8(%arg0: i32, %arg1: i32) -> (i32, i32) {
    %c1_i32 = arith.constant 1 : i32
    %0 = arith.muli %arg0, %c1_i32 : i32
    %1 = arith.addi %0, %arg1 : i32
    %c0_i32 = arith.constant 0 : i32
    %c0_i32_0 = arith.constant 0 : i32
    return %1, %c0_i32 : i32, i32
  }
  func.func @transform_9(%arg0: i32, %arg1: i32) -> (i32, i32) {
    %c1_i32 = arith.constant 1 : i32
    %0 = arith.muli %arg0, %c1_i32 : i32
    %1 = arith.addi %0, %arg1 : i32
    %c0_i32 = arith.constant 0 : i32
    %c0_i32_0 = arith.constant 0 : i32
    return %1, %c0_i32 : i32, i32
  }
  func.func @transform_10(%arg0: i32, %arg1: i32) -> (i32, i32) {
    %c1_i32 = arith.constant 1 : i32
    %0 = arith.muli %arg0, %c1_i32 : i32
    %1 = arith.addi %0, %arg1 : i32
    %c0_i32 = arith.constant 0 : i32
    %c0_i32_0 = arith.constant 0 : i32
    return %1, %c0_i32 : i32, i32
  }
  func.func @transform_11(%arg0: i32, %arg1: i32) -> (i32, i32) {
    %c1_i32 = arith.constant 1 : i32
    %0 = arith.muli %arg0, %c1_i32 : i32
    %1 = arith.addi %0, %arg1 : i32
    %c0_i32 = arith.constant 0 : i32
    %c0_i32_0 = arith.constant 0 : i32
    return %1, %c0_i32 : i32, i32
  }
  func.func @transform_12(%arg0: i32, %arg1: i32) -> (i32, i32) {
    %c1_i32 = arith.constant 1 : i32
    %0 = arith.muli %arg0, %c1_i32 : i32
    %1 = arith.addi %0, %arg1 : i32
    %c0_i32 = arith.constant 0 : i32
    %c0_i32_0 = arith.constant 0 : i32
    return %1, %c0_i32 : i32, i32
  }
  func.func @transform_13(%arg0: i32, %arg1: i32) -> (i32, i32) {
    %c1_i32 = arith.constant 1 : i32
    %0 = arith.muli %arg0, %c1_i32 : i32
    %1 = arith.addi %0, %arg1 : i32
    %c0_i32 = arith.constant 0 : i32
    %c0_i32_0 = arith.constant 0 : i32
    return %1, %c0_i32 : i32, i32
  }
  func.func @transform_14(%arg0: i32, %arg1: i32) -> (i32, i32) {
    %c1_i32 = arith.constant 1 : i32
    %0 = arith.muli %arg0, %c1_i32 : i32
    %1 = arith.addi %0, %arg1 : i32
    %c0_i32 = arith.constant 0 : i32
    %c0_i32_0 = arith.constant 0 : i32
    return %1, %c0_i32 : i32, i32
  }
  func.func @transform_15(%arg0: i32, %arg1: i32) -> (i32, i32) {
    %c1_i32 = arith.constant 1 : i32
    %0 = arith.muli %arg0, %c1_i32 : i32
    %1 = arith.addi %0, %arg1 : i32
    %c0_i32 = arith.constant 0 : i32
    %c0_i32_0 = arith.constant 0 : i32
    return %1, %c0_i32 : i32, i32
  }
  func.func @transform_16(%arg0: i32, %arg1: i32) -> (i32, i32) {
    %c1_i32 = arith.constant 1 : i32
    %0 = arith.muli %arg0, %c1_i32 : i32
    %1 = arith.addi %0, %arg1 : i32
    %c0_i32 = arith.constant 0 : i32
    %c0_i32_0 = arith.constant 0 : i32
    return %1, %c0_i32 : i32, i32
  }
  func.func @transform_17(%arg0: i32, %arg1: i32) -> (i32, i32, i32) {
    %c0_i32 = arith.constant 0 : i32
    %c0_i32_0 = arith.constant 0 : i32
    %c0_i32_1 = arith.constant 0 : i32
    return %arg0, %c0_i32, %c0_i32_0 : i32, i32, i32
  }
}

</mosaic_0001>

<llo_original>
// kernel: tpu_custom_call.1
$region0: #{tpu_custom_call.1}
  #allocation0 [shape = 'u32[]', space=smem, size = 0x4, offset = 0x4, fixed_abs, tag = 'smem constant byte address 0x4 - core index']
  #allocation1 [shape = 'u32[144,128]{1,0:T(1,128)}', space=vmem, size = 0x12000, scoped, tag = 'internal scratch']
  %s0 = inlined_call_operand.hbm [shape: f32[32,512], index: 0, kind: input, shape index: {}]
  %s1 = inlined_call_operand.hbm [shape: f32[32,512], index: 1, kind: input, shape index: {}]
  %s2 = inlined_call_operand.hbm [shape: f32[32,512], index: 2, kind: input, shape index: {}]
  %s3 = inlined_call_operand.hbm [shape: f32[32,512], index: 3, kind: input, shape index: {}]
  %s4 = inlined_call_operand.hbm [shape: f32[32,512], index: 4, kind: input, shape index: {}]
  %s5 = inlined_call_operand.hbm [shape: f32[32,512], index: 5, kind: input, shape index: {}]
  %s6 = inlined_call_operand.hbm [shape: f32[32,512], index: 6, kind: input, shape index: {}]
  %s7 = inlined_call_operand.hbm [shape: f32[32,512], index: 7, kind: input, shape index: {}]
  %s8 = inlined_call_operand.hbm [shape: s8[32,512], index: 8, kind: input, shape index: {}]
  %s9 = inlined_call_operand.vmem [shape: s8[32,512], index: 9, kind: input, shape index: {}]
  %s10 = inlined_call_operand.hbm [shape: s8[32,512], index: 10, kind: input, shape index: {}]
  %s11 = inlined_call_operand.hbm [shape: f32[32,512], index: 11, kind: input, shape index: {}]
  %s12 = inlined_call_operand.hbm [shape: f32[32,512], index: 12, kind: input, shape index: {}]
  %s13 = inlined_call_operand.hbm [shape: f32[32,512], index: 13, kind: input, shape index: {}]
  %s14 = inlined_call_operand.hbm [shape: f32[32,512], index: 14, kind: input, shape index: {}]
  %s15 = inlined_call_operand.hbm [shape: f32[32,512], index: 15, kind: input, shape index: {}]
  %s16 = inlined_call_operand.hbm [shape: f32[32,512], index: 16, kind: output, shape index: {0}]
  %s17 = inlined_call_operand.hbm [shape: f32[1,16,512], index: 17, kind: output, shape index: {1}]
  %18 = xla_tuple %s16, %s17
  %s19 = sld [smem:[#allocation0]]
  $region146: #{tpu_custom_call.1} parent=0
    _
  %s21 = ssub.s32 1, %s19
  %s22 = scalar_select 0, %s21, %s19
  $region1: #{tpu_custom_call.1} parent=0
    #allocation2 [shape = 'u8[65536]{0}', space=vmem, size = 0x10000, scoped, tag = 'input window, operand 0, single buffered']
    #allocation3 [shape = 's32[1]{0}', space=sflag, size = 0x4, scoped, tag = 'scoped memory for tpu_custom_call.1']
    #allocation4 [shape = 's32[1]{0}', space=sflag, size = 0x4, scoped, tag = 'scoped memory for tpu_custom_call.1']
    #allocation5 [shape = 'u8[65536]{0}', space=vmem, size = 0x10000, scoped, tag = 'input window, operand 1, single buffered']
    #allocation6 [shape = 's32[1]{0}', space=sflag, size = 0x4, scoped, tag = 'scoped memory for tpu_custom_call.1']
    #allocation7 [shape = 'u8[65536]{0}', space=vmem, size = 0x10000, scoped, tag = 'input window, operand 2, single buffered']
    #allocation8 [shape = 'u8[65536]{0}', space=vmem, size = 0x10000, scoped, tag = 'input window, operand 3, single buffered']
    #allocation9 [shape = 's32[1]{0}', space=sflag, size = 0x4, scoped, tag = 'scoped memory for tpu_custom_call.1']
    #allocation10 [shape = 'u8[65536]{0}', space=vmem, size = 0x10000, scoped, tag = 'input window, operand 4, single buffered']
    #allocation11 [shape = 'u8[65536]{0}', space=vmem, size = 0x10000, scoped, tag = 'input window, operand 5, single buffered']
    #allocation12 [shape = 's32[1]{0}', space=sflag, size = 0x4, scoped, tag = 'scoped memory for tpu_custom_call.1']
    #allocation13 [shape = 'u8[65536]{0}', space=vmem, size = 0x10000, scoped, tag = 'input window, operand 6, single buffered']
    #allocation14 [shape = 'u8[65536]{0}', space=vmem, size = 0x10000, scoped, tag = 'input window, operand 7, single buffered']
    #allocation15 [shape = 's32[1]{0}', space=sflag, size = 0x4, scoped, tag = 'scoped memory for tpu_custom_call.1']
    #allocation16 [shape = 'u8[16384]{0}', space=vmem, size = 0x4000, scoped, tag = 'input window, operand 8, single buffered']
    #allocation17 [shape = 'u8[16384]{0}', space=vmem, size = 0x4000, scoped, tag = 'input window, operand 10, single buffered']
    #allocation18 [shape = 's32[1]{0}', space=sflag, size = 0x4, scoped, tag = 'scoped memory for tpu_custom_call.1']
    #allocation19 [shape = 'u8[65536]{0}', space=vmem, size = 0x10000, scoped, tag = 'input window, operand 11, single buffered']
    #allocation20 [shape = 'u8[65536]{0}', space=vmem, size = 0x10000, scoped, tag = 'input window, operand 12, single buffered']
    #allocation21 [shape = 's32[1]{0}', space=sflag, size = 0x4, scoped, tag = 'scoped memory for tpu_custom_call.1']
    #allocation22 [shape = 'u8[65536]{0}', space=vmem, size = 0x10000, scoped, tag = 'input window, operand 13, single buffered']
    #allocation23 [shape = 'u8[65536]{0}', space=vmem, size = 0x10000, scoped, tag = 'input window, operand 14, single buffered']
    #allocation24 [shape = 's32[1]{0}', space=sflag, size = 0x4, scoped, tag = 'scoped memory for tpu_custom_call.1']
    #allocation25 [shape = 'u8[65536]{0}', space=vmem, size = 0x10000, scoped, tag = 'input window, operand 15, single buffered']
    #allocation26 [shape = 'u8[65536]{0}', space=vmem, size = 0x10000, scoped, tag = 'output window, operand 0, single buffered']
    #allocation27 [shape = 'u8[32768]{0}', space=vmem, size = 0x8000, scoped, tag = 'output window, operand 1, single buffered']
    #allocation28 [shape = 's32[1]{0}', space=sflag, size = 0x4, scoped, tag = 'scoped memory for tpu_custom_call.1']
    %23 = vsyncpa [#allocation3], 0
    %24 = vsyncpa [#allocation6], 0
    %25 = vsyncpa [#allocation9], 0
    %26 = vsyncpa [#allocation12], 0
    %27 = vsyncpa [#allocation15], 0
    %28 = vsyncpa [#allocation18], 0
    %29 = vsyncpa [#allocation21], 0
    %30 = vsyncpa [#allocation24], 0
    %31 = vsyncpa [#allocation4], 0
    %32 = vsyncpa [#allocation28], 0
    // Predicated region
    $region2: #{tpu_custom_call.1} parent=1 // pred_check
      _
    $region3: #{tpu_custom_call.1} parent=1 // pred_check_branch
      %34 = sbr.rel (0) target = $region5
    $region4: #{tpu_custom_call.1} parent=1 // pred_region
      %s35 = sadd.s32 0, 0
      %s36 = smul.u32 4, %s35
      %s38 = ssub.s32 2048, 2048
      %39 = vsyncadd [#allocation3], %s38
      %s40 = smul.addr %s36, 4
      %s41 = smul.addr %s40, 128
      %s42 = scalar_lea.hbm %s0, %s41
      %s43 = sshll.u32 [#allocation2], 4
      %s44 = int_to_ptr.vmem [resolvable:$true] %s43
      %49 = dma.hbm_to_vmem [thread:$0]  %s42, 2048, %s44, [#allocation3], 512, 512, 32
    $region5: #{tpu_custom_call.1} parent=1 // pred_fallthru
      _
    // Predicated region
    $region6: #{tpu_custom_call.1} parent=1 // pred_check
      _
    $region7: #{tpu_custom_call.1} parent=1 // pred_check_branch
      %51 = sbr.rel (0) target = $region9
    $region8: #{tpu_custom_call.1} parent=1 // pred_region
      %s52 = sadd.s32 0, 0
      %s53 = smul.u32 4, %s52
      %s55 = ssub.s32 2048, 2048
      %56 = vsyncadd [#allocation6], %s55
      %s57 = smul.addr %s53, 4
      %s58 = smul.addr %s57, 128
      %s59 = scalar_lea.hbm %s1, %s58
      %s60 = sshll.u32 [#allocation5], 4
      %s61 = int_to_ptr.vmem [resolvable:$true] %s60
      %66 = dma.hbm_to_vmem [thread:$0]  %s59, 2048, %s61, [#allocation6], 512, 512, 32
    $region9: #{tpu_custom_call.1} parent=1 // pred_fallthru
      _
    // Predicated region
    $region10: #{tpu_custom_call.1} parent=1 // pred_check
      _
    $region11: #{tpu_custom_call.1} parent=1 // pred_check_branch
      %68 = sbr.rel (0) target = $region13
    $region12: #{tpu_custom_call.1} parent=1 // pred_region
      %s69 = sadd.s32 0, 0
      %s70 = smul.u32 4, %s69
      %s72 = ssub.s32 2048, 2048
      %73 = vsyncadd [#allocation6], %s72
      %s74 = smul.addr %s70, 4
      %s75 = smul.addr %s74, 128
      %s76 = scalar_lea.hbm %s2, %s75
      %s77 = sshll.u32 [#allocation7], 4
      %s78 = int_to_ptr.vmem [resolvable:$true] %s77
      %83 = dma.hbm_to_vmem [thread:$0]  %s76, 2048, %s78, [#allocation6], 512, 512, 32
    $region13: #{tpu_custom_call.1} parent=1 // pred_fallthru
      _
    // Predicated region
    $region14: #{tpu_custom_call.1} parent=1 // pred_check
      _
    $region15: #{tpu_custom_call.1} parent=1 // pred_check_branch
      %85 = sbr.rel (0) target = $region17
    $region16: #{tpu_custom_call.1} parent=1 // pred_region
      %s86 = sadd.s32 0, 0
      %s87 = smul.u32 4, %s86
      %s89 = ssub.s32 2048, 2048
      %90 = vsyncadd [#allocation9], %s89
      %s91 = smul.addr %s87, 4
      %s92 = smul.addr %s91, 128
      %s93 = scalar_lea.hbm %s3, %s92
      %s94 = sshll.u32 [#allocation8], 4
      %s95 = int_to_ptr.vmem [resolvable:$true] %s94
      %100 = dma.hbm_to_vmem [thread:$0]  %s93, 2048, %s95, [#allocation9], 512, 512, 32
    $region17: #{tpu_custom_call.1} parent=1 // pred_fallthru
      _
    // Predicated region
    $region18: #{tpu_custom_call.1} parent=1 // pred_check
      _
    $region19: #{tpu_custom_call.1} parent=1 // pred_check_branch
      %102 = sbr.rel (0) target = $region21
    $region20: #{tpu_custom_call.1} parent=1 // pred_region
      %s103 = sadd.s32 0, 0
      %s104 = smul.u32 4, %s103
      %s106 = ssub.s32 2048, 2048
      %107 = vsyncadd [#allocation9], %s106
      %s108 = smul.addr %s104, 4
      %s109 = smul.addr %s108, 128
      %s110 = scalar_lea.hbm %s4, %s109
      %s111 = sshll.u32 [#allocation10], 4
      %s112 = int_to_ptr.vmem [resolvable:$true] %s111
      %117 = dma.hbm_to_vmem [thread:$0]  %s110, 2048, %s112, [#allocation9], 512, 512, 32
    $region21: #{tpu_custom_call.1} parent=1 // pred_fallthru
      _
    // Predicated region
    $region22: #{tpu_custom_call.1} parent=1 // pred_check
      _
    $region23: #{tpu_custom_call.1} parent=1 // pred_check_branch
      %119 = sbr.rel (0) target = $region25
    $region24: #{tpu_custom_call.1} parent=1 // pred_region
      %s120 = sadd.s32 0, 0
      %s121 = smul.u32 4, %s120
      %s123 = ssub.s32 2048, 2048
      %124 = vsyncadd [#allocation12], %s123
      %s125 = smul.addr %s121, 4
      %s126 = smul.addr %s125, 128
      %s127 = scalar_lea.hbm %s5, %s126
      %s128 = sshll.u32 [#allocation11], 4
      %s129 = int_to_ptr.vmem [resolvable:$true] %s128
      %134 = dma.hbm_to_vmem [thread:$0]  %s127, 2048, %s129, [#allocation12], 512, 512, 32
    $region25: #{tpu_custom_call.1} parent=1 // pred_fallthru
      _
    // Predicated region
    $region26: #{tpu_custom_call.1} parent=1 // pred_check
      _
    $region27: #{tpu_custom_call.1} parent=1 // pred_check_branch
      %136 = sbr.rel (0) target = $region29
    $region28: #{tpu_custom_call.1} parent=1 // pred_region
      %s137 = sadd.s32 0, 0
      %s138 = smul.u32 4, %s137
      %s140 = ssub.s32 2048, 2048
      %141 = vsyncadd [#allocation12], %s140
      %s142 = smul.addr %s138, 4
      %s143 = smul.addr %s142, 128
      %s144 = scalar_lea.hbm %s6, %s143
      %s145 = sshll.u32 [#allocation13], 4
      %s146 = int_to_ptr.vmem [resolvable:$true] %s145
      %151 = dma.hbm_to_vmem [thread:$0]  %s144, 2048, %s146, [#allocation12], 512, 512, 32
    $region29: #{tpu_custom_call.1} parent=1 // pred_fallthru
      _
    // Predicated region
    $region30: #{tpu_custom_call.1} parent=1 // pred_check
      _
    $region31: #{tpu_custom_call.1} parent=1 // pred_check_branch
      %153 = sbr.rel (0) target = $region33
    $region32: #{tpu_custom_call.1} parent=1 // pred_region
      %s154 = sadd.s32 0, 0
      %s155 = smul.u32 4, %s154
      %s157 = ssub.s32 2048, 2048
      %158 = vsyncadd [#allocation15], %s157
      %s159 = smul.addr %s155, 4
      %s160 = smul.addr %s159, 128
      %s161 = scalar_lea.hbm %s7, %s160
      %s162 = sshll.u32 [#allocation14], 4
      %s163 = int_to_ptr.vmem [resolvable:$true] %s162
      %168 = dma.hbm_to_vmem [thread:$0]  %s161, 2048, %s163, [#allocation15], 512, 512, 32
    $region33: #{tpu_custom_call.1} parent=1 // pred_fallthru
      _
    // Predicated region
    $region34: #{tpu_custom_call.1} parent=1 // pred_check
      _
    $region35: #{tpu_custom_call.1} parent=1 // pred_check_branch
      %170 = sbr.rel (0) target = $region37
    $region36: #{tpu_custom_call.1} parent=1 // pred_region
      %s171 = sadd.s32 0, 0
      %s173 = ssub.s32 512, 512
      %174 = vsyncadd [#allocation15], %s173
      %s175 = smul.addr %s171, 4
      %s176 = smul.addr %s175, 128
      %s177 = scalar_lea.hbm %s8, %s176
      %s179 = sshll.u32 [#allocation16], 4
      %s180 = int_to_ptr.vmem [resolvable:$true] %s179
      %182 = dma.hbm_to_vmem [thread:$0]  %s177, 512, %s180, [#allocation15]
    $region37: #{tpu_custom_call.1} parent=1 // pred_fallthru
      _
    // Predicated region
    $region38: #{tpu_custom_call.1} parent=1 // pred_check
      _
    $region39: #{tpu_custom_call.1} parent=1 // pred_check_branch
      %184 = sbr.rel (0) target = $region41
    $region40: #{tpu_custom_call.1} parent=1 // pred_region
      %s185 = sadd.s32 0, 0
      %p186 = scmp.lt.s32.totalorder %s185, 0
      %s187 = scalar_select %p186, %s185, 0
      %s188 = smul.addr %s187, 4
      %s189 = smul.addr %s188, 8
      %s190 = scalar_lea.vmem %s9, %s189
      %s191 = sadd.s32 0, 0
    $region41: #{tpu_custom_call.1} parent=1 // pred_fallthru
      _
    // Predicated region
    $region42: #{tpu_custom_call.1} parent=1 // pred_check
      _
    $region43: #{tpu_custom_call.1} parent=1 // pred_check_branch
      %193 = sbr.rel (0) target = $region45
    $region44: #{tpu_custom_call.1} parent=1 // pred_region
      %s194 = sadd.s32 0, 0
      %s196 = ssub.s32 512, 512
      %197 = vsyncadd [#allocation18], %s196
      %s198 = smul.addr %s194, 4
      %s199 = smul.addr %s198, 128
      %s200 = scalar_lea.hbm %s10, %s199
      %s202 = sshll.u32 [#allocation17], 4
      %s203 = int_to_ptr.vmem [resolvable:$true] %s202
      %205 = dma.hbm_to_vmem [thread:$0]  %s200, 512, %s203, [#allocation18]
    $region45: #{tpu_custom_call.1} parent=1 // pred_fallthru
      _
    // Predicated region
    $region46: #{tpu_custom_call.1} parent=1 // pred_check
      _
    $region47: #{tpu_custom_call.1} parent=1 // pred_check_branch
      %207 = sbr.rel (0) target = $region49
    $region48: #{tpu_custom_call.1} parent=1 // pred_region
      %s208 = sadd.s32 0, 0
      %s209 = smul.u32 4, %s208
      %s211 = ssub.s32 2048, 2048
      %212 = vsyncadd [#allocation18], %s211
      %s213 = smul.addr %s209, 4
      %s214 = smul.addr %s213, 128
      %s215 = scalar_lea.hbm %s11, %s214
      %s216 = sshll.u32 [#allocation19], 4
      %s217 = int_to_ptr.vmem [resolvable:$true] %s216
      %222 = dma.hbm_to_vmem [thread:$0]  %s215, 2048, %s217, [#allocation18], 512, 512, 32
    $region49: #{tpu_custom_call.1} parent=1 // pred_fallthru
      _
    // Predicated region
    $region50: #{tpu_custom_call.1} parent=1 // pred_check
      _
    $region51: #{tpu_custom_call.1} parent=1 // pred_check_branch
      %224 = sbr.rel (0) target = $region53
    $region52: #{tpu_custom_call.1} parent=1 // pred_region
      %s225 = sadd.s32 0, 0
      %s226 = smul.u32 4, %s225
      %s228 = ssub.s32 2048, 2048
      %229 = vsyncadd [#allocation21], %s228
      %s230 = smul.addr %s226, 4
      %s231 = smul.addr %s230, 128
      %s232 = scalar_lea.hbm %s12, %s231
      %s233 = sshll.u32 [#allocation20], 4
      %s234 = int_to_ptr.vmem [resolvable:$true] %s233
      %239 = dma.hbm_to_vmem [thread:$0]  %s232, 2048, %s234, [#allocation21], 512, 512, 32
    $region53: #{tpu_custom_call.1} parent=1 // pred_fallthru
      _
    // Predicated region
    $region54: #{tpu_custom_call.1} parent=1 // pred_check
      _
    $region55: #{tpu_custom_call.1} parent=1 // pred_check_branch
      %241 = sbr.rel (0) target = $region57
    $region56: #{tpu_custom_call.1} parent=1 // pred_region
      %s242 = sadd.s32 0, 0
      %s243 = smul.u32 4, %s242
      %s245 = ssub.s32 2048, 2048
      %246 = vsyncadd [#allocation21], %s245
      %s247 = smul.addr %s243, 4
      %s248 = smul.addr %s247, 128
      %s249 = scalar_lea.hbm %s13, %s248
      %s250 = sshll.u32 [#allocation22], 4
      %s251 = int_to_ptr.vmem [resolvable:$true] %s250
      %256 = dma.hbm_to_vmem [thread:$0]  %s249, 2048, %s251, [#allocation21], 512, 512, 32
    $region57: #{tpu_custom_call.1} parent=1 // pred_fallthru
      _
    // Predicated region
    $region58: #{tpu_custom_call.1} parent=1 // pred_check
      _
    $region59: #{tpu_custom_call.1} parent=1 // pred_check_branch
      %258 = sbr.rel (0) target = $region61
    $region60: #{tpu_custom_call.1} parent=1 // pred_region
      %s259 = sadd.s32 0, 0
      %s260 = smul.u32 4, %s259
      %s262 = ssub.s32 2048, 2048
      %263 = vsyncadd [#allocation24], %s262
      %s264 = smul.addr %s260, 4
      %s265 = smul.addr %s264, 128
      %s266 = scalar_lea.hbm %s14, %s265
      %s267 = sshll.u32 [#allocation23], 4
      %s268 = int_to_ptr.vmem [resolvable:$true] %s267
      %273 = dma.hbm_to_vmem [thread:$0]  %s266, 2048, %s268, [#allocation24], 512, 512, 32
    $region61: #{tpu_custom_call.1} parent=1 // pred_fallthru
      _
    // Predicated region
    $region62: #{tpu_custom_call.1} parent=1 // pred_check
      _
    $region63: #{tpu_custom_call.1} parent=1 // pred_check_branch
      %275 = sbr.rel (0) target = $region65
    $region64: #{tpu_custom_call.1} parent=1 // pred_region
      %s276 = sadd.s32 0, 0
      %s277 = smul.u32 4, %s276
      %s279 = ssub.s32 2048, 2048
      %280 = vsyncadd [#allocation24], %s279
      %s281 = smul.addr %s277, 4
      %s282 = smul.addr %s281, 128
      %s283 = scalar_lea.hbm %s15, %s282
      %s284 = sshll.u32 [#allocation25], 4
      %s285 = int_to_ptr.vmem [resolvable:$true] %s284
      %290 = dma.hbm_to_vmem [thread:$0]  %s283, 2048, %s285, [#allocation24], 512, 512, 32
    $region65: #{tpu_custom_call.1} parent=1 // pred_fallthru
      _
    // Predicated region
    $region66: #{tpu_custom_call.1} parent=1 // pred_check
      _
    $region67: #{tpu_custom_call.1} parent=1 // pred_check_branch
      %292 = sbr.rel (0) target = $region69
    $region68: #{tpu_custom_call.1} parent=1 // pred_region
      %293 = dma.done [#allocation3], 2048
    $region69: #{tpu_custom_call.1} parent=1 // pred_fallthru
      _
    // Predicated region
    $region70: #{tpu_custom_call.1} parent=1 // pred_check
      _
    $region71: #{tpu_custom_call.1} parent=1 // pred_check_branch
      %295 = sbr.rel (0) target = $region73
    $region72: #{tpu_custom_call.1} parent=1 // pred_region
      %296 = dma.done [#allocation6], 2048
    $region73: #{tpu_custom_call.1} parent=1 // pred_fallthru
      _
    // Predicated region
    $region74: #{tpu_custom_call.1} parent=1 // pred_check
      _
    $region75: #{tpu_custom_call.1} parent=1 // pred_check_branch
      %298 = sbr.rel (0) target = $region77
    $region76: #{tpu_custom_call.1} parent=1 // pred_region
      %299 = dma.done [#allocation6], 2048
    $region77: #{tpu_custom_call.1} parent=1 // pred_fallthru
      _
    // Predicated region
    $region78: #{tpu_custom_call.1} parent=1 // pred_check
      _
    $region79: #{tpu_custom_call.1} parent=1 // pred_check_branch
      %301 = sbr.rel (0) target = $region81
    $region80: #{tpu_custom_call.1} parent=1 // pred_region
      %302 = dma.done [#allocation9], 2048
    $region81: #{tpu_custom_call.1} parent=1 // pred_fallthru
      _
    // Predicated region
    $region82: #{tpu_custom_call.1} parent=1 // pred_check
      _
    $region83: #{tpu_custom_call.1} parent=1 // pred_check_branch
      %304 = sbr.rel (0) target = $region85
    $region84: #{tpu_custom_call.1} parent=1 // pred_region
      %305 = dma.done [#allocation9], 2048
    $region85: #{tpu_custom_call.1} parent=1 // pred_fallthru
      _
    // Predicated region
    $region86: #{tpu_custom_call.1} parent=1 // pred_check
      _
    $region87: #{tpu_custom_call.1} parent=1 // pred_check_branch
      %307 = sbr.rel (0) target = $region89
    $region88: #{tpu_custom_call.1} parent=1 // pred_region
      %308 = dma.done [#allocation12], 2048
    $region89: #{tpu_custom_call.1} parent=1 // pred_fallthru
      _
    // Predicated region
    $region90: #{tpu_custom_call.1} parent=1 // pred_check
      _
    $region91: #{tpu_custom_call.1} parent=1 // pred_check_branch
      %310 = sbr.rel (0) target = $region93
    $region92: #{tpu_custom_call.1} parent=1 // pred_region
      %311 = dma.done [#allocation12], 2048
    $region93: #{tpu_custom_call.1} parent=1 // pred_fallthru
      _
    // Predicated region
    $region94: #{tpu_custom_call.1} parent=1 // pred_check
      _
    $region95: #{tpu_custom_call.1} parent=1 // pred_check_branch
      %313 = sbr.rel (0) target = $region97
    $region96: #{tpu_custom_call.1} parent=1 // pred_region
      %314 = dma.done [#allocation15], 2048
    $region97: #{tpu_custom_call.1} parent=1 // pred_fallthru
      _
    // Predicated region
    $region98: #{tpu_custom_call.1} parent=1 // pred_check
      _
    $region99: #{tpu_custom_call.1} parent=1 // pred_check_branch
      %316 = sbr.rel (0) target = $region101
    $region100: #{tpu_custom_call.1} parent=1 // pred_region
      %317 = dma.done [#allocation15], 512
    $region101: #{tpu_custom_call.1} parent=1 // pred_fallthru
      _
    // Predicated region
    $region102: #{tpu_custom_call.1} parent=1 // pred_check
      _
    $region103: #{tpu_custom_call.1} parent=1 // pred_check_branch
      %319 = sbr.rel (0) target = $region105
    $region104: #{tpu_custom_call.1} parent=1 // pred_region
      %320 = dma.done [#allocation18], 512
    $region105: #{tpu_custom_call.1} parent=1 // pred_fallthru
      _
    // Predicated region
    $region106: #{tpu_custom_call.1} parent=1 // pred_check
      _
    $region107: #{tpu_custom_call.1} parent=1 // pred_check_branch
      %322 = sbr.rel (0) target = $region109
    $region108: #{tpu_custom_call.1} parent=1 // pred_region
      %323 = dma.done [#allocation18], 2048
    $region109: #{tpu_custom_call.1} parent=1 // pred_fallthru
      _
    // Predicated region
    $region110: #{tpu_custom_call.1} parent=1 // pred_check
      _
    $region111: #{tpu_custom_call.1} parent=1 // pred_check_branch
      %325 = sbr.rel (0) target = $region113
    $region112: #{tpu_custom_call.1} parent=1 // pred_region
      %326 = dma.done [#allocation21], 2048
    $region113: #{tpu_custom_call.1} parent=1 // pred_fallthru
      _
    // Predicated region
    $region114: #{tpu_custom_call.1} parent=1 // pred_check
      _
    $region115: #{tpu_custom_call.1} parent=1 // pred_check_branch
      %328 = sbr.rel (0) target = $region117
    $region116: #{tpu_custom_call.1} parent=1 // pred_region
      %329 = dma.done [#allocation21], 2048
    $region117: #{tpu_custom_call.1} parent=1 // pred_fallthru
      _
    // Predicated region
    $region118: #{tpu_custom_call.1} parent=1 // pred_check
      _
    $region119: #{tpu_custom_call.1} parent=1 // pred_check_branch
      %331 = sbr.rel (0) target = $region121
    $region120: #{tpu_custom_call.1} parent=1 // pred_region
      %332 = dma.done [#allocation24], 2048
    $region121: #{tpu_custom_call.1} parent=1 // pred_fallthru
      _
    // Predicated region
    $region122: #{tpu_custom_call.1} parent=1 // pred_check
      _
    $region123: #{tpu_custom_call.1} parent=1 // pred_check_branch
      %334 = sbr.rel (0) target = $region125
    $region124: #{tpu_custom_call.1} parent=1 // pred_region
      %335 = dma.done [#allocation24], 2048
    $region125: #{tpu_custom_call.1} parent=1 // pred_fallthru
      _
    %s336 = sadd.s32 0, 0
    %p337 = scmp.lt.s32.totalorder %s336, 0
    %s338 = scalar_select %p337, %s336, 0
    %s339 = smul.addr %s338, 4
    %s340 = smul.addr %s339, 8
    %s341 = scalar_lea.vmem %s9, %s340
    %s342 = sadd.s32 0, 0
    %s343 = smul.u32 4, %s342
    %s344 = sadd.s32 0, 0
    %s345 = smul.u32 4, %s344
    %s346 = sadd.s32 0, 0
    %s347 = smul.u32 4, %s346
    %s348 = sadd.s32 0, 0
    %s349 = smul.u32 4, %s348
    %s350 = sadd.s32 0, 0
    %s351 = smul.u32 4, %s350
    %s352 = sadd.s32 0, 0
    %s353 = smul.u32 4, %s352
    %s354 = sadd.s32 0, 0
    %s355 = smul.u32 4, %s354
    %s356 = sadd.s32 0, 0
    %s357 = smul.u32 4, %s356
    %s358 = sadd.s32 0, 0
    %s359 = sadd.s32 0, 0
    %p360 = scmp.lt.s32.totalorder %s359, 0
    %s361 = scalar_select %p360, %s359, 0
    %s362 = smul.addr %s361, 4
    %s363 = smul.addr %s362, 8
    %s364 = scalar_lea.vmem %s9, %s363
    %s365 = sadd.s32 0, 0
    %s366 = sadd.s32 0, 0
    %s367 = sadd.s32 0, 0
    %s368 = smul.u32 4, %s367
    %s369 = sadd.s32 0, 0
    %s370 = smul.u32 4, %s369
    %s371 = sadd.s32 0, 0
    %s372 = smul.u32 4, %s371
    %s373 = sadd.s32 0, 0
    %s374 = smul.u32 4, %s373
    %s375 = sadd.s32 0, 0
    %s376 = smul.u32 4, %s375
    %s377 = sadd.s32 0, 0
    %s378 = smul.u32 4, %s377
    %p379 = scmp.eq.s32.totalorder 0, 0
    // Predicated region
    $region126: #{tpu_custom_call.1} parent=1 // pred_check
      %p380 = pneg %p379
    $region127: #{tpu_custom_call.1} parent=1 // pred_check_branch
      %382 = sbr.rel (%p380) target = $region129
    $region128: #{tpu_custom_call.1} parent=1 // pred_region
      %383 = vst [vmem:[#allocation27] sm:$0xff] 0.0
      %384 = vst [vmem:[#allocation27 + $0x8] sm:$0xff] 0.0
      %385 = vst [vmem:[#allocation27 + $0x10] sm:$0xff] 0.0
      %386 = vst [vmem:[#allocation27 + $0x18] sm:$0xff] 0.0
      %387 = vst [vmem:[#allocation27 + $0x20] sm:$0xff] 0.0
      %388 = vst [vmem:[#allocation27 + $0x28] sm:$0xff] 0.0
      %389 = vst [vmem:[#allocation27 + $0x30] sm:$0xff] 0.0
      %390 = vst [vmem:[#allocation27 + $0x38] sm:$0xff] 0.0
    $region129: #{tpu_custom_call.1} parent=1 // pred_fallthru
      _
    %v391 = vld [vmem:[#allocation16] sm:$0xff]
    %v392 = vld [vmem:[#allocation16 + $0x8] sm:$0xff]
    %v393 = vld [vmem:[#allocation16 + $0x10] sm:$0xff]
    %v394 = vld [vmem:[#allocation16 + $0x18] sm:$0xff]
    %v395 = vunpack.c.0.s8 %v391
    %v396 = vunpack.c.0.s8 %v392
    %v397 = vunpack.c.0.s8 %v393
    %v398 = vunpack.c.0.s8 %v394
    %v399 = vunpack.c.1.s8 %v391
    %v400 = vunpack.c.1.s8 %v392
    %v401 = vunpack.c.1.s8 %v393
    %v402 = vunpack.c.1.s8 %v394
    %v403 = vunpack.c.2.s8 %v391
    %v404 = vunpack.c.2.s8 %v392
    %v405 = vunpack.c.2.s8 %v393
    %v406 = vunpack.c.2.s8 %v394
    %v407 = vunpack.c.3.s8 %v391
    %v408 = vunpack.c.3.s8 %v392
    %v409 = vunpack.c.3.s8 %v393
    %v410 = vunpack.c.3.s8 %v394
    %v411 = vcvt.s32.f32 %v395
    %v412 = vcvt.s32.f32 %v396
    %v413 = vcvt.s32.f32 %v397
    %v414 = vcvt.s32.f32 %v398
    %v415 = vcvt.s32.f32 %v399
    %v416 = vcvt.s32.f32 %v400
    %v417 = vcvt.s32.f32 %v401
    %v418 = vcvt.s32.f32 %v402
    %v419 = vcvt.s32.f32 %v403
    %v420 = vcvt.s32.f32 %v404
    %v421 = vcvt.s32.f32 %v405
    %v422 = vcvt.s32.f32 %v406
    %v423 = vcvt.s32.f32 %v407
    %v424 = vcvt.s32.f32 %v408
    %v425 = vcvt.s32.f32 %v409
    %v426 = vcvt.s32.f32 %v410
    %v427 = vld [vmem:[%s364] sm:$0xff]
    %v428 = vld [vmem:[%s364 + $0x8] sm:$0xff]
    %v429 = vld [vmem:[%s364 + $0x10] sm:$0xff]
    %v430 = vld [vmem:[%s364 + $0x18] sm:$0xff]
    %v431 = vunpack.c.0.s8 %v427
    %v432 = vunpack.c.0.s8 %v428
    %v433 = vunpack.c.0.s8 %v429
    %v434 = vunpack.c.0.s8 %v430
    %v435 = vunpack.c.1.s8 %v427
    %v436 = vunpack.c.1.s8 %v428
    %v437 = vunpack.c.1.s8 %v429
    %v438 = vunpack.c.1.s8 %v430
    %v439 = vunpack.c.2.s8 %v427
    %v440 = vunpack.c.2.s8 %v428
    %v441 = vunpack.c.2.s8 %v429
    %v442 = vunpack.c.2.s8 %v430
    %v443 = vunpack.c.3.s8 %v427
    %v444 = vunpack.c.3.s8 %v428
    %v445 = vunpack.c.3.s8 %v429
    %v446 = vunpack.c.3.s8 %v430
    %v447 = vcvt.s32.f32 %v431
    %v448 = vcvt.s32.f32 %v432
    %v449 = vcvt.s32.f32 %v433
    %v450 = vcvt.s32.f32 %v434
    %v451 = vcvt.s32.f32 %v435
    %v452 = vcvt.s32.f32 %v436
    %v453 = vcvt.s32.f32 %v437
    %v454 = vcvt.s32.f32 %v438
    %v455 = vcvt.s32.f32 %v439
    %v456 = vcvt.s32.f32 %v440
    %v457 = vcvt.s32.f32 %v441
    %v458 = vcvt.s32.f32 %v442
    %v459 = vcvt.s32.f32 %v443
    %v460 = vcvt.s32.f32 %v444
    %v461 = vcvt.s32.f32 %v445
    %v462 = vcvt.s32.f32 %v446
    %v463 = vld [vmem:[#allocation17] sm:$0xff]
    %v464 = vld [vmem:[#allocation17 + $0x8] sm:$0xff]
    %v465 = vld [vmem:[#allocation17 + $0x10] sm:$0xff]
    %v466 = vld [vmem:[#allocation17 + $0x18] sm:$0xff]
    %v467 = vunpack.c.0.s8 %v463
    %v468 = vunpack.c.0.s8 %v464
    %v469 = vunpack.c.0.s8 %v465
    %v470 = vunpack.c.0.s8 %v466
    %v471 = vunpack.c.1.s8 %v463
    %v472 = vunpack.c.1.s8 %v464
    %v473 = vunpack.c.1.s8 %v465
    %v474 = vunpack.c.1.s8 %v466
    %v475 = vunpack.c.2.s8 %v463
    %v476 = vunpack.c.2.s8 %v464
    %v477 = vunpack.c.2.s8 %v465
    %v478 = vunpack.c.2.s8 %v466
    %v479 = vunpack.c.3.s8 %v463
    %v480 = vunpack.c.3.s8 %v464
    %v481 = vunpack.c.3.s8 %v465
    %v482 = vunpack.c.3.s8 %v466
    %v483 = vcvt.s32.f32 %v467
    %v484 = vcvt.s32.f32 %v468
    %v485 = vcvt.s32.f32 %v469
    %v486 = vcvt.s32.f32 %v470
    %v487 = vcvt.s32.f32 %v471
    %v488 = vcvt.s32.f32 %v472
    %v489 = vcvt.s32.f32 %v473
    %v490 = vcvt.s32.f32 %v474
    %v491 = vcvt.s32.f32 %v475
    %v492 = vcvt.s32.f32 %v476
    %v493 = vcvt.s32.f32 %v477
    %v494 = vcvt.s32.f32 %v478
    %v495 = vcvt.s32.f32 %v479
    %v496 = vcvt.s32.f32 %v480
    %v497 = vcvt.s32.f32 %v481
    %v498 = vcvt.s32.f32 %v482
    %v499 = vld [vmem:[#allocation2] sm:$0xff]
    %v500 = vld [vmem:[#allocation2 + $0x8] sm:$0xff]
    %v501 = vld [vmem:[#allocation2 + $0x10] sm:$0xff]
    %v502 = vld [vmem:[#allocation2 + $0x18] sm:$0xff]
    %v503 = vld [vmem:[#allocation2 + $0x20] sm:$0xff]
    %v504 = vld [vmem:[#allocation2 + $0x28] sm:$0xff]
    %v505 = vld [vmem:[#allocation2 + $0x30] sm:$0xff]
    %v506 = vld [vmem:[#allocation2 + $0x38] sm:$0xff]
    %v507 = vld [vmem:[#allocation2 + $0x40] sm:$0xff]
    %v508 = vld [vmem:[#allocation2 + $0x48] sm:$0xff]
    %v509 = vld [vmem:[#allocation2 + $0x50] sm:$0xff]
    %v510 = vld [vmem:[#allocation2 + $0x58] sm:$0xff]
    %v511 = vld [vmem:[#allocation2 + $0x60] sm:$0xff]
    %v512 = vld [vmem:[#allocation2 + $0x68] sm:$0xff]
    %v513 = vld [vmem:[#allocation2 + $0x70] sm:$0xff]
    %v514 = vld [vmem:[#allocation2 + $0x78] sm:$0xff]
    %v515 = vld [vmem:[#allocation5] sm:$0xff]
    %v516 = vld [vmem:[#allocation5 + $0x8] sm:$0xff]
    %v517 = vld [vmem:[#allocation5 + $0x10] sm:$0xff]
    %v518 = vld [vmem:[#allocation5 + $0x18] sm:$0xff]
    %v519 = vld [vmem:[#allocation5 + $0x20] sm:$0xff]
    %v520 = vld [vmem:[#allocation5 + $0x28] sm:$0xff]
    %v521 = vld [vmem:[#allocation5 + $0x30] sm:$0xff]
    %v522 = vld [vmem:[#allocation5 + $0x38] sm:$0xff]
    %v523 = vld [vmem:[#allocation5 + $0x40] sm:$0xff]
    %v524 = vld [vmem:[#allocation5 + $0x48] sm:$0xff]
    %v525 = vld [vmem:[#allocation5 + $0x50] sm:$0xff]
    %v526 = vld [vmem:[#allocation5 + $0x58] sm:$0xff]
    %v527 = vld [vmem:[#allocation5 + $0x60] sm:$0xff]
    %v528 = vld [vmem:[#allocation5 + $0x68] sm:$0xff]
    %v529 = vld [vmem:[#allocation5 + $0x70] sm:$0xff]
    %v530 = vld [vmem:[#allocation5 + $0x78] sm:$0xff]
    %v531 = vsub.f32 %v515, %v499
    %v532 = vsub.f32 %v516, %v500
    %v533 = vsub.f32 %v517, %v501
    %v534 = vsub.f32 %v518, %v502
    %v535 = vsub.f32 %v519, %v503
    %v536 = vsub.f32 %v520, %v504
    %v537 = vsub.f32 %v521, %v505
    %v538 = vsub.f32 %v522, %v506
    %v539 = vsub.f32 %v523, %v507
    %v540 = vsub.f32 %v524, %v508
    %v541 = vsub.f32 %v525, %v509
    %v542 = vsub.f32 %v526, %v510
    %v543 = vsub.f32 %v527, %v511
    %v544 = vsub.f32 %v528, %v512
    %v545 = vsub.f32 %v529, %v513
    %v546 = vsub.f32 %v530, %v514
    %v547 = vand.u32 2147483647, %v531
    %v548 = vand.u32 2147483647, %v532
    %v549 = vand.u32 2147483647, %v533
    %v550 = vand.u32 2147483647, %v534
    %v551 = vand.u32 2147483647, %v535
    %v552 = vand.u32 2147483647, %v536
    %v553 = vand.u32 2147483647, %v537
    %v554 = vand.u32 2147483647, %v538
    %v555 = vand.u32 2147483647, %v539
    %v556 = vand.u32 2147483647, %v540
    %v557 = vand.u32 2147483647, %v541
    %v558 = vand.u32 2147483647, %v542
    %v559 = vand.u32 2147483647, %v543
    %v560 = vand.u32 2147483647, %v544
    %v561 = vand.u32 2147483647, %v545
    %v562 = vand.u32 2147483647, %v546
    %v563 = vsub.f32 0.0, %v547
    %v564 = vsub.f32 0.0, %v548
    %v565 = vsub.f32 0.0, %v549
    %v566 = vsub.f32 0.0, %v550
    %v567 = vsub.f32 0.0, %v551
    %v568 = vsub.f32 0.0, %v552
    %v569 = vsub.f32 0.0, %v553
    %v570 = vsub.f32 0.0, %v554
    %v571 = vsub.f32 0.0, %v555
    %v572 = vsub.f32 0.0, %v556
    %v573 = vsub.f32 0.0, %v557
    %v574 = vsub.f32 0.0, %v558
    %v575 = vsub.f32 0.0, %v559
    %v576 = vsub.f32 0.0, %v560
    %v577 = vsub.f32 0.0, %v561
    %v578 = vsub.f32 0.0, %v562
    %v579 = vmul.f32 %v563, 1.442695
    %v580 = vpow.pop %v579
    %v581 = vmul.f32 %v564, 1.442695
    %v582 = vpow.pop %v581
    %v583 = vmul.f32 %v565, 1.442695
    %v584 = vpow.pop %v583
    %v585 = vmul.f32 %v566, 1.442695
    %v586 = vpow.pop %v585
    %v587 = vmul.f32 %v567, 1.442695
    %v588 = vpow.pop %v587
    %v589 = vmul.f32 %v568, 1.442695
    %v590 = vpow.pop %v589
    %v591 = vmul.f32 %v569, 1.442695
    %v592 = vpow.pop %v591
    %v593 = vmul.f32 %v570, 1.442695
    %v594 = vpow.pop %v593
    %v595 = vmul.f32 %v571, 1.442695
    %v596 = vpow.pop %v595
    %v597 = vmul.f32 %v572, 1.442695
    %v598 = vpow.pop %v597
    %v599 = vmul.f32 %v573, 1.442695
    %v600 = vpow.pop %v599
    %v601 = vmul.f32 %v574, 1.442695
    %v602 = vpow.pop %v601
    %v603 = vmul.f32 %v575, 1.442695
    %v604 = vpow.pop %v603
    %v605 = vmul.f32 %v576, 1.442695
    %v606 = vpow.pop %v605
    %v607 = vmul.f32 %v577, 1.442695
    %v608 = vpow.pop %v607
    %v609 = vmul.f32 %v578, 1.442695
    %v610 = vpow.pop %v609
    %v611 = vadd.f32 %v580, 1.0
    %v612 = vadd.f32 %v582, 1.0
    %v613 = vadd.f32 %v584, 1.0
    %v614 = vadd.f32 %v586, 1.0
    %v615 = vadd.f32 %v588, 1.0
    %v616 = vadd.f32 %v590, 1.0
    %v617 = vadd.f32 %v592, 1.0
    %v618 = vadd.f32 %v594, 1.0
    %v619 = vadd.f32 %v596, 1.0
    %v620 = vadd.f32 %v598, 1.0
    %v621 = vadd.f32 %v600, 1.0
    %v622 = vadd.f32 %v602, 1.0
    %v623 = vadd.f32 %v604, 1.0
    %v624 = vadd.f32 %v606, 1.0
    %v625 = vadd.f32 %v608, 1.0
    %v626 = vadd.f32 %v610, 1.0
    %v627 = vlog2.pop %v611
    %v628 = vmul.f32 %v627, 0.6931472
    %v629 = vlog2.pop %v612
    %v630 = vmul.f32 %v629, 0.6931472
    %v631 = vlog2.pop %v613
    %v632 = vmul.f32 %v631, 0.6931472
    %v633 = vlog2.pop %v614
    %v634 = vmul.f32 %v633, 0.6931472
    %v635 = vlog2.pop %v615
    %v636 = vmul.f32 %v635, 0.6931472
    %v637 = vlog2.pop %v616
    %v638 = vmul.f32 %v637, 0.6931472
    %v639 = vlog2.pop %v617
    %v640 = vmul.f32 %v639, 0.6931472
    %v641 = vlog2.pop %v618
    %v642 = vmul.f32 %v641, 0.6931472
    %v643 = vlog2.pop %v619
    %v644 = vmul.f32 %v643, 0.6931472
    %v645 = vlog2.pop %v620
    %v646 = vmul.f32 %v645, 0.6931472
    %v647 = vlog2.pop %v621
    %v648 = vmul.f32 %v647, 0.6931472
    %v649 = vlog2.pop %v622
    %v650 = vmul.f32 %v649, 0.6931472
    %v651 = vlog2.pop %v623
    %v652 = vmul.f32 %v651, 0.6931472
    %v653 = vlog2.pop %v624
    %v654 = vmul.f32 %v653, 0.6931472
    %v655 = vlog2.pop %v625
    %v656 = vmul.f32 %v655, 0.6931472
    %v657 = vlog2.pop %v626
    %v658 = vmul.f32 %v657, 0.6931472
    %v659 = vmax.f32 %v531, 0.0
    %v660 = vmax.f32 %v532, 0.0
    %v661 = vmax.f32 %v533, 0.0
    %v662 = vmax.f32 %v534, 0.0
    %v663 = vmax.f32 %v535, 0.0
    %v664 = vmax.f32 %v536, 0.0
    %v665 = vmax.f32 %v537, 0.0
    %v666 = vmax.f32 %v538, 0.0
    %v667 = vmax.f32 %v539, 0.0
    %v668 = vmax.f32 %v540, 0.0
    %v669 = vmax.f32 %v541, 0.0
    %v670 = vmax.f32 %v542, 0.0
    %v671 = vmax.f32 %v543, 0.0
    %v672 = vmax.f32 %v544, 0.0
    %v673 = vmax.f32 %v545, 0.0
    %v674 = vmax.f32 %v546, 0.0
    %v675 = vadd.f32 %v659, %v628
    %v676 = vadd.f32 %v660, %v630
    %v677 = vadd.f32 %v661, %v632
    %v678 = vadd.f32 %v662, %v634
    %v679 = vadd.f32 %v663, %v636
    %v680 = vadd.f32 %v664, %v638
    %v681 = vadd.f32 %v665, %v640
    %v682 = vadd.f32 %v666, %v642
    %v683 = vadd.f32 %v667, %v644
    %v684 = vadd.f32 %v668, %v646
    %v685 = vadd.f32 %v669, %v648
    %v686 = vadd.f32 %v670, %v650
    %v687 = vadd.f32 %v671, %v652
    %v688 = vadd.f32 %v672, %v654
    %v689 = vadd.f32 %v673, %v656
    %v690 = vadd.f32 %v674, %v658
    %v691 = vsub.f32 0.0, %v531
    %v692 = vsub.f32 0.0, %v532
    %v693 = vsub.f32 0.0, %v533
    %v694 = vsub.f32 0.0, %v534
    %v695 = vsub.f32 0.0, %v535
    %v696 = vsub.f32 0.0, %v536
    %v697 = vsub.f32 0.0, %v537
    %v698 = vsub.f32 0.0, %v538
    %v699 = vsub.f32 0.0, %v539
    %v700 = vsub.f32 0.0, %v540
    %v701 = vsub.f32 0.0, %v541
    %v702 = vsub.f32 0.0, %v542
    %v703 = vsub.f32 0.0, %v543
    %v704 = vsub.f32 0.0, %v544
    %v705 = vsub.f32 0.0, %v545
    %v706 = vsub.f32 0.0, %v546
    %v707 = vmax.f32 %v691, 0.0
    %v708 = vmax.f32 %v692, 0.0
    %v709 = vmax.f32 %v693, 0.0
    %v710 = vmax.f32 %v694, 0.0
    %v711 = vmax.f32 %v695, 0.0
    %v712 = vmax.f32 %v696, 0.0
    %v713 = vmax.f32 %v697, 0.0
    %v714 = vmax.f32 %v698, 0.0
    %v715 = vmax.f32 %v699, 0.0
    %v716 = vmax.f32 %v700, 0.0
    %v717 = vmax.f32 %v701, 0.0
    %v718 = vmax.f32 %v702, 0.0
    %v719 = vmax.f32 %v703, 0.0
    %v720 = vmax.f32 %v704, 0.0
    %v721 = vmax.f32 %v705, 0.0
    %v722 = vmax.f32 %v706, 0.0
    %v723 = vadd.f32 %v707, %v628
    %v724 = vadd.f32 %v708, %v630
    %v725 = vadd.f32 %v709, %v632
    %v726 = vadd.f32 %v710, %v634
    %v727 = vadd.f32 %v711, %v636
    %v728 = vadd.f32 %v712, %v638
    %v729 = vadd.f32 %v713, %v640
    %v730 = vadd.f32 %v714, %v642
    %v731 = vadd.f32 %v715, %v644
    %v732 = vadd.f32 %v716, %v646
    %v733 = vadd.f32 %v717, %v648
    %v734 = vadd.f32 %v718, %v650
    %v735 = vadd.f32 %v719, %v652
    %v736 = vadd.f32 %v720, %v654
    %v737 = vadd.f32 %v721, %v656
    %v738 = vadd.f32 %v722, %v658
    %v739 = vmul.f32 %v411, %v483
    %v740 = vmul.f32 %v412, %v484
    %v741 = vmul.f32 %v413, %v485
    %v742 = vmul.f32 %v414, %v486
    %v743 = vmul.f32 %v415, %v487
    %v744 = vmul.f32 %v416, %v488
    %v745 = vmul.f32 %v417, %v489
    %v746 = vmul.f32 %v418, %v490
    %v747 = vmul.f32 %v419, %v491
    %v748 = vmul.f32 %v420, %v492
    %v749 = vmul.f32 %v421, %v493
    %v750 = vmul.f32 %v422, %v494
    %v751 = vmul.f32 %v423, %v495
    %v752 = vmul.f32 %v424, %v496
    %v753 = vmul.f32 %v425, %v497
    %v754 = vmul.f32 %v426, %v498
    %v755 = vsub.f32 1.0, %v411
    %v756 = vsub.f32 1.0, %v412
    %v757 = vsub.f32 1.0, %v413
    %v758 = vsub.f32 1.0, %v414
    %v759 = vsub.f32 1.0, %v415
    %v760 = vsub.f32 1.0, %v416
    %v761 = vsub.f32 1.0, %v417
    %v762 = vsub.f32 1.0, %v418
    %v763 = vsub.f32 1.0, %v419
    %v764 = vsub.f32 1.0, %v420
    %v765 = vsub.f32 1.0, %v421
    %v766 = vsub.f32 1.0, %v422
    %v767 = vsub.f32 1.0, %v423
    %v768 = vsub.f32 1.0, %v424
    %v769 = vsub.f32 1.0, %v425
    %v770 = vsub.f32 1.0, %v426
    %v771 = vmul.f32 %v755, %v483
    %v772 = vmul.f32 %v756, %v484
    %v773 = vmul.f32 %v757, %v485
    %v774 = vmul.f32 %v758, %v486
    %v775 = vmul.f32 %v759, %v487
    %v776 = vmul.f32 %v760, %v488
    %v777 = vmul.f32 %v761, %v489
    %v778 = vmul.f32 %v762, %v490
    %v779 = vmul.f32 %v763, %v491
    %v780 = vmul.f32 %v764, %v492
    %v781 = vmul.f32 %v765, %v493
    %v782 = vmul.f32 %v766, %v494
    %v783 = vmul.f32 %v767, %v495
    %v784 = vmul.f32 %v768, %v496
    %v785 = vmul.f32 %v769, %v497
    %v786 = vmul.f32 %v770, %v498
    %vm787 = vcmp.gt.f32.partialorder %v771, 0.0
    %vm788 = vcmp.gt.f32.partialorder %v772, 0.0
    %vm789 = vcmp.gt.f32.partialorder %v773, 0.0
    %vm790 = vcmp.gt.f32.partialorder %v774, 0.0
    %vm791 = vcmp.gt.f32.partialorder %v775, 0.0
    %vm792 = vcmp.gt.f32.partialorder %v776, 0.0
    %vm793 = vcmp.gt.f32.partialorder %v777, 0.0
    %vm794 = vcmp.gt.f32.partialorder %v778, 0.0
    %vm795 = vcmp.gt.f32.partialorder %v779, 0.0
    %vm796 = vcmp.gt.f32.partialorder %v780, 0.0
    %vm797 = vcmp.gt.f32.partialorder %v781, 0.0
    %vm798 = vcmp.gt.f32.partialorder %v782, 0.0
    %vm799 = vcmp.gt.f32.partialorder %v783, 0.0
    %vm800 = vcmp.gt.f32.partialorder %v784, 0.0
    %vm801 = vcmp.gt.f32.partialorder %v785, 0.0
    %vm802 = vcmp.gt.f32.partialorder %v786, 0.0
    %v803 = vsel %vm787, %v675, -1.0
    %v804 = vsel %vm788, %v676, -1.0
    %v805 = vsel %vm789, %v677, -1.0
    %v806 = vsel %vm790, %v678, -1.0
    %v807 = vsel %vm791, %v679, -1.0
    %v808 = vsel %vm792, %v680, -1.0
    %v809 = vsel %vm793, %v681, -1.0
    %v810 = vsel %vm794, %v682, -1.0
    %v811 = vsel %vm795, %v683, -1.0
    %v812 = vsel %vm796, %v684, -1.0
    %v813 = vsel %vm797, %v685, -1.0
    %v814 = vsel %vm798, %v686, -1.0
    %v815 = vsel %vm799, %v687, -1.0
    %v816 = vsel %vm800, %v688, -1.0
    %v817 = vsel %vm801, %v689, -1.0
    %v818 = vsel %vm802, %v690, -1.0
    %819 = vst [vmem:[#allocation26] sm:$0xff] %v803
    %820 = vst [vmem:[#allocation26 + $0x8] sm:$0xff] %v804
    %821 = vst [vmem:[#allocation26 + $0x10] sm:$0xff] %v805
    %822 = vst [vmem:[#allocation26 + $0x18] sm:$0xff] %v806
    %823 = vst [vmem:[#allocation26 + $0x20] sm:$0xff] %v807
    %824 = vst [vmem:[#allocation26 + $0x28] sm:$0xff] %v808
    %825 = vst [vmem:[#allocation26 + $0x30] sm:$0xff] %v809
    %826 = vst [vmem:[#allocation26 + $0x38] sm:$0xff] %v810
    %827 = vst [vmem:[#allocation26 + $0x40] sm:$0xff] %v811
    %828 = vst [vmem:[#allocation26 + $0x48] sm:$0xff] %v812
    %829 = vst [vmem:[#allocation26 + $0x50] sm:$0xff] %v813
    %830 = vst [vmem:[#allocation26 + $0x58] sm:$0xff] %v814
    %831 = vst [vmem:[#allocation26 + $0x60] sm:$0xff] %v815
    %832 = vst [vmem:[#allocation26 + $0x68] sm:$0xff] %v816
    %833 = vst [vmem:[#allocation26 + $0x70] sm:$0xff] %v817
    %834 = vst [vmem:[#allocation26 + $0x78] sm:$0xff] %v818
    %v835 = vld [vmem:[#allocation27] ss:$8 sm:$0xf]
    %v836 = vadd.f32 %v739, %v743
    %v837 = vadd.f32 %v836, %v747
    %v838 = vadd.f32 %v837, %v751
    %v839 = vrot.slane %v838, 4
    %v840 = vadd.f32 %v838, %v839
    %v841 = vrot.slane %v840, 2
    %v842 = vadd.f32 %v840, %v841
    %v843 = vrot.slane %v842, 1
    %v844 = vadd.f32 %v842, %v843
    %v845 = vadd.f32 %v740, %v744
    %v846 = vadd.f32 %v845, %v748
    %v847 = vadd.f32 %v846, %v752
    %v848 = vrot.slane %v847, 4
    %v849 = vadd.f32 %v847, %v848
    %v850 = vrot.slane %v849, 2
    %v851 = vadd.f32 %v849, %v850
    %v852 = vrot.slane %v851, 1
    %v853 = vadd.f32 %v851, %v852
    %v854 = vadd.f32 %v741, %v745
    %v855 = vadd.f32 %v854, %v749
    %v856 = vadd.f32 %v855, %v753
    %v857 = vrot.slane %v856, 4
    %v858 = vadd.f32 %v856, %v857
    %v859 = vrot.slane %v858, 2
    %v860 = vadd.f32 %v858, %v859
    %v861 = vrot.slane %v860, 1
    %v862 = vadd.f32 %v860, %v861
    %v863 = vadd.f32 %v742, %v746
    %v864 = vadd.f32 %v863, %v750
    %v865 = vadd.f32 %v864, %v754
    %v866 = vrot.slane %v865, 4
    %v867 = vadd.f32 %v865, %v866
    %v868 = vrot.slane %v867, 2
    %v869 = vadd.f32 %v867, %v868
    %v870 = vrot.slane %v869, 1
    %v871 = vadd.f32 %v869, %v870
    %v876 = vcombine.low %v844, %v853
    %v877 = vcombine.low %v862, %v871
    %v879 = vunpack.c.l.s4 1966171168
    %v880 = vunpack.c.0.s8 %v879
    %v881 = vlaneseq
    %v882 = vshrl.u32 %v881, 7
    %v883 = vsub.s32 %v880, %v882
    %v884 = vrot.slane %v876, %v883
    %v886 = vunpack.c.l.s4 1966171168
    %v887 = vunpack.c.0.s8 %v886
    %v888 = vlaneseq
    %v889 = vshrl.u32 %v888, 7
    %v890 = vsub.s32 %v887, %v889
    %v891 = vrot.slane %v877, %v890
    %v892 = vcombine.low %v884, %v891
    %v894 = vunpack.c.l.s4 1966171168
    %v895 = vunpack.c.0.s8 %v894
    %v896 = vlaneseq
    %v897 = vshrl.u32 %v896, 7
    %v898 = vsub.s32 %v895, %v897
    %v899 = vrot.slane %v892, %v898
    %v901 = vadd.f32 %v835, %v899
    %v902 = vlaneseq
    %vm903 = vcmp.ge.s32.totalorder %v902, 0
    %vm904 = vcmp.lt.s32.totalorder %v902, 512
    %vm905 = vmand %vm903, %vm904
    %906 = vst.msk [vmem:[#allocation27] ss:$8 sm:$0xf] %vm905, %v901
    %907 = vst.msk [vmem:[#allocation27] ss:$8 sm:$0x0] %vm905, %v901
    %s908 = scalar_lea.vmem [#allocation27], 1
    %v909 = vld [vmem:[%s908] ss:$8 sm:$0xf]
    %v910 = vadd.f32 %v411, %v415
    %v911 = vadd.f32 %v910, %v419
    %v912 = vadd.f32 %v911, %v423
    %v913 = vrot.slane %v912, 4
    %v914 = vadd.f32 %v912, %v913
    %v915 = vrot.slane %v914, 2
    %v916 = vadd.f32 %v914, %v915
    %v917 = vrot.slane %v916, 1
    %v918 = vadd.f32 %v916, %v917
    %v919 = vadd.f32 %v412, %v416
    %v920 = vadd.f32 %v919, %v420
    %v921 = vadd.f32 %v920, %v424
    %v922 = vrot.slane %v921, 4
    %v923 = vadd.f32 %v921, %v922
    %v924 = vrot.slane %v923, 2
    %v925 = vadd.f32 %v923, %v924
    %v926 = vrot.slane %v925, 1
    %v927 = vadd.f32 %v925, %v926
    %v928 = vadd.f32 %v413, %v417
    %v929 = vadd.f32 %v928, %v421
    %v930 = vadd.f32 %v929, %v425
    %v931 = vrot.slane %v930, 4
    %v932 = vadd.f32 %v930, %v931
    %v933 = vrot.slane %v932, 2
    %v934 = vadd.f32 %v932, %v933
    %v935 = vrot.slane %v934, 1
    %v936 = vadd.f32 %v934, %v935
    %v937 = vadd.f32 %v414, %v418
    %v938 = vadd.f32 %v937, %v422
    %v939 = vadd.f32 %v938, %v426
    %v940 = vrot.slane %v939, 4
    %v941 = vadd.f32 %v939, %v940
    %v942 = vrot.slane %v941, 2
    %v943 = vadd.f32 %v941, %v942
    %v944 = vrot.slane %v943, 1
    %v945 = vadd.f32 %v943, %v944
    %v950 = vcombine.low %v918, %v927
    %v951 = vcombine.low %v936, %v945
    %v953 = vunpack.c.l.s4 1966171168
    %v954 = vunpack.c.0.s8 %v953
    %v955 = vlaneseq
    %v956 = vshrl.u32 %v955, 7
    %v957 = vsub.s32 %v954, %v956
    %v958 = vrot.slane %v950, %v957
    %v960 = vunpack.c.l.s4 1966171168
    %v961 = vunpack.c.0.s8 %v960
    %v962 = vlaneseq
    %v963 = vshrl.u32 %v962, 7
    %v964 = vsub.s32 %v961, %v963
    %v965 = vrot.slane %v951, %v964
    %v966 = vcombine.low %v958, %v965
    %v968 = vunpack.c.l.s4 1966171168
    %v969 = vunpack.c.0.s8 %v968
    %v970 = vlaneseq
    %v971 = vshrl.u32 %v970, 7
    %v972 = vsub.s32 %v969, %v971
    %v973 = vrot.slane %v966, %v972
    %v975 = vadd.f32 %v909, %v973
    %976 = vst.msk [vmem:[%s908] ss:$8 sm:$0xf] %vm905, %v975
    %977 = vst.msk [vmem:[%s908] ss:$8 sm:$0x0] %vm905, %v975
    %v978 = vmul.f32 %v739, %v723
    %v979 = vmul.f32 %v740, %v724
    %v980 = vmul.f32 %v741, %v725
    %v981 = vmul.f32 %v742, %v726
    %v982 = vmul.f32 %v743, %v727
    %v983 = vmul.f32 %v744, %v728
    %v984 = vmul.f32 %v745, %v729
    %v985 = vmul.f32 %v746, %v730
    %v986 = vmul.f32 %v747, %v731
    %v987 = vmul.f32 %v748, %v732
    %v988 = vmul.f32 %v749, %v733
    %v989 = vmul.f32 %v750, %v734
    %v990 = vmul.f32 %v751, %v735
    %v991 = vmul.f32 %v752, %v736
    %v992 = vmul.f32 %v753, %v737
    %v993 = vmul.f32 %v754, %v738
    %s994 = scalar_lea.vmem [#allocation27], 2
    %v995 = vld [vmem:[%s994] ss:$8 sm:$0xf]
    %v996 = vadd.f32 %v978, %v982
    %v997 = vadd.f32 %v996, %v986
    %v998 = vadd.f32 %v997, %v990
    %v999 = vrot.slane %v998, 4
    %v1000 = vadd.f32 %v998, %v999
    %v1001 = vrot.slane %v1000, 2
    %v1002 = vadd.f32 %v1000, %v1001
    %v1003 = vrot.slane %v1002, 1
    %v1004 = vadd.f32 %v1002, %v1003
    %v1005 = vadd.f32 %v979, %v983
    %v1006 = vadd.f32 %v1005, %v987
    %v1007 = vadd.f32 %v1006, %v991
    %v1008 = vrot.slane %v1007, 4
    %v1009 = vadd.f32 %v1007, %v1008
    %v1010 = vrot.slane %v1009, 2
    %v1011 = vadd.f32 %v1009, %v1010
    %v1012 = vrot.slane %v1011, 1
    %v1013 = vadd.f32 %v1011, %v1012
    %v1014 = vadd.f32 %v980, %v984
    %v1015 = vadd.f32 %v1014, %v988
    %v1016 = vadd.f32 %v1015, %v992
    %v1017 = vrot.slane %v1016, 4
    %v1018 = vadd.f32 %v1016, %v1017
    %v1019 = vrot.slane %v1018, 2
    %v1020 = vadd.f32 %v1018, %v1019
    %v1021 = vrot.slane %v1020, 1
    %v1022 = vadd.f32 %v1020, %v1021
    %v1023 = vadd.f32 %v981, %v985
    %v1024 = vadd.f32 %v1023, %v989
    %v1025 = vadd.f32 %v1024, %v993
    %v1026 = vrot.slane %v1025, 4
    %v1027 = vadd.f32 %v1025, %v1026
    %v1028 = vrot.slane %v1027, 2
    %v1029 = vadd.f32 %v1027, %v1028
    %v1030 = vrot.slane %v1029, 1
    %v1031 = vadd.f32 %v1029, %v1030
    %v1036 = vcombine.low %v1004, %v1013
    %v1037 = vcombine.low %v1022, %v1031
    %v1039 = vunpack.c.l.s4 1966171168
    %v1040 = vunpack.c.0.s8 %v1039
    %v1041 = vlaneseq
    %v1042 = vshrl.u32 %v1041, 7
    %v1043 = vsub.s32 %v1040, %v1042
    %v1044 = vrot.slane %v1036, %v1043
    %v1046 = vunpack.c.l.s4 1966171168
    %v1047 = vunpack.c.0.s8 %v1046
    %v1048 = vlaneseq
    %v1049 = vshrl.u32 %v1048, 7
    %v1050 = vsub.s32 %v1047, %v1049
    %v1051 = vrot.slane %v1037, %v1050
    %v1052 = vcombine.low %v1044, %v1051
    %v1054 = vunpack.c.l.s4 1966171168
    %v1055 = vunpack.c.0.s8 %v1054
    %v1056 = vlaneseq
    %v1057 = vshrl.u32 %v1056, 7
    %v1058 = vsub.s32 %v1055, %v1057
    %v1059 = vrot.slane %v1052, %v1058
    %v1061 = vadd.f32 %v995, %v1059
    %1062 = vst.msk [vmem:[%s994] ss:$8 sm:$0xf] %vm905, %v1061
    %1063 = vst.msk [vmem:[%s994] ss:$8 sm:$0x0] %vm905, %v1061
    %v1064 = vmul.f32 %v411, %v723
    %v1065 = vmul.f32 %v412, %v724
    %v1066 = vmul.f32 %v413, %v725
    %v1067 = vmul.f32 %v414, %v726
    %v1068 = vmul.f32 %v415, %v727
    %v1069 = vmul.f32 %v416, %v728
    %v1070 = vmul.f32 %v417, %v729
    %v1071 = vmul.f32 %v418, %v730
    %v1072 = vmul.f32 %v419, %v731
    %v1073 = vmul.f32 %v420, %v732
    %v1074 = vmul.f32 %v421, %v733
    %v1075 = vmul.f32 %v422, %v734
    %v1076 = vmul.f32 %v423, %v735
    %v1077 = vmul.f32 %v424, %v736
    %v1078 = vmul.f32 %v425, %v737
    %v1079 = vmul.f32 %v426, %v738
    %s1080 = scalar_lea.vmem [#allocation27], 3
    %v1081 = vld [vmem:[%s1080] ss:$8 sm:$0xf]
    %v1082 = vadd.f32 %v1064, %v1068
    %v1083 = vadd.f32 %v1082, %v1072
    %v1084 = vadd.f32 %v1083, %v1076
    %v1085 = vrot.slane %v1084, 4
    %v1086 = vadd.f32 %v1084, %v1085
    %v1087 = vrot.slane %v1086, 2
    %v1088 = vadd.f32 %v1086, %v1087
    %v1089 = vrot.slane %v1088, 1
    %v1090 = vadd.f32 %v1088, %v1089
    %v1091 = vadd.f32 %v1065, %v1069
    %v1092 = vadd.f32 %v1091, %v1073
    %v1093 = vadd.f32 %v1092, %v1077
    %v1094 = vrot.slane %v1093, 4
    %v1095 = vadd.f32 %v1093, %v1094
    %v1096 = vrot.slane %v1095, 2
    %v1097 = vadd.f32 %v1095, %v1096
    %v1098 = vrot.slane %v1097, 1
    %v1099 = vadd.f32 %v1097, %v1098
    %v1100 = vadd.f32 %v1066, %v1070
    %v1101 = vadd.f32 %v1100, %v1074
    %v1102 = vadd.f32 %v1101, %v1078
    %v1103 = vrot.slane %v1102, 4
    %v1104 = vadd.f32 %v1102, %v1103
    %v1105 = vrot.slane %v1104, 2
    %v1106 = vadd.f32 %v1104, %v1105
    %v1107 = vrot.slane %v1106, 1
    %v1108 = vadd.f32 %v1106, %v1107
    %v1109 = vadd.f32 %v1067, %v1071
    %v1110 = vadd.f32 %v1109, %v1075
    %v1111 = vadd.f32 %v1110, %v1079
    %v1112 = vrot.slane %v1111, 4
    %v1113 = vadd.f32 %v1111, %v1112
    %v1114 = vrot.slane %v1113, 2
    %v1115 = vadd.f32 %v1113, %v1114
    %v1116 = vrot.slane %v1115, 1
    %v1117 = vadd.f32 %v1115, %v1116
    %v1122 = vcombine.low %v1090, %v1099
    %v1123 = vcombine.low %v1108, %v1117
    %v1125 = vunpack.c.l.s4 1966171168
    %v1126 = vunpack.c.0.s8 %v1125
    %v1127 = vlaneseq
    %v1128 = vshrl.u32 %v1127, 7
    %v1129 = vsub.s32 %v1126, %v1128
    %v1130 = vrot.slane %v1122, %v1129
    %v1132 = vunpack.c.l.s4 1966171168
    %v1133 = vunpack.c.0.s8 %v1132
    %v1134 = vlaneseq
    %v1135 = vshrl.u32 %v1134, 7
    %v1136 = vsub.s32 %v1133, %v1135
    %v1137 = vrot.slane %v1123, %v1136
    %v1138 = vcombine.low %v1130, %v1137
    %v1140 = vunpack.c.l.s4 1966171168
    %v1141 = vunpack.c.0.s8 %v1140
    %v1142 = vlaneseq
    %v1143 = vshrl.u32 %v1142, 7
    %v1144 = vsub.s32 %v1141, %v1143
    %v1145 = vrot.slane %v1138, %v1144
    %v1147 = vadd.f32 %v1081, %v1145
    %1148 = vst.msk [vmem:[%s1080] ss:$8 sm:$0xf] %vm905, %v1147
    %1149 = vst.msk [vmem:[%s1080] ss:$8 sm:$0x0] %vm905, %v1147
    %s1150 = scalar_lea.vmem [#allocation27], 4
    %v1151 = vld [vmem:[%s1150] ss:$8 sm:$0xf]
    %v1152 = vadd.f32 %v771, %v775
    %v1153 = vadd.f32 %v1152, %v779
    %v1154 = vadd.f32 %v1153, %v783
    %v1155 = vrot.slane %v1154, 4
    %v1156 = vadd.f32 %v1154, %v1155
    %v1157 = vrot.slane %v1156, 2
    %v1158 = vadd.f32 %v1156, %v1157
    %v1159 = vrot.slane %v1158, 1
    %v1160 = vadd.f32 %v1158, %v1159
    %v1161 = vadd.f32 %v772, %v776
    %v1162 = vadd.f32 %v1161, %v780
    %v1163 = vadd.f32 %v1162, %v784
    %v1164 = vrot.slane %v1163, 4
    %v1165 = vadd.f32 %v1163, %v1164
    %v1166 = vrot.slane %v1165, 2
    %v1167 = vadd.f32 %v1165, %v1166
    %v1168 = vrot.slane %v1167, 1
    %v1169 = vadd.f32 %v1167, %v1168
    %v1170 = vadd.f32 %v773, %v777
    %v1171 = vadd.f32 %v1170, %v781
    %v1172 = vadd.f32 %v1171, %v785
    %v1173 = vrot.slane %v1172, 4
    %v1174 = vadd.f32 %v1172, %v1173
    %v1175 = vrot.slane %v1174, 2
    %v1176 = vadd.f32 %v1174, %v1175
    %v1177 = vrot.slane %v1176, 1
    %v1178 = vadd.f32 %v1176, %v1177
    %v1179 = vadd.f32 %v774, %v778
    %v1180 = vadd.f32 %v1179, %v782
    %v1181 = vadd.f32 %v1180, %v786
    %v1182 = vrot.slane %v1181, 4
    %v1183 = vadd.f32 %v1181, %v1182
    %v1184 = vrot.slane %v1183, 2
    %v1185 = vadd.f32 %v1183, %v1184
    %v1186 = vrot.slane %v1185, 1
    %v1187 = vadd.f32 %v1185, %v1186
    %v1192 = vcombine.low %v1160, %v1169
    %v1193 = vcombine.low %v1178, %v1187
    %v1195 = vunpack.c.l.s4 1966171168
    %v1196 = vunpack.c.0.s8 %v1195
    %v1197 = vlaneseq
    %v1198 = vshrl.u32 %v1197, 7
    %v1199 = vsub.s32 %v1196, %v1198
    %v1200 = vrot.slane %v1192, %v1199
    %v1202 = vunpack.c.l.s4 1966171168
    %v1203 = vunpack.c.0.s8 %v1202
    %v1204 = vlaneseq
    %v1205 = vshrl.u32 %v1204, 7
    %v1206 = vsub.s32 %v1203, %v1205
    %v1207 = vrot.slane %v1193, %v1206
    %v1208 = vcombine.low %v1200, %v1207
    %v1210 = vunpack.c.l.s4 1966171168
    %v1211 = vunpack.c.0.s8 %v1210
    %v1212 = vlaneseq
    %v1213 = vshrl.u32 %v1212, 7
    %v1214 = vsub.s32 %v1211, %v1213
    %v1215 = vrot.slane %v1208, %v1214
    %v1217 = vadd.f32 %v1151, %v1215
    %1218 = vst.msk [vmem:[%s1150] ss:$8 sm:$0xf] %vm905, %v1217
    %1219 = vst.msk [vmem:[%s1150] ss:$8 sm:$0x0] %vm905, %v1217
    %v1220 = vld [vmem:[#allocation7] sm:$0xff]
    %v1221 = vld [vmem:[#allocation7 + $0x8] sm:$0xff]
    %v1222 = vld [vmem:[#allocation7 + $0x10] sm:$0xff]
    %v1223 = vld [vmem:[#allocation7 + $0x18] sm:$0xff]
    %v1224 = vld [vmem:[#allocation7 + $0x20] sm:$0xff]
    %v1225 = vld [vmem:[#allocation7 + $0x28] sm:$0xff]
    %v1226 = vld [vmem:[#allocation7 + $0x30] sm:$0xff]
    %v1227 = vld [vmem:[#allocation7 + $0x38] sm:$0xff]
    %v1228 = vld [vmem:[#allocation7 + $0x40] sm:$0xff]
    %v1229 = vld [vmem:[#allocation7 + $0x48] sm:$0xff]
    %v1230 = vld [vmem:[#allocation7 + $0x50] sm:$0xff]
    %v1231 = vld [vmem:[#allocation7 + $0x58] sm:$0xff]
    %v1232 = vld [vmem:[#allocation7 + $0x60] sm:$0xff]
    %v1233 = vld [vmem:[#allocation7 + $0x68] sm:$0xff]
    %v1234 = vld [vmem:[#allocation7 + $0x70] sm:$0xff]
    %v1235 = vld [vmem:[#allocation7 + $0x78] sm:$0xff]
    %v1236 = vld [vmem:[#allocation8] sm:$0xff]
    %v1237 = vld [vmem:[#allocation8 + $0x8] sm:$0xff]
    %v1238 = vld [vmem:[#allocation8 + $0x10] sm:$0xff]
    %v1239 = vld [vmem:[#allocation8 + $0x18] sm:$0xff]
    %v1240 = vld [vmem:[#allocation8 + $0x20] sm:$0xff]
    %v1241 = vld [vmem:[#allocation8 + $0x28] sm:$0xff]
    %v1242 = vld [vmem:[#allocation8 + $0x30] sm:$0xff]
    %v1243 = vld [vmem:[#allocation8 + $0x38] sm:$0xff]
    %v1244 = vld [vmem:[#allocation8 + $0x40] sm:$0xff]
    %v1245 = vld [vmem:[#allocation8 + $0x48] sm:$0xff]
    %v1246 = vld [vmem:[#allocation8 + $0x50] sm:$0xff]
    %v1247 = vld [vmem:[#allocation8 + $0x58] sm:$0xff]
    %v1248 = vld [vmem:[#allocation8 + $0x60] sm:$0xff]
    %v1249 = vld [vmem:[#allocation8 + $0x68] sm:$0xff]
    %v1250 = vld [vmem:[#allocation8 + $0x70] sm:$0xff]
    %v1251 = vld [vmem:[#allocation8 + $0x78] sm:$0xff]
    %v1252 = vsub.f32 %v1236, %v1220
    %v1253 = vsub.f32 %v1237, %v1221
    %v1254 = vsub.f32 %v1238, %v1222
    %v1255 = vsub.f32 %v1239, %v1223
    %v1256 = vsub.f32 %v1240, %v1224
    %v1257 = vsub.f32 %v1241, %v1225
    %v1258 = vsub.f32 %v1242, %v1226
    %v1259 = vsub.f32 %v1243, %v1227
    %v1260 = vsub.f32 %v1244, %v1228
    %v1261 = vsub.f32 %v1245, %v1229
    %v1262 = vsub.f32 %v1246, %v1230
    %v1263 = vsub.f32 %v1247, %v1231
    %v1264 = vsub.f32 %v1248, %v1232
    %v1265 = vsub.f32 %v1249, %v1233
    %v1266 = vsub.f32 %v1250, %v1234
    %v1267 = vsub.f32 %v1251, %v1235
    %v1268 = vand.u32 2147483647, %v1252
    %v1269 = vand.u32 2147483647, %v1253
    %v1270 = vand.u32 2147483647, %v1254
    %v1271 = vand.u32 2147483647, %v1255
    %v1272 = vand.u32 2147483647, %v1256
    %v1273 = vand.u32 2147483647, %v1257
    %v1274 = vand.u32 2147483647, %v1258
    %v1275 = vand.u32 2147483647, %v1259
    %v1276 = vand.u32 2147483647, %v1260
    %v1277 = vand.u32 2147483647, %v1261
    %v1278 = vand.u32 2147483647, %v1262
    %v1279 = vand.u32 2147483647, %v1263
    %v1280 = vand.u32 2147483647, %v1264
    %v1281 = vand.u32 2147483647, %v1265
    %v1282 = vand.u32 2147483647, %v1266
    %v1283 = vand.u32 2147483647, %v1267
    %v1284 = vsub.f32 0.0, %v1268
    %v1285 = vsub.f32 0.0, %v1269
    %v1286 = vsub.f32 0.0, %v1270
    %v1287 = vsub.f32 0.0, %v1271
    %v1288 = vsub.f32 0.0, %v1272
    %v1289 = vsub.f32 0.0, %v1273
    %v1290 = vsub.f32 0.0, %v1274
    %v1291 = vsub.f32 0.0, %v1275
    %v1292 = vsub.f32 0.0, %v1276
    %v1293 = vsub.f32 0.0, %v1277
    %v1294 = vsub.f32 0.0, %v1278
    %v1295 = vsub.f32 0.0, %v1279
    %v1296 = vsub.f32 0.0, %v1280
    %v1297 = vsub.f32 0.0, %v1281
    %v1298 = vsub.f32 0.0, %v1282
    %v1299 = vsub.f32 0.0, %v1283
    %v1300 = vmul.f32 %v1284, 1.442695
    %v1301 = vpow.pop %v1300
    %v1302 = vmul.f32 %v1285, 1.442695
    %v1303 = vpow.pop %v1302
    %v1304 = vmul.f32 %v1286, 1.442695
    %v1305 = vpow.pop %v1304
    %v1306 = vmul.f32 %v1287, 1.442695
    %v1307 = vpow.pop %v1306
    %v1308 = vmul.f32 %v1288, 1.442695
    %v1309 = vpow.pop %v1308
    %v1310 = vmul.f32 %v1289, 1.442695
    %v1311 = vpow.pop %v1310
    %v1312 = vmul.f32 %v1290, 1.442695
    %v1313 = vpow.pop %v1312
    %v1314 = vmul.f32 %v1291, 1.442695
    %v1315 = vpow.pop %v1314
    %v1316 = vmul.f32 %v1292, 1.442695
    %v1317 = vpow.pop %v1316
    %v1318 = vmul.f32 %v1293, 1.442695
    %v1319 = vpow.pop %v1318
    %v1320 = vmul.f32 %v1294, 1.442695
    %v1321 = vpow.pop %v1320
    %v1322 = vmul.f32 %v1295, 1.442695
    %v1323 = vpow.pop %v1322
    %v1324 = vmul.f32 %v1296, 1.442695
    %v1325 = vpow.pop %v1324
    %v1326 = vmul.f32 %v1297, 1.442695
    %v1327 = vpow.pop %v1326
    %v1328 = vmul.f32 %v1298, 1.442695
    %v1329 = vpow.pop %v1328
    %v1330 = vmul.f32 %v1299, 1.442695
    %v1331 = vpow.pop %v1330
    %v1332 = vadd.f32 %v1301, 1.0
    %v1333 = vadd.f32 %v1303, 1.0
    %v1334 = vadd.f32 %v1305, 1.0
    %v1335 = vadd.f32 %v1307, 1.0
    %v1336 = vadd.f32 %v1309, 1.0
    %v1337 = vadd.f32 %v1311, 1.0
    %v1338 = vadd.f32 %v1313, 1.0
    %v1339 = vadd.f32 %v1315, 1.0
    %v1340 = vadd.f32 %v1317, 1.0
    %v1341 = vadd.f32 %v1319, 1.0
    %v1342 = vadd.f32 %v1321, 1.0
    %v1343 = vadd.f32 %v1323, 1.0
    %v1344 = vadd.f32 %v1325, 1.0
    %v1345 = vadd.f32 %v1327, 1.0
    %v1346 = vadd.f32 %v1329, 1.0
    %v1347 = vadd.f32 %v1331, 1.0
    %v1348 = vlog2.pop %v1332
    %v1349 = vmul.f32 %v1348, 0.6931472
    %v1350 = vlog2.pop %v1333
    %v1351 = vmul.f32 %v1350, 0.6931472
    %v1352 = vlog2.pop %v1334
    %v1353 = vmul.f32 %v1352, 0.6931472
    %v1354 = vlog2.pop %v1335
    %v1355 = vmul.f32 %v1354, 0.6931472
    %v1356 = vlog2.pop %v1336
    %v1357 = vmul.f32 %v1356, 0.6931472
    %v1358 = vlog2.pop %v1337
    %v1359 = vmul.f32 %v1358, 0.6931472
    %v1360 = vlog2.pop %v1338
    %v1361 = vmul.f32 %v1360, 0.6931472
    %v1362 = vlog2.pop %v1339
    %v1363 = vmul.f32 %v1362, 0.6931472
    %v1364 = vlog2.pop %v1340
    %v1365 = vmul.f32 %v1364, 0.6931472
    %v1366 = vlog2.pop %v1341
    %v1367 = vmul.f32 %v1366, 0.6931472
    %v1368 = vlog2.pop %v1342
    %v1369 = vmul.f32 %v1368, 0.6931472
    %v1370 = vlog2.pop %v1343
    %v1371 = vmul.f32 %v1370, 0.6931472
    %v1372 = vlog2.pop %v1344
    %v1373 = vmul.f32 %v1372, 0.6931472
    %v1374 = vlog2.pop %v1345
    %v1375 = vmul.f32 %v1374, 0.6931472
    %v1376 = vlog2.pop %v1346
    %v1377 = vmul.f32 %v1376, 0.6931472
    %v1378 = vlog2.pop %v1347
    %v1379 = vmul.f32 %v1378, 0.6931472
    %v1380 = vmax.f32 %v1252, 0.0
    %v1381 = vmax.f32 %v1253, 0.0
    %v1382 = vmax.f32 %v1254, 0.0
    %v1383 = vmax.f32 %v1255, 0.0
    %v1384 = vmax.f32 %v1256, 0.0
    %v1385 = vmax.f32 %v1257, 0.0
    %v1386 = vmax.f32 %v1258, 0.0
    %v1387 = vmax.f32 %v1259, 0.0
    %v1388 = vmax.f32 %v1260, 0.0
    %v1389 = vmax.f32 %v1261, 0.0
    %v1390 = vmax.f32 %v1262, 0.0
    %v1391 = vmax.f32 %v1263, 0.0
    %v1392 = vmax.f32 %v1264, 0.0
    %v1393 = vmax.f32 %v1265, 0.0
    %v1394 = vmax.f32 %v1266, 0.0
    %v1395 = vmax.f32 %v1267, 0.0
    %v1396 = vadd.f32 %v1380, %v1349
    %v1397 = vadd.f32 %v1381, %v1351
    %v1398 = vadd.f32 %v1382, %v1353
    %v1399 = vadd.f32 %v1383, %v1355
    %v1400 = vadd.f32 %v1384, %v1357
    %v1401 = vadd.f32 %v1385, %v1359
    %v1402 = vadd.f32 %v1386, %v1361
    %v1403 = vadd.f32 %v1387, %v1363
    %v1404 = vadd.f32 %v1388, %v1365
    %v1405 = vadd.f32 %v1389, %v1367
    %v1406 = vadd.f32 %v1390, %v1369
    %v1407 = vadd.f32 %v1391, %v1371
    %v1408 = vadd.f32 %v1392, %v1373
    %v1409 = vadd.f32 %v1393, %v1375
    %v1410 = vadd.f32 %v1394, %v1377
    %v1411 = vadd.f32 %v1395, %v1379
    %v1412 = vsub.f32 0.0, %v1252
    %v1413 = vsub.f32 0.0, %v1253
    %v1414 = vsub.f32 0.0, %v1254
    %v1415 = vsub.f32 0.0, %v1255
    %v1416 = vsub.f32 0.0, %v1256
    %v1417 = vsub.f32 0.0, %v1257
    %v1418 = vsub.f32 0.0, %v1258
    %v1419 = vsub.f32 0.0, %v1259
    %v1420 = vsub.f32 0.0, %v1260
    %v1421 = vsub.f32 0.0, %v1261
    %v1422 = vsub.f32 0.0, %v1262
    %v1423 = vsub.f32 0.0, %v1263
    %v1424 = vsub.f32 0.0, %v1264
    %v1425 = vsub.f32 0.0, %v1265
    %v1426 = vsub.f32 0.0, %v1266
    %v1427 = vsub.f32 0.0, %v1267
    %v1428 = vmax.f32 %v1412, 0.0
    %v1429 = vmax.f32 %v1413, 0.0
    %v1430 = vmax.f32 %v1414, 0.0
    %v1431 = vmax.f32 %v1415, 0.0
    %v1432 = vmax.f32 %v1416, 0.0
    %v1433 = vmax.f32 %v1417, 0.0
    %v1434 = vmax.f32 %v1418, 0.0
    %v1435 = vmax.f32 %v1419, 0.0
    %v1436 = vmax.f32 %v1420, 0.0
    %v1437 = vmax.f32 %v1421, 0.0
    %v1438 = vmax.f32 %v1422, 0.0
    %v1439 = vmax.f32 %v1423, 0.0
    %v1440 = vmax.f32 %v1424, 0.0
    %v1441 = vmax.f32 %v1425, 0.0
    %v1442 = vmax.f32 %v1426, 0.0
    %v1443 = vmax.f32 %v1427, 0.0
    %v1444 = vadd.f32 %v1428, %v1349
    %v1445 = vadd.f32 %v1429, %v1351
    %v1446 = vadd.f32 %v1430, %v1353
    %v1447 = vadd.f32 %v1431, %v1355
    %v1448 = vadd.f32 %v1432, %v1357
    %v1449 = vadd.f32 %v1433, %v1359
    %v1450 = vadd.f32 %v1434, %v1361
    %v1451 = vadd.f32 %v1435, %v1363
    %v1452 = vadd.f32 %v1436, %v1365
    %v1453 = vadd.f32 %v1437, %v1367
    %v1454 = vadd.f32 %v1438, %v1369
    %v1455 = vadd.f32 %v1439, %v1371
    %v1456 = vadd.f32 %v1440, %v1373
    %v1457 = vadd.f32 %v1441, %v1375
    %v1458 = vadd.f32 %v1442, %v1377
    %v1459 = vadd.f32 %v1443, %v1379
    %vm1460 = vcmp.gt.f32.partialorder %v447, 0.0
    %vm1461 = vcmp.gt.f32.partialorder %v448, 0.0
    %vm1462 = vcmp.gt.f32.partialorder %v449, 0.0
    %vm1463 = vcmp.gt.f32.partialorder %v450, 0.0
    %vm1464 = vcmp.gt.f32.partialorder %v451, 0.0
    %vm1465 = vcmp.gt.f32.partialorder %v452, 0.0
    %vm1466 = vcmp.gt.f32.partialorder %v453, 0.0
    %vm1467 = vcmp.gt.f32.partialorder %v454, 0.0
    %vm1468 = vcmp.gt.f32.partialorder %v455, 0.0
    %vm1469 = vcmp.gt.f32.partialorder %v456, 0.0
    %vm1470 = vcmp.gt.f32.partialorder %v457, 0.0
    %vm1471 = vcmp.gt.f32.partialorder %v458, 0.0
    %vm1472 = vcmp.gt.f32.partialorder %v459, 0.0
    %vm1473 = vcmp.gt.f32.partialorder %v460, 0.0
    %vm1474 = vcmp.gt.f32.partialorder %v461, 0.0
    %vm1475 = vcmp.gt.f32.partialorder %v462, 0.0
    %v1476 = vsel %vm1460, %v1444, %v1396
    %v1477 = vsel %vm1461, %v1445, %v1397
    %v1478 = vsel %vm1462, %v1446, %v1398
    %v1479 = vsel %vm1463, %v1447, %v1399
    %v1480 = vsel %vm1464, %v1448, %v1400
    %v1481 = vsel %vm1465, %v1449, %v1401
    %v1482 = vsel %vm1466, %v1450, %v1402
    %v1483 = vsel %vm1467, %v1451, %v1403
    %v1484 = vsel %vm1468, %v1452, %v1404
    %v1485 = vsel %vm1469, %v1453, %v1405
    %v1486 = vsel %vm1470, %v1454, %v1406
    %v1487 = vsel %vm1471, %v1455, %v1407
    %v1488 = vsel %vm1472, %v1456, %v1408
    %v1489 = vsel %vm1473, %v1457, %v1409
    %v1490 = vsel %vm1474, %v1458, %v1410
    %v1491 = vsel %vm1475, %v1459, %v1411
    %v1492 = vld [vmem:[#allocation19] sm:$0xff]
    %v1493 = vld [vmem:[#allocation19 + $0x8] sm:$0xff]
    %v1494 = vld [vmem:[#allocation19 + $0x10] sm:$0xff]
    %v1495 = vld [vmem:[#allocation19 + $0x18] sm:$0xff]
    %v1496 = vld [vmem:[#allocation19 + $0x20] sm:$0xff]
    %v1497 = vld [vmem:[#allocation19 + $0x28] sm:$0xff]
    %v1498 = vld [vmem:[#allocation19 + $0x30] sm:$0xff]
    %v1499 = vld [vmem:[#allocation19 + $0x38] sm:$0xff]
    %v1500 = vld [vmem:[#allocation19 + $0x40] sm:$0xff]
    %v1501 = vld [vmem:[#allocation19 + $0x48] sm:$0xff]
    %v1502 = vld [vmem:[#allocation19 + $0x50] sm:$0xff]
    %v1503 = vld [vmem:[#allocation19 + $0x58] sm:$0xff]
    %v1504 = vld [vmem:[#allocation19 + $0x60] sm:$0xff]
    %v1505 = vld [vmem:[#allocation19 + $0x68] sm:$0xff]
    %v1506 = vld [vmem:[#allocation19 + $0x70] sm:$0xff]
    %v1507 = vld [vmem:[#allocation19 + $0x78] sm:$0xff]
    %v1508 = vmul.f32 %v739, %v1492
    %v1509 = vmul.f32 %v740, %v1493
    %v1510 = vmul.f32 %v741, %v1494
    %v1511 = vmul.f32 %v742, %v1495
    %v1512 = vmul.f32 %v743, %v1496
    %v1513 = vmul.f32 %v744, %v1497
    %v1514 = vmul.f32 %v745, %v1498
    %v1515 = vmul.f32 %v746, %v1499
    %v1516 = vmul.f32 %v747, %v1500
    %v1517 = vmul.f32 %v748, %v1501
    %v1518 = vmul.f32 %v749, %v1502
    %v1519 = vmul.f32 %v750, %v1503
    %v1520 = vmul.f32 %v751, %v1504
    %v1521 = vmul.f32 %v752, %v1505
    %v1522 = vmul.f32 %v753, %v1506
    %v1523 = vmul.f32 %v754, %v1507
    %v1524 = vmul.f32 %v1508, %v1476
    %v1525 = vmul.f32 %v1509, %v1477
    %v1526 = vmul.f32 %v1510, %v1478
    %v1527 = vmul.f32 %v1511, %v1479
    %v1528 = vmul.f32 %v1512, %v1480
    %v1529 = vmul.f32 %v1513, %v1481
    %v1530 = vmul.f32 %v1514, %v1482
    %v1531 = vmul.f32 %v1515, %v1483
    %v1532 = vmul.f32 %v1516, %v1484
    %v1533 = vmul.f32 %v1517, %v1485
    %v1534 = vmul.f32 %v1518, %v1486
    %v1535 = vmul.f32 %v1519, %v1487
    %v1536 = vmul.f32 %v1520, %v1488
    %v1537 = vmul.f32 %v1521, %v1489
    %v1538 = vmul.f32 %v1522, %v1490
    %v1539 = vmul.f32 %v1523, %v1491
    %s1540 = scalar_lea.vmem [#allocation27], 5
    %v1541 = vld [vmem:[%s1540] ss:$8 sm:$0xf]
    %v1542 = vadd.f32 %v1524, %v1528
    %v1543 = vadd.f32 %v1542, %v1532
    %v1544 = vadd.f32 %v1543, %v1536
    %v1545 = vrot.slane %v1544, 4
    %v1546 = vadd.f32 %v1544, %v1545
    %v1547 = vrot.slane %v1546, 2
    %v1548 = vadd.f32 %v1546, %v1547
    %v1549 = vrot.slane %v1548, 1
    %v1550 = vadd.f32 %v1548, %v1549
    %v1551 = vadd.f32 %v1525, %v1529
    %v1552 = vadd.f32 %v1551, %v1533
    %v1553 = vadd.f32 %v1552, %v1537
    %v1554 = vrot.slane %v1553, 4
    %v1555 = vadd.f32 %v1553, %v1554
    %v1556 = vrot.slane %v1555, 2
    %v1557 = vadd.f32 %v1555, %v1556
    %v1558 = vrot.slane %v1557, 1
    %v1559 = vadd.f32 %v1557, %v1558
    %v1560 = vadd.f32 %v1526, %v1530
    %v1561 = vadd.f32 %v1560, %v1534
    %v1562 = vadd.f32 %v1561, %v1538
    %v1563 = vrot.slane %v1562, 4
    %v1564 = vadd.f32 %v1562, %v1563
    %v1565 = vrot.slane %v1564, 2
    %v1566 = vadd.f32 %v1564, %v1565
    %v1567 = vrot.slane %v1566, 1
    %v1568 = vadd.f32 %v1566, %v1567
    %v1569 = vadd.f32 %v1527, %v1531
    %v1570 = vadd.f32 %v1569, %v1535
    %v1571 = vadd.f32 %v1570, %v1539
    %v1572 = vrot.slane %v1571, 4
    %v1573 = vadd.f32 %v1571, %v1572
    %v1574 = vrot.slane %v1573, 2
    %v1575 = vadd.f32 %v1573, %v1574
    %v1576 = vrot.slane %v1575, 1
    %v1577 = vadd.f32 %v1575, %v1576
    %v1582 = vcombine.low %v1550, %v1559
    %v1583 = vcombine.low %v1568, %v1577
    %v1585 = vunpack.c.l.s4 1966171168
    %v1586 = vunpack.c.0.s8 %v1585
    %v1587 = vlaneseq
    %v1588 = vshrl.u32 %v1587, 7
    %v1589 = vsub.s32 %v1586, %v1588
    %v1590 = vrot.slane %v1582, %v1589
    %v1592 = vunpack.c.l.s4 1966171168
    %v1593 = vunpack.c.0.s8 %v1592
    %v1594 = vlaneseq
    %v1595 = vshrl.u32 %v1594, 7
    %v1596 = vsub.s32 %v1593, %v1595
    %v1597 = vrot.slane %v1583, %v1596
    %v1598 = vcombine.low %v1590, %v1597
    %v1600 = vunpack.c.l.s4 1966171168
    %v1601 = vunpack.c.0.s8 %v1600
    %v1602 = vlaneseq
    %v1603 = vshrl.u32 %v1602, 7
    %v1604 = vsub.s32 %v1601, %v1603
    %v1605 = vrot.slane %v1598, %v1604
    %v1607 = vadd.f32 %v1541, %v1605
    %1608 = vst.msk [vmem:[%s1540] ss:$8 sm:$0xf] %vm905, %v1607
    %1609 = vst.msk [vmem:[%s1540] ss:$8 sm:$0x0] %vm905, %v1607
    %s1610 = scalar_lea.vmem [#allocation27], 6
    %v1611 = vld [vmem:[%s1610] ss:$8 sm:$0xf]
    %v1612 = vadd.f32 %v1611, %v899
    %1613 = vst.msk [vmem:[%s1610] ss:$8 sm:$0xf] %vm905, %v1612
    %1614 = vst.msk [vmem:[%s1610] ss:$8 sm:$0x0] %vm905, %v1612
    %v1615 = vmul.f32 %v411, %v1492
    %v1616 = vmul.f32 %v412, %v1493
    %v1617 = vmul.f32 %v413, %v1494
    %v1618 = vmul.f32 %v414, %v1495
    %v1619 = vmul.f32 %v415, %v1496
    %v1620 = vmul.f32 %v416, %v1497
    %v1621 = vmul.f32 %v417, %v1498
    %v1622 = vmul.f32 %v418, %v1499
    %v1623 = vmul.f32 %v419, %v1500
    %v1624 = vmul.f32 %v420, %v1501
    %v1625 = vmul.f32 %v421, %v1502
    %v1626 = vmul.f32 %v422, %v1503
    %v1627 = vmul.f32 %v423, %v1504
    %v1628 = vmul.f32 %v424, %v1505
    %v1629 = vmul.f32 %v425, %v1506
    %v1630 = vmul.f32 %v426, %v1507
    %v1631 = vmul.f32 %v1615, %v1476
    %v1632 = vmul.f32 %v1616, %v1477
    %v1633 = vmul.f32 %v1617, %v1478
    %v1634 = vmul.f32 %v1618, %v1479
    %v1635 = vmul.f32 %v1619, %v1480
    %v1636 = vmul.f32 %v1620, %v1481
    %v1637 = vmul.f32 %v1621, %v1482
    %v1638 = vmul.f32 %v1622, %v1483
    %v1639 = vmul.f32 %v1623, %v1484
    %v1640 = vmul.f32 %v1624, %v1485
    %v1641 = vmul.f32 %v1625, %v1486
    %v1642 = vmul.f32 %v1626, %v1487
    %v1643 = vmul.f32 %v1627, %v1488
    %v1644 = vmul.f32 %v1628, %v1489
    %v1645 = vmul.f32 %v1629, %v1490
    %v1646 = vmul.f32 %v1630, %v1491
    %s1647 = scalar_lea.vmem [#allocation27], 7
    %v1648 = vld [vmem:[%s1647] ss:$8 sm:$0xf]
    %v1649 = vadd.f32 %v1631, %v1635
    %v1650 = vadd.f32 %v1649, %v1639
    %v1651 = vadd.f32 %v1650, %v1643
    %v1652 = vrot.slane %v1651, 4
    %v1653 = vadd.f32 %v1651, %v1652
    %v1654 = vrot.slane %v1653, 2
    %v1655 = vadd.f32 %v1653, %v1654
    %v1656 = vrot.slane %v1655, 1
    %v1657 = vadd.f32 %v1655, %v1656
    %v1658 = vadd.f32 %v1632, %v1636
    %v1659 = vadd.f32 %v1658, %v1640
    %v1660 = vadd.f32 %v1659, %v1644
    %v1661 = vrot.slane %v1660, 4
    %v1662 = vadd.f32 %v1660, %v1661
    %v1663 = vrot.slane %v1662, 2
    %v1664 = vadd.f32 %v1662, %v1663
    %v1665 = vrot.slane %v1664, 1
    %v1666 = vadd.f32 %v1664, %v1665
    %v1667 = vadd.f32 %v1633, %v1637
    %v1668 = vadd.f32 %v1667, %v1641
    %v1669 = vadd.f32 %v1668, %v1645
    %v1670 = vrot.slane %v1669, 4
    %v1671 = vadd.f32 %v1669, %v1670
    %v1672 = vrot.slane %v1671, 2
    %v1673 = vadd.f32 %v1671, %v1672
    %v1674 = vrot.slane %v1673, 1
    %v1675 = vadd.f32 %v1673, %v1674
    %v1676 = vadd.f32 %v1634, %v1638
    %v1677 = vadd.f32 %v1676, %v1642
    %v1678 = vadd.f32 %v1677, %v1646
    %v1679 = vrot.slane %v1678, 4
    %v1680 = vadd.f32 %v1678, %v1679
    %v1681 = vrot.slane %v1680, 2
    %v1682 = vadd.f32 %v1680, %v1681
    %v1683 = vrot.slane %v1682, 1
    %v1684 = vadd.f32 %v1682, %v1683
    %v1689 = vcombine.low %v1657, %v1666
    %v1690 = vcombine.low %v1675, %v1684
    %v1692 = vunpack.c.l.s4 1966171168
    %v1693 = vunpack.c.0.s8 %v1692
    %v1694 = vlaneseq
    %v1695 = vshrl.u32 %v1694, 7
    %v1696 = vsub.s32 %v1693, %v1695
    %v1697 = vrot.slane %v1689, %v1696
    %v1699 = vunpack.c.l.s4 1966171168
    %v1700 = vunpack.c.0.s8 %v1699
    %v1701 = vlaneseq
    %v1702 = vshrl.u32 %v1701, 7
    %v1703 = vsub.s32 %v1700, %v1702
    %v1704 = vrot.slane %v1690, %v1703
    %v1705 = vcombine.low %v1697, %v1704
    %v1707 = vunpack.c.l.s4 1966171168
    %v1708 = vunpack.c.0.s8 %v1707
    %v1709 = vlaneseq
    %v1710 = vshrl.u32 %v1709, 7
    %v1711 = vsub.s32 %v1708, %v1710
    %v1712 = vrot.slane %v1705, %v1711
    %v1714 = vadd.f32 %v1648, %v1712
    %1715 = vst.msk [vmem:[%s1647] ss:$8 sm:$0xf] %vm905, %v1714
    %1716 = vst.msk [vmem:[%s1647] ss:$8 sm:$0x0] %vm905, %v1714
    %v1717 = vld [vmem:[#allocation10] sm:$0xff]
    %v1718 = vld [vmem:[#allocation10 + $0x8] sm:$0xff]
    %v1719 = vld [vmem:[#allocation10 + $0x10] sm:$0xff]
    %v1720 = vld [vmem:[#allocation10 + $0x18] sm:$0xff]
    %v1721 = vld [vmem:[#allocation10 + $0x20] sm:$0xff]
    %v1722 = vld [vmem:[#allocation10 + $0x28] sm:$0xff]
    %v1723 = vld [vmem:[#allocation10 + $0x30] sm:$0xff]
    %v1724 = vld [vmem:[#allocation10 + $0x38] sm:$0xff]
    %v1725 = vld [vmem:[#allocation10 + $0x40] sm:$0xff]
    %v1726 = vld [vmem:[#allocation10 + $0x48] sm:$0xff]
    %v1727 = vld [vmem:[#allocation10 + $0x50] sm:$0xff]
    %v1728 = vld [vmem:[#allocation10 + $0x58] sm:$0xff]
    %v1729 = vld [vmem:[#allocation10 + $0x60] sm:$0xff]
    %v1730 = vld [vmem:[#allocation10 + $0x68] sm:$0xff]
    %v1731 = vld [vmem:[#allocation10 + $0x70] sm:$0xff]
    %v1732 = vld [vmem:[#allocation10 + $0x78] sm:$0xff]
    %v1733 = vld [vmem:[#allocation20] sm:$0xff]
    %v1734 = vld [vmem:[#allocation20 + $0x8] sm:$0xff]
    %v1735 = vld [vmem:[#allocation20 + $0x10] sm:$0xff]
    %v1736 = vld [vmem:[#allocation20 + $0x18] sm:$0xff]
    %v1737 = vld [vmem:[#allocation20 + $0x20] sm:$0xff]
    %v1738 = vld [vmem:[#allocation20 + $0x28] sm:$0xff]
    %v1739 = vld [vmem:[#allocation20 + $0x30] sm:$0xff]
    %v1740 = vld [vmem:[#allocation20 + $0x38] sm:$0xff]
    %v1741 = vld [vmem:[#allocation20 + $0x40] sm:$0xff]
    %v1742 = vld [vmem:[#allocation20 + $0x48] sm:$0xff]
    %v1743 = vld [vmem:[#allocation20 + $0x50] sm:$0xff]
    %v1744 = vld [vmem:[#allocation20 + $0x58] sm:$0xff]
    %v1745 = vld [vmem:[#allocation20 + $0x60] sm:$0xff]
    %v1746 = vld [vmem:[#allocation20 + $0x68] sm:$0xff]
    %v1747 = vld [vmem:[#allocation20 + $0x70] sm:$0xff]
    %v1748 = vld [vmem:[#allocation20 + $0x78] sm:$0xff]
    %v1749 = vsub.f32 %v1717, %v1733
    %v1750 = vsub.f32 %v1718, %v1734
    %v1751 = vsub.f32 %v1719, %v1735
    %v1752 = vsub.f32 %v1720, %v1736
    %v1753 = vsub.f32 %v1721, %v1737
    %v1754 = vsub.f32 %v1722, %v1738
    %v1755 = vsub.f32 %v1723, %v1739
    %v1756 = vsub.f32 %v1724, %v1740
    %v1757 = vsub.f32 %v1725, %v1741
    %v1758 = vsub.f32 %v1726, %v1742
    %v1759 = vsub.f32 %v1727, %v1743
    %v1760 = vsub.f32 %v1728, %v1744
    %v1761 = vsub.f32 %v1729, %v1745
    %v1762 = vsub.f32 %v1730, %v1746
    %v1763 = vsub.f32 %v1731, %v1747
    %v1764 = vsub.f32 %v1732, %v1748
    %v1765 = vand.u32 2147483647, %v1749
    %v1766 = vand.u32 2147483647, %v1750
    %v1767 = vand.u32 2147483647, %v1751
    %v1768 = vand.u32 2147483647, %v1752
    %v1769 = vand.u32 2147483647, %v1753
    %v1770 = vand.u32 2147483647, %v1754
    %v1771 = vand.u32 2147483647, %v1755
    %v1772 = vand.u32 2147483647, %v1756
    %v1773 = vand.u32 2147483647, %v1757
    %v1774 = vand.u32 2147483647, %v1758
    %v1775 = vand.u32 2147483647, %v1759
    %v1776 = vand.u32 2147483647, %v1760
    %v1777 = vand.u32 2147483647, %v1761
    %v1778 = vand.u32 2147483647, %v1762
    %v1779 = vand.u32 2147483647, %v1763
    %v1780 = vand.u32 2147483647, %v1764
    %vm1781 = vcmp.lt.f32.partialorder %v1765, 1.0
    %vm1782 = vcmp.lt.f32.partialorder %v1766, 1.0
    %vm1783 = vcmp.lt.f32.partialorder %v1767, 1.0
    %vm1784 = vcmp.lt.f32.partialorder %v1768, 1.0
    %vm1785 = vcmp.lt.f32.partialorder %v1769, 1.0
    %vm1786 = vcmp.lt.f32.partialorder %v1770, 1.0
    %vm1787 = vcmp.lt.f32.partialorder %v1771, 1.0
    %vm1788 = vcmp.lt.f32.partialorder %v1772, 1.0
    %vm1789 = vcmp.lt.f32.partialorder %v1773, 1.0
    %vm1790 = vcmp.lt.f32.partialorder %v1774, 1.0
    %vm1791 = vcmp.lt.f32.partialorder %v1775, 1.0
    %vm1792 = vcmp.lt.f32.partialorder %v1776, 1.0
    %vm1793 = vcmp.lt.f32.partialorder %v1777, 1.0
    %vm1794 = vcmp.lt.f32.partialorder %v1778, 1.0
    %vm1795 = vcmp.lt.f32.partialorder %v1779, 1.0
    %vm1796 = vcmp.lt.f32.partialorder %v1780, 1.0
    %v1797 = vmul.f32 %v1749, 0.5
    %v1798 = vmul.f32 %v1750, 0.5
    %v1799 = vmul.f32 %v1751, 0.5
    %v1800 = vmul.f32 %v1752, 0.5
    %v1801 = vmul.f32 %v1753, 0.5
    %v1802 = vmul.f32 %v1754, 0.5
    %v1803 = vmul.f32 %v1755, 0.5
    %v1804 = vmul.f32 %v1756, 0.5
    %v1805 = vmul.f32 %v1757, 0.5
    %v1806 = vmul.f32 %v1758, 0.5
    %v1807 = vmul.f32 %v1759, 0.5
    %v1808 = vmul.f32 %v1760, 0.5
    %v1809 = vmul.f32 %v1761, 0.5
    %v1810 = vmul.f32 %v1762, 0.5
    %v1811 = vmul.f32 %v1763, 0.5
    %v1812 = vmul.f32 %v1764, 0.5
    %v1813 = vmul.f32 %v1797, %v1749
    %v1814 = vmul.f32 %v1798, %v1750
    %v1815 = vmul.f32 %v1799, %v1751
    %v1816 = vmul.f32 %v1800, %v1752
    %v1817 = vmul.f32 %v1801, %v1753
    %v1818 = vmul.f32 %v1802, %v1754
    %v1819 = vmul.f32 %v1803, %v1755
    %v1820 = vmul.f32 %v1804, %v1756
    %v1821 = vmul.f32 %v1805, %v1757
    %v1822 = vmul.f32 %v1806, %v1758
    %v1823 = vmul.f32 %v1807, %v1759
    %v1824 = vmul.f32 %v1808, %v1760
    %v1825 = vmul.f32 %v1809, %v1761
    %v1826 = vmul.f32 %v1810, %v1762
    %v1827 = vmul.f32 %v1811, %v1763
    %v1828 = vmul.f32 %v1812, %v1764
    %v1829 = vsub.f32 %v1765, 0.5
    %v1830 = vsub.f32 %v1766, 0.5
    %v1831 = vsub.f32 %v1767, 0.5
    %v1832 = vsub.f32 %v1768, 0.5
    %v1833 = vsub.f32 %v1769, 0.5
    %v1834 = vsub.f32 %v1770, 0.5
    %v1835 = vsub.f32 %v1771, 0.5
    %v1836 = vsub.f32 %v1772, 0.5
    %v1837 = vsub.f32 %v1773, 0.5
    %v1838 = vsub.f32 %v1774, 0.5
    %v1839 = vsub.f32 %v1775, 0.5
    %v1840 = vsub.f32 %v1776, 0.5
    %v1841 = vsub.f32 %v1777, 0.5
    %v1842 = vsub.f32 %v1778, 0.5
    %v1843 = vsub.f32 %v1779, 0.5
    %v1844 = vsub.f32 %v1780, 0.5
    %v1845 = vsel %vm1781, %v1813, %v1829
    %v1846 = vsel %vm1782, %v1814, %v1830
    %v1847 = vsel %vm1783, %v1815, %v1831
    %v1848 = vsel %vm1784, %v1816, %v1832
    %v1849 = vsel %vm1785, %v1817, %v1833
    %v1850 = vsel %vm1786, %v1818, %v1834
    %v1851 = vsel %vm1787, %v1819, %v1835
    %v1852 = vsel %vm1788, %v1820, %v1836
    %v1853 = vsel %vm1789, %v1821, %v1837
    %v1854 = vsel %vm1790, %v1822, %v1838
    %v1855 = vsel %vm1791, %v1823, %v1839
    %v1856 = vsel %vm1792, %v1824, %v1840
    %v1857 = vsel %vm1793, %v1825, %v1841
    %v1858 = vsel %vm1794, %v1826, %v1842
    %v1859 = vsel %vm1795, %v1827, %v1843
    %v1860 = vsel %vm1796, %v1828, %v1844
    %s1861 = scalar_lea.vmem [#allocation27], 32
    %v1862 = vld [vmem:[%s1861] ss:$8 sm:$0xf]
    %v1863 = vadd.f32 %v1845, %v1849
    %v1864 = vadd.f32 %v1863, %v1853
    %v1865 = vadd.f32 %v1864, %v1857
    %v1866 = vrot.slane %v1865, 4
    %v1867 = vadd.f32 %v1865, %v1866
    %v1868 = vrot.slane %v1867, 2
    %v1869 = vadd.f32 %v1867, %v1868
    %v1870 = vrot.slane %v1869, 1
    %v1871 = vadd.f32 %v1869, %v1870
    %v1872 = vadd.f32 %v1846, %v1850
    %v1873 = vadd.f32 %v1872, %v1854
    %v1874 = vadd.f32 %v1873, %v1858
    %v1875 = vrot.slane %v1874, 4
    %v1876 = vadd.f32 %v1874, %v1875
    %v1877 = vrot.slane %v1876, 2
    %v1878 = vadd.f32 %v1876, %v1877
    %v1879 = vrot.slane %v1878, 1
    %v1880 = vadd.f32 %v1878, %v1879
    %v1881 = vadd.f32 %v1847, %v1851
    %v1882 = vadd.f32 %v1881, %v1855
    %v1883 = vadd.f32 %v1882, %v1859
    %v1884 = vrot.slane %v1883, 4
    %v1885 = vadd.f32 %v1883, %v1884
    %v1886 = vrot.slane %v1885, 2
    %v1887 = vadd.f32 %v1885, %v1886
    %v1888 = vrot.slane %v1887, 1
    %v1889 = vadd.f32 %v1887, %v1888
    %v1890 = vadd.f32 %v1848, %v1852
    %v1891 = vadd.f32 %v1890, %v1856
    %v1892 = vadd.f32 %v1891, %v1860
    %v1893 = vrot.slane %v1892, 4
    %v1894 = vadd.f32 %v1892, %v1893
    %v1895 = vrot.slane %v1894, 2
    %v1896 = vadd.f32 %v1894, %v1895
    %v1897 = vrot.slane %v1896, 1
    %v1898 = vadd.f32 %v1896, %v1897
    %v1903 = vcombine.low %v1871, %v1880
    %v1904 = vcombine.low %v1889, %v1898
    %v1906 = vunpack.c.l.s4 1966171168
    %v1907 = vunpack.c.0.s8 %v1906
    %v1908 = vlaneseq
    %v1909 = vshrl.u32 %v1908, 7
    %v1910 = vsub.s32 %v1907, %v1909
    %v1911 = vrot.slane %v1903, %v1910
    %v1913 = vunpack.c.l.s4 1966171168
    %v1914 = vunpack.c.0.s8 %v1913
    %v1915 = vlaneseq
    %v1916 = vshrl.u32 %v1915, 7
    %v1917 = vsub.s32 %v1914, %v1916
    %v1918 = vrot.slane %v1904, %v1917
    %v1919 = vcombine.low %v1911, %v1918
    %v1921 = vunpack.c.l.s4 1966171168
    %v1922 = vunpack.c.0.s8 %v1921
    %v1923 = vlaneseq
    %v1924 = vshrl.u32 %v1923, 7
    %v1925 = vsub.s32 %v1922, %v1924
    %v1926 = vrot.slane %v1919, %v1925
    %v1928 = vadd.f32 %v1862, %v1926
    %1929 = vst.msk [vmem:[%s1861] ss:$8 sm:$0xf] %vm905, %v1928
    %1930 = vst.msk [vmem:[%s1861] ss:$8 sm:$0x0] %vm905, %v1928
    %v1931 = vld [vmem:[#allocation11] sm:$0xff]
    %v1932 = vld [vmem:[#allocation11 + $0x8] sm:$0xff]
    %v1933 = vld [vmem:[#allocation11 + $0x10] sm:$0xff]
    %v1934 = vld [vmem:[#allocation11 + $0x18] sm:$0xff]
    %v1935 = vld [vmem:[#allocation11 + $0x20] sm:$0xff]
    %v1936 = vld [vmem:[#allocation11 + $0x28] sm:$0xff]
    %v1937 = vld [vmem:[#allocation11 + $0x30] sm:$0xff]
    %v1938 = vld [vmem:[#allocation11 + $0x38] sm:$0xff]
    %v1939 = vld [vmem:[#allocation11 + $0x40] sm:$0xff]
    %v1940 = vld [vmem:[#allocation11 + $0x48] sm:$0xff]
    %v1941 = vld [vmem:[#allocation11 + $0x50] sm:$0xff]
    %v1942 = vld [vmem:[#allocation11 + $0x58] sm:$0xff]
    %v1943 = vld [vmem:[#allocation11 + $0x60] sm:$0xff]
    %v1944 = vld [vmem:[#allocation11 + $0x68] sm:$0xff]
    %v1945 = vld [vmem:[#allocation11 + $0x70] sm:$0xff]
    %v1946 = vld [vmem:[#allocation11 + $0x78] sm:$0xff]
    %v1947 = vld [vmem:[#allocation22] sm:$0xff]
    %v1948 = vld [vmem:[#allocation22 + $0x8] sm:$0xff]
    %v1949 = vld [vmem:[#allocation22 + $0x10] sm:$0xff]
    %v1950 = vld [vmem:[#allocation22 + $0x18] sm:$0xff]
    %v1951 = vld [vmem:[#allocation22 + $0x20] sm:$0xff]
    %v1952 = vld [vmem:[#allocation22 + $0x28] sm:$0xff]
    %v1953 = vld [vmem:[#allocation22 + $0x30] sm:$0xff]
    %v1954 = vld [vmem:[#allocation22 + $0x38] sm:$0xff]
    %v1955 = vld [vmem:[#allocation22 + $0x40] sm:$0xff]
    %v1956 = vld [vmem:[#allocation22 + $0x48] sm:$0xff]
    %v1957 = vld [vmem:[#allocation22 + $0x50] sm:$0xff]
    %v1958 = vld [vmem:[#allocation22 + $0x58] sm:$0xff]
    %v1959 = vld [vmem:[#allocation22 + $0x60] sm:$0xff]
    %v1960 = vld [vmem:[#allocation22 + $0x68] sm:$0xff]
    %v1961 = vld [vmem:[#allocation22 + $0x70] sm:$0xff]
    %v1962 = vld [vmem:[#allocation22 + $0x78] sm:$0xff]
    %v1963 = vsub.f32 %v1931, %v1947
    %v1964 = vsub.f32 %v1932, %v1948
    %v1965 = vsub.f32 %v1933, %v1949
    %v1966 = vsub.f32 %v1934, %v1950
    %v1967 = vsub.f32 %v1935, %v1951
    %v1968 = vsub.f32 %v1936, %v1952
    %v1969 = vsub.f32 %v1937, %v1953
    %v1970 = vsub.f32 %v1938, %v1954
    %v1971 = vsub.f32 %v1939, %v1955
    %v1972 = vsub.f32 %v1940, %v1956
    %v1973 = vsub.f32 %v1941, %v1957
    %v1974 = vsub.f32 %v1942, %v1958
    %v1975 = vsub.f32 %v1943, %v1959
    %v1976 = vsub.f32 %v1944, %v1960
    %v1977 = vsub.f32 %v1945, %v1961
    %v1978 = vsub.f32 %v1946, %v1962
    %v1979 = vand.u32 2147483647, %v1963
    %v1980 = vand.u32 2147483647, %v1964
    %v1981 = vand.u32 2147483647, %v1965
    %v1982 = vand.u32 2147483647, %v1966
    %v1983 = vand.u32 2147483647, %v1967
    %v1984 = vand.u32 2147483647, %v1968
    %v1985 = vand.u32 2147483647, %v1969
    %v1986 = vand.u32 2147483647, %v1970
    %v1987 = vand.u32 2147483647, %v1971
    %v1988 = vand.u32 2147483647, %v1972
    %v1989 = vand.u32 2147483647, %v1973
    %v1990 = vand.u32 2147483647, %v1974
    %v1991 = vand.u32 2147483647, %v1975
    %v1992 = vand.u32 2147483647, %v1976
    %v1993 = vand.u32 2147483647, %v1977
    %v1994 = vand.u32 2147483647, %v1978
    %vm1995 = vcmp.lt.f32.partialorder %v1979, 1.0
    %vm1996 = vcmp.lt.f32.partialorder %v1980, 1.0
    %vm1997 = vcmp.lt.f32.partialorder %v1981, 1.0
    %vm1998 = vcmp.lt.f32.partialorder %v1982, 1.0
    %vm1999 = vcmp.lt.f32.partialorder %v1983, 1.0
    %vm2000 = vcmp.lt.f32.partialorder %v1984, 1.0
    %vm2001 = vcmp.lt.f32.partialorder %v1985, 1.0
    %vm2002 = vcmp.lt.f32.partialorder %v1986, 1.0
    %vm2003 = vcmp.lt.f32.partialorder %v1987, 1.0
    %vm2004 = vcmp.lt.f32.partialorder %v1988, 1.0
    %vm2005 = vcmp.lt.f32.partialorder %v1989, 1.0
    %vm2006 = vcmp.lt.f32.partialorder %v1990, 1.0
    %vm2007 = vcmp.lt.f32.partialorder %v1991, 1.0
    %vm2008 = vcmp.lt.f32.partialorder %v1992, 1.0
    %vm2009 = vcmp.lt.f32.partialorder %v1993, 1.0
    %vm2010 = vcmp.lt.f32.partialorder %v1994, 1.0
    %v2011 = vmul.f32 %v1963, 0.5
    %v2012 = vmul.f32 %v1964, 0.5
    %v2013 = vmul.f32 %v1965, 0.5
    %v2014 = vmul.f32 %v1966, 0.5
    %v2015 = vmul.f32 %v1967, 0.5
    %v2016 = vmul.f32 %v1968, 0.5
    %v2017 = vmul.f32 %v1969, 0.5
    %v2018 = vmul.f32 %v1970, 0.5
    %v2019 = vmul.f32 %v1971, 0.5
    %v2020 = vmul.f32 %v1972, 0.5
    %v2021 = vmul.f32 %v1973, 0.5
    %v2022 = vmul.f32 %v1974, 0.5
    %v2023 = vmul.f32 %v1975, 0.5
    %v2024 = vmul.f32 %v1976, 0.5
    %v2025 = vmul.f32 %v1977, 0.5
    %v2026 = vmul.f32 %v1978, 0.5
    %v2027 = vmul.f32 %v2011, %v1963
    %v2028 = vmul.f32 %v2012, %v1964
    %v2029 = vmul.f32 %v2013, %v1965
    %v2030 = vmul.f32 %v2014, %v1966
    %v2031 = vmul.f32 %v2015, %v1967
    %v2032 = vmul.f32 %v2016, %v1968
    %v2033 = vmul.f32 %v2017, %v1969
    %v2034 = vmul.f32 %v2018, %v1970
    %v2035 = vmul.f32 %v2019, %v1971
    %v2036 = vmul.f32 %v2020, %v1972
    %v2037 = vmul.f32 %v2021, %v1973
    %v2038 = vmul.f32 %v2022, %v1974
    %v2039 = vmul.f32 %v2023, %v1975
    %v2040 = vmul.f32 %v2024, %v1976
    %v2041 = vmul.f32 %v2025, %v1977
    %v2042 = vmul.f32 %v2026, %v1978
    %v2043 = vsub.f32 %v1979, 0.5
    %v2044 = vsub.f32 %v1980, 0.5
    %v2045 = vsub.f32 %v1981, 0.5
    %v2046 = vsub.f32 %v1982, 0.5
    %v2047 = vsub.f32 %v1983, 0.5
    %v2048 = vsub.f32 %v1984, 0.5
    %v2049 = vsub.f32 %v1985, 0.5
    %v2050 = vsub.f32 %v1986, 0.5
    %v2051 = vsub.f32 %v1987, 0.5
    %v2052 = vsub.f32 %v1988, 0.5
    %v2053 = vsub.f32 %v1989, 0.5
    %v2054 = vsub.f32 %v1990, 0.5
    %v2055 = vsub.f32 %v1991, 0.5
    %v2056 = vsub.f32 %v1992, 0.5
    %v2057 = vsub.f32 %v1993, 0.5
    %v2058 = vsub.f32 %v1994, 0.5
    %v2059 = vsel %vm1995, %v2027, %v2043
    %v2060 = vsel %vm1996, %v2028, %v2044
    %v2061 = vsel %vm1997, %v2029, %v2045
    %v2062 = vsel %vm1998, %v2030, %v2046
    %v2063 = vsel %vm1999, %v2031, %v2047
    %v2064 = vsel %vm2000, %v2032, %v2048
    %v2065 = vsel %vm2001, %v2033, %v2049
    %v2066 = vsel %vm2002, %v2034, %v2050
    %v2067 = vsel %vm2003, %v2035, %v2051
    %v2068 = vsel %vm2004, %v2036, %v2052
    %v2069 = vsel %vm2005, %v2037, %v2053
    %v2070 = vsel %vm2006, %v2038, %v2054
    %v2071 = vsel %vm2007, %v2039, %v2055
    %v2072 = vsel %vm2008, %v2040, %v2056
    %v2073 = vsel %vm2009, %v2041, %v2057
    %v2074 = vsel %vm2010, %v2042, %v2058
    %s2075 = scalar_lea.vmem [#allocation27], 33
    %v2076 = vld [vmem:[%s2075] ss:$8 sm:$0xf]
    %v2077 = vadd.f32 %v2059, %v2063
    %v2078 = vadd.f32 %v2077, %v2067
    %v2079 = vadd.f32 %v2078, %v2071
    %v2080 = vrot.slane %v2079, 4
    %v2081 = vadd.f32 %v2079, %v2080
    %v2082 = vrot.slane %v2081, 2
    %v2083 = vadd.f32 %v2081, %v2082
    %v2084 = vrot.slane %v2083, 1
    %v2085 = vadd.f32 %v2083, %v2084
    %v2086 = vadd.f32 %v2060, %v2064
    %v2087 = vadd.f32 %v2086, %v2068
    %v2088 = vadd.f32 %v2087, %v2072
    %v2089 = vrot.slane %v2088, 4
    %v2090 = vadd.f32 %v2088, %v2089
    %v2091 = vrot.slane %v2090, 2
    %v2092 = vadd.f32 %v2090, %v2091
    %v2093 = vrot.slane %v2092, 1
    %v2094 = vadd.f32 %v2092, %v2093
    %v2095 = vadd.f32 %v2061, %v2065
    %v2096 = vadd.f32 %v2095, %v2069
    %v2097 = vadd.f32 %v2096, %v2073
    %v2098 = vrot.slane %v2097, 4
    %v2099 = vadd.f32 %v2097, %v2098
    %v2100 = vrot.slane %v2099, 2
    %v2101 = vadd.f32 %v2099, %v2100
    %v2102 = vrot.slane %v2101, 1
    %v2103 = vadd.f32 %v2101, %v2102
    %v2104 = vadd.f32 %v2062, %v2066
    %v2105 = vadd.f32 %v2104, %v2070
    %v2106 = vadd.f32 %v2105, %v2074
    %v2107 = vrot.slane %v2106, 4
    %v2108 = vadd.f32 %v2106, %v2107
    %v2109 = vrot.slane %v2108, 2
    %v2110 = vadd.f32 %v2108, %v2109
    %v2111 = vrot.slane %v2110, 1
    %v2112 = vadd.f32 %v2110, %v2111
    %v2117 = vcombine.low %v2085, %v2094
    %v2118 = vcombine.low %v2103, %v2112
    %v2120 = vunpack.c.l.s4 1966171168
    %v2121 = vunpack.c.0.s8 %v2120
    %v2122 = vlaneseq
    %v2123 = vshrl.u32 %v2122, 7
    %v2124 = vsub.s32 %v2121, %v2123
    %v2125 = vrot.slane %v2117, %v2124
    %v2127 = vunpack.c.l.s4 1966171168
    %v2128 = vunpack.c.0.s8 %v2127
    %v2129 = vlaneseq
    %v2130 = vshrl.u32 %v2129, 7
    %v2131 = vsub.s32 %v2128, %v2130
    %v2132 = vrot.slane %v2118, %v2131
    %v2133 = vcombine.low %v2125, %v2132
    %v2135 = vunpack.c.l.s4 1966171168
    %v2136 = vunpack.c.0.s8 %v2135
    %v2137 = vlaneseq
    %v2138 = vshrl.u32 %v2137, 7
    %v2139 = vsub.s32 %v2136, %v2138
    %v2140 = vrot.slane %v2133, %v2139
    %v2142 = vadd.f32 %v2076, %v2140
    %2143 = vst.msk [vmem:[%s2075] ss:$8 sm:$0xf] %vm905, %v2142
    %2144 = vst.msk [vmem:[%s2075] ss:$8 sm:$0x0] %vm905, %v2142
    %v2145 = vld [vmem:[#allocation13] sm:$0xff]
    %v2146 = vld [vmem:[#allocation13 + $0x8] sm:$0xff]
    %v2147 = vld [vmem:[#allocation13 + $0x10] sm:$0xff]
    %v2148 = vld [vmem:[#allocation13 + $0x18] sm:$0xff]
    %v2149 = vld [vmem:[#allocation13 + $0x20] sm:$0xff]
    %v2150 = vld [vmem:[#allocation13 + $0x28] sm:$0xff]
    %v2151 = vld [vmem:[#allocation13 + $0x30] sm:$0xff]
    %v2152 = vld [vmem:[#allocation13 + $0x38] sm:$0xff]
    %v2153 = vld [vmem:[#allocation13 + $0x40] sm:$0xff]
    %v2154 = vld [vmem:[#allocation13 + $0x48] sm:$0xff]
    %v2155 = vld [vmem:[#allocation13 + $0x50] sm:$0xff]
    %v2156 = vld [vmem:[#allocation13 + $0x58] sm:$0xff]
    %v2157 = vld [vmem:[#allocation13 + $0x60] sm:$0xff]
    %v2158 = vld [vmem:[#allocation13 + $0x68] sm:$0xff]
    %v2159 = vld [vmem:[#allocation13 + $0x70] sm:$0xff]
    %v2160 = vld [vmem:[#allocation13 + $0x78] sm:$0xff]
    %v2161 = vld [vmem:[#allocation23] sm:$0xff]
    %v2162 = vld [vmem:[#allocation23 + $0x8] sm:$0xff]
    %v2163 = vld [vmem:[#allocation23 + $0x10] sm:$0xff]
    %v2164 = vld [vmem:[#allocation23 + $0x18] sm:$0xff]
    %v2165 = vld [vmem:[#allocation23 + $0x20] sm:$0xff]
    %v2166 = vld [vmem:[#allocation23 + $0x28] sm:$0xff]
    %v2167 = vld [vmem:[#allocation23 + $0x30] sm:$0xff]
    %v2168 = vld [vmem:[#allocation23 + $0x38] sm:$0xff]
    %v2169 = vld [vmem:[#allocation23 + $0x40] sm:$0xff]
    %v2170 = vld [vmem:[#allocation23 + $0x48] sm:$0xff]
    %v2171 = vld [vmem:[#allocation23 + $0x50] sm:$0xff]
    %v2172 = vld [vmem:[#allocation23 + $0x58] sm:$0xff]
    %v2173 = vld [vmem:[#allocation23 + $0x60] sm:$0xff]
    %v2174 = vld [vmem:[#allocation23 + $0x68] sm:$0xff]
    %v2175 = vld [vmem:[#allocation23 + $0x70] sm:$0xff]
    %v2176 = vld [vmem:[#allocation23 + $0x78] sm:$0xff]
    %v2177 = vsub.f32 %v2145, %v2161
    %v2178 = vsub.f32 %v2146, %v2162
    %v2179 = vsub.f32 %v2147, %v2163
    %v2180 = vsub.f32 %v2148, %v2164
    %v2181 = vsub.f32 %v2149, %v2165
    %v2182 = vsub.f32 %v2150, %v2166
    %v2183 = vsub.f32 %v2151, %v2167
    %v2184 = vsub.f32 %v2152, %v2168
    %v2185 = vsub.f32 %v2153, %v2169
    %v2186 = vsub.f32 %v2154, %v2170
    %v2187 = vsub.f32 %v2155, %v2171
    %v2188 = vsub.f32 %v2156, %v2172
    %v2189 = vsub.f32 %v2157, %v2173
    %v2190 = vsub.f32 %v2158, %v2174
    %v2191 = vsub.f32 %v2159, %v2175
    %v2192 = vsub.f32 %v2160, %v2176
    %v2193 = vand.u32 2147483647, %v2177
    %v2194 = vand.u32 2147483647, %v2178
    %v2195 = vand.u32 2147483647, %v2179
    %v2196 = vand.u32 2147483647, %v2180
    %v2197 = vand.u32 2147483647, %v2181
    %v2198 = vand.u32 2147483647, %v2182
    %v2199 = vand.u32 2147483647, %v2183
    %v2200 = vand.u32 2147483647, %v2184
    %v2201 = vand.u32 2147483647, %v2185
    %v2202 = vand.u32 2147483647, %v2186
    %v2203 = vand.u32 2147483647, %v2187
    %v2204 = vand.u32 2147483647, %v2188
    %v2205 = vand.u32 2147483647, %v2189
    %v2206 = vand.u32 2147483647, %v2190
    %v2207 = vand.u32 2147483647, %v2191
    %v2208 = vand.u32 2147483647, %v2192
    %vm2209 = vcmp.lt.f32.partialorder %v2193, 1.0
    %vm2210 = vcmp.lt.f32.partialorder %v2194, 1.0
    %vm2211 = vcmp.lt.f32.partialorder %v2195, 1.0
    %vm2212 = vcmp.lt.f32.partialorder %v2196, 1.0
    %vm2213 = vcmp.lt.f32.partialorder %v2197, 1.0
    %vm2214 = vcmp.lt.f32.partialorder %v2198, 1.0
    %vm2215 = vcmp.lt.f32.partialorder %v2199, 1.0
    %vm2216 = vcmp.lt.f32.partialorder %v2200, 1.0
    %vm2217 = vcmp.lt.f32.partialorder %v2201, 1.0
    %vm2218 = vcmp.lt.f32.partialorder %v2202, 1.0
    %vm2219 = vcmp.lt.f32.partialorder %v2203, 1.0
    %vm2220 = vcmp.lt.f32.partialorder %v2204, 1.0
    %vm2221 = vcmp.lt.f32.partialorder %v2205, 1.0
    %vm2222 = vcmp.lt.f32.partialorder %v2206, 1.0
    %vm2223 = vcmp.lt.f32.partialorder %v2207, 1.0
    %vm2224 = vcmp.lt.f32.partialorder %v2208, 1.0
    %v2225 = vmul.f32 %v2177, 0.5
    %v2226 = vmul.f32 %v2178, 0.5
    %v2227 = vmul.f32 %v2179, 0.5
    %v2228 = vmul.f32 %v2180, 0.5
    %v2229 = vmul.f32 %v2181, 0.5
    %v2230 = vmul.f32 %v2182, 0.5
    %v2231 = vmul.f32 %v2183, 0.5
    %v2232 = vmul.f32 %v2184, 0.5
    %v2233 = vmul.f32 %v2185, 0.5
    %v2234 = vmul.f32 %v2186, 0.5
    %v2235 = vmul.f32 %v2187, 0.5
    %v2236 = vmul.f32 %v2188, 0.5
    %v2237 = vmul.f32 %v2189, 0.5
    %v2238 = vmul.f32 %v2190, 0.5
    %v2239 = vmul.f32 %v2191, 0.5
    %v2240 = vmul.f32 %v2192, 0.5
    %v2241 = vmul.f32 %v2225, %v2177
    %v2242 = vmul.f32 %v2226, %v2178
    %v2243 = vmul.f32 %v2227, %v2179
    %v2244 = vmul.f32 %v2228, %v2180
    %v2245 = vmul.f32 %v2229, %v2181
    %v2246 = vmul.f32 %v2230, %v2182
    %v2247 = vmul.f32 %v2231, %v2183
    %v2248 = vmul.f32 %v2232, %v2184
    %v2249 = vmul.f32 %v2233, %v2185
    %v2250 = vmul.f32 %v2234, %v2186
    %v2251 = vmul.f32 %v2235, %v2187
    %v2252 = vmul.f32 %v2236, %v2188
    %v2253 = vmul.f32 %v2237, %v2189
    %v2254 = vmul.f32 %v2238, %v2190
    %v2255 = vmul.f32 %v2239, %v2191
    %v2256 = vmul.f32 %v2240, %v2192
    %v2257 = vsub.f32 %v2193, 0.5
    %v2258 = vsub.f32 %v2194, 0.5
    %v2259 = vsub.f32 %v2195, 0.5
    %v2260 = vsub.f32 %v2196, 0.5
    %v2261 = vsub.f32 %v2197, 0.5
    %v2262 = vsub.f32 %v2198, 0.5
    %v2263 = vsub.f32 %v2199, 0.5
    %v2264 = vsub.f32 %v2200, 0.5
    %v2265 = vsub.f32 %v2201, 0.5
    %v2266 = vsub.f32 %v2202, 0.5
    %v2267 = vsub.f32 %v2203, 0.5
    %v2268 = vsub.f32 %v2204, 0.5
    %v2269 = vsub.f32 %v2205, 0.5
    %v2270 = vsub.f32 %v2206, 0.5
    %v2271 = vsub.f32 %v2207, 0.5
    %v2272 = vsub.f32 %v2208, 0.5
    %v2273 = vsel %vm2209, %v2241, %v2257
    %v2274 = vsel %vm2210, %v2242, %v2258
    %v2275 = vsel %vm2211, %v2243, %v2259
    %v2276 = vsel %vm2212, %v2244, %v2260
    %v2277 = vsel %vm2213, %v2245, %v2261
    %v2278 = vsel %vm2214, %v2246, %v2262
    %v2279 = vsel %vm2215, %v2247, %v2263
    %v2280 = vsel %vm2216, %v2248, %v2264
    %v2281 = vsel %vm2217, %v2249, %v2265
    %v2282 = vsel %vm2218, %v2250, %v2266
    %v2283 = vsel %vm2219, %v2251, %v2267
    %v2284 = vsel %vm2220, %v2252, %v2268
    %v2285 = vsel %vm2221, %v2253, %v2269
    %v2286 = vsel %vm2222, %v2254, %v2270
    %v2287 = vsel %vm2223, %v2255, %v2271
    %v2288 = vsel %vm2224, %v2256, %v2272
    %s2289 = scalar_lea.vmem [#allocation27], 34
    %v2290 = vld [vmem:[%s2289] ss:$8 sm:$0xf]
    %v2291 = vadd.f32 %v2273, %v2277
    %v2292 = vadd.f32 %v2291, %v2281
    %v2293 = vadd.f32 %v2292, %v2285
    %v2294 = vrot.slane %v2293, 4
    %v2295 = vadd.f32 %v2293, %v2294
    %v2296 = vrot.slane %v2295, 2
    %v2297 = vadd.f32 %v2295, %v2296
    %v2298 = vrot.slane %v2297, 1
    %v2299 = vadd.f32 %v2297, %v2298
    %v2300 = vadd.f32 %v2274, %v2278
    %v2301 = vadd.f32 %v2300, %v2282
    %v2302 = vadd.f32 %v2301, %v2286
    %v2303 = vrot.slane %v2302, 4
    %v2304 = vadd.f32 %v2302, %v2303
    %v2305 = vrot.slane %v2304, 2
    %v2306 = vadd.f32 %v2304, %v2305
    %v2307 = vrot.slane %v2306, 1
    %v2308 = vadd.f32 %v2306, %v2307
    %v2309 = vadd.f32 %v2275, %v2279
    %v2310 = vadd.f32 %v2309, %v2283
    %v2311 = vadd.f32 %v2310, %v2287
    %v2312 = vrot.slane %v2311, 4
    %v2313 = vadd.f32 %v2311, %v2312
    %v2314 = vrot.slane %v2313, 2
    %v2315 = vadd.f32 %v2313, %v2314
    %v2316 = vrot.slane %v2315, 1
    %v2317 = vadd.f32 %v2315, %v2316
    %v2318 = vadd.f32 %v2276, %v2280
    %v2319 = vadd.f32 %v2318, %v2284
    %v2320 = vadd.f32 %v2319, %v2288
    %v2321 = vrot.slane %v2320, 4
    %v2322 = vadd.f32 %v2320, %v2321
    %v2323 = vrot.slane %v2322, 2
    %v2324 = vadd.f32 %v2322, %v2323
    %v2325 = vrot.slane %v2324, 1
    %v2326 = vadd.f32 %v2324, %v2325
    %v2331 = vcombine.low %v2299, %v2308
    %v2332 = vcombine.low %v2317, %v2326
    %v2334 = vunpack.c.l.s4 1966171168
    %v2335 = vunpack.c.0.s8 %v2334
    %v2336 = vlaneseq
    %v2337 = vshrl.u32 %v2336, 7
    %v2338 = vsub.s32 %v2335, %v2337
    %v2339 = vrot.slane %v2331, %v2338
    %v2341 = vunpack.c.l.s4 1966171168
    %v2342 = vunpack.c.0.s8 %v2341
    %v2343 = vlaneseq
    %v2344 = vshrl.u32 %v2343, 7
    %v2345 = vsub.s32 %v2342, %v2344
    %v2346 = vrot.slane %v2332, %v2345
    %v2347 = vcombine.low %v2339, %v2346
    %v2349 = vunpack.c.l.s4 1966171168
    %v2350 = vunpack.c.0.s8 %v2349
    %v2351 = vlaneseq
    %v2352 = vshrl.u32 %v2351, 7
    %v2353 = vsub.s32 %v2350, %v2352
    %v2354 = vrot.slane %v2347, %v2353
    %v2356 = vadd.f32 %v2290, %v2354
    %2357 = vst.msk [vmem:[%s2289] ss:$8 sm:$0xf] %vm905, %v2356
    %2358 = vst.msk [vmem:[%s2289] ss:$8 sm:$0x0] %vm905, %v2356
    %v2359 = vld [vmem:[#allocation14] sm:$0xff]
    %v2360 = vld [vmem:[#allocation14 + $0x8] sm:$0xff]
    %v2361 = vld [vmem:[#allocation14 + $0x10] sm:$0xff]
    %v2362 = vld [vmem:[#allocation14 + $0x18] sm:$0xff]
    %v2363 = vld [vmem:[#allocation14 + $0x20] sm:$0xff]
    %v2364 = vld [vmem:[#allocation14 + $0x28] sm:$0xff]
    %v2365 = vld [vmem:[#allocation14 + $0x30] sm:$0xff]
    %v2366 = vld [vmem:[#allocation14 + $0x38] sm:$0xff]
    %v2367 = vld [vmem:[#allocation14 + $0x40] sm:$0xff]
    %v2368 = vld [vmem:[#allocation14 + $0x48] sm:$0xff]
    %v2369 = vld [vmem:[#allocation14 + $0x50] sm:$0xff]
    %v2370 = vld [vmem:[#allocation14 + $0x58] sm:$0xff]
    %v2371 = vld [vmem:[#allocation14 + $0x60] sm:$0xff]
    %v2372 = vld [vmem:[#allocation14 + $0x68] sm:$0xff]
    %v2373 = vld [vmem:[#allocation14 + $0x70] sm:$0xff]
    %v2374 = vld [vmem:[#allocation14 + $0x78] sm:$0xff]
    %v2375 = vld [vmem:[#allocation25] sm:$0xff]
    %v2376 = vld [vmem:[#allocation25 + $0x8] sm:$0xff]
    %v2377 = vld [vmem:[#allocation25 + $0x10] sm:$0xff]
    %v2378 = vld [vmem:[#allocation25 + $0x18] sm:$0xff]
    %v2379 = vld [vmem:[#allocation25 + $0x20] sm:$0xff]
    %v2380 = vld [vmem:[#allocation25 + $0x28] sm:$0xff]
    %v2381 = vld [vmem:[#allocation25 + $0x30] sm:$0xff]
    %v2382 = vld [vmem:[#allocation25 + $0x38] sm:$0xff]
    %v2383 = vld [vmem:[#allocation25 + $0x40] sm:$0xff]
    %v2384 = vld [vmem:[#allocation25 + $0x48] sm:$0xff]
    %v2385 = vld [vmem:[#allocation25 + $0x50] sm:$0xff]
    %v2386 = vld [vmem:[#allocation25 + $0x58] sm:$0xff]
    %v2387 = vld [vmem:[#allocation25 + $0x60] sm:$0xff]
    %v2388 = vld [vmem:[#allocation25 + $0x68] sm:$0xff]
    %v2389 = vld [vmem:[#allocation25 + $0x70] sm:$0xff]
    %v2390 = vld [vmem:[#allocation25 + $0x78] sm:$0xff]
    %v2391 = vsub.f32 %v2359, %v2375
    %v2392 = vsub.f32 %v2360, %v2376
    %v2393 = vsub.f32 %v2361, %v2377
    %v2394 = vsub.f32 %v2362, %v2378
    %v2395 = vsub.f32 %v2363, %v2379
    %v2396 = vsub.f32 %v2364, %v2380
    %v2397 = vsub.f32 %v2365, %v2381
    %v2398 = vsub.f32 %v2366, %v2382
    %v2399 = vsub.f32 %v2367, %v2383
    %v2400 = vsub.f32 %v2368, %v2384
    %v2401 = vsub.f32 %v2369, %v2385
    %v2402 = vsub.f32 %v2370, %v2386
    %v2403 = vsub.f32 %v2371, %v2387
    %v2404 = vsub.f32 %v2372, %v2388
    %v2405 = vsub.f32 %v2373, %v2389
    %v2406 = vsub.f32 %v2374, %v2390
    %v2407 = vand.u32 2147483647, %v2391
    %v2408 = vand.u32 2147483647, %v2392
    %v2409 = vand.u32 2147483647, %v2393
    %v2410 = vand.u32 2147483647, %v2394
    %v2411 = vand.u32 2147483647, %v2395
    %v2412 = vand.u32 2147483647, %v2396
    %v2413 = vand.u32 2147483647, %v2397
    %v2414 = vand.u32 2147483647, %v2398
    %v2415 = vand.u32 2147483647, %v2399
    %v2416 = vand.u32 2147483647, %v2400
    %v2417 = vand.u32 2147483647, %v2401
    %v2418 = vand.u32 2147483647, %v2402
    %v2419 = vand.u32 2147483647, %v2403
    %v2420 = vand.u32 2147483647, %v2404
    %v2421 = vand.u32 2147483647, %v2405
    %v2422 = vand.u32 2147483647, %v2406
    %vm2423 = vcmp.lt.f32.partialorder %v2407, 1.0
    %vm2424 = vcmp.lt.f32.partialorder %v2408, 1.0
    %vm2425 = vcmp.lt.f32.partialorder %v2409, 1.0
    %vm2426 = vcmp.lt.f32.partialorder %v2410, 1.0
    %vm2427 = vcmp.lt.f32.partialorder %v2411, 1.0
    %vm2428 = vcmp.lt.f32.partialorder %v2412, 1.0
    %vm2429 = vcmp.lt.f32.partialorder %v2413, 1.0
    %vm2430 = vcmp.lt.f32.partialorder %v2414, 1.0
    %vm2431 = vcmp.lt.f32.partialorder %v2415, 1.0
    %vm2432 = vcmp.lt.f32.partialorder %v2416, 1.0
    %vm2433 = vcmp.lt.f32.partialorder %v2417, 1.0
    %vm2434 = vcmp.lt.f32.partialorder %v2418, 1.0
    %vm2435 = vcmp.lt.f32.partialorder %v2419, 1.0
    %vm2436 = vcmp.lt.f32.partialorder %v2420, 1.0
    %vm2437 = vcmp.lt.f32.partialorder %v2421, 1.0
    %vm2438 = vcmp.lt.f32.partialorder %v2422, 1.0
    %v2439 = vmul.f32 %v2391, 0.5
    %v2440 = vmul.f32 %v2392, 0.5
    %v2441 = vmul.f32 %v2393, 0.5
    %v2442 = vmul.f32 %v2394, 0.5
    %v2443 = vmul.f32 %v2395, 0.5
    %v2444 = vmul.f32 %v2396, 0.5
    %v2445 = vmul.f32 %v2397, 0.5
    %v2446 = vmul.f32 %v2398, 0.5
    %v2447 = vmul.f32 %v2399, 0.5
    %v2448 = vmul.f32 %v2400, 0.5
    %v2449 = vmul.f32 %v2401, 0.5
    %v2450 = vmul.f32 %v2402, 0.5
    %v2451 = vmul.f32 %v2403, 0.5
    %v2452 = vmul.f32 %v2404, 0.5
    %v2453 = vmul.f32 %v2405, 0.5
    %v2454 = vmul.f32 %v2406, 0.5
    %v2455 = vmul.f32 %v2439, %v2391
    %v2456 = vmul.f32 %v2440, %v2392
    %v2457 = vmul.f32 %v2441, %v2393
    %v2458 = vmul.f32 %v2442, %v2394
    %v2459 = vmul.f32 %v2443, %v2395
    %v2460 = vmul.f32 %v2444, %v2396
    %v2461 = vmul.f32 %v2445, %v2397
    %v2462 = vmul.f32 %v2446, %v2398
    %v2463 = vmul.f32 %v2447, %v2399
    %v2464 = vmul.f32 %v2448, %v2400
    %v2465 = vmul.f32 %v2449, %v2401
    %v2466 = vmul.f32 %v2450, %v2402
    %v2467 = vmul.f32 %v2451, %v2403
    %v2468 = vmul.f32 %v2452, %v2404
    %v2469 = vmul.f32 %v2453, %v2405
    %v2470 = vmul.f32 %v2454, %v2406
    %v2471 = vsub.f32 %v2407, 0.5
    %v2472 = vsub.f32 %v2408, 0.5
    %v2473 = vsub.f32 %v2409, 0.5
    %v2474 = vsub.f32 %v2410, 0.5
    %v2475 = vsub.f32 %v2411, 0.5
    %v2476 = vsub.f32 %v2412, 0.5
    %v2477 = vsub.f32 %v2413, 0.5
    %v2478 = vsub.f32 %v2414, 0.5
    %v2479 = vsub.f32 %v2415, 0.5
    %v2480 = vsub.f32 %v2416, 0.5
    %v2481 = vsub.f32 %v2417, 0.5
    %v2482 = vsub.f32 %v2418, 0.5
    %v2483 = vsub.f32 %v2419, 0.5
    %v2484 = vsub.f32 %v2420, 0.5
    %v2485 = vsub.f32 %v2421, 0.5
    %v2486 = vsub.f32 %v2422, 0.5
    %v2487 = vsel %vm2423, %v2455, %v2471
    %v2488 = vsel %vm2424, %v2456, %v2472
    %v2489 = vsel %vm2425, %v2457, %v2473
    %v2490 = vsel %vm2426, %v2458, %v2474
    %v2491 = vsel %vm2427, %v2459, %v2475
    %v2492 = vsel %vm2428, %v2460, %v2476
    %v2493 = vsel %vm2429, %v2461, %v2477
    %v2494 = vsel %vm2430, %v2462, %v2478
    %v2495 = vsel %vm2431, %v2463, %v2479
    %v2496 = vsel %vm2432, %v2464, %v2480
    %v2497 = vsel %vm2433, %v2465, %v2481
    %v2498 = vsel %vm2434, %v2466, %v2482
    %v2499 = vsel %vm2435, %v2467, %v2483
    %v2500 = vsel %vm2436, %v2468, %v2484
    %v2501 = vsel %vm2437, %v2469, %v2485
    %v2502 = vsel %vm2438, %v2470, %v2486
    %s2503 = scalar_lea.vmem [#allocation27], 35
    %v2504 = vld [vmem:[%s2503] ss:$8 sm:$0xf]
    %v2505 = vadd.f32 %v2487, %v2491
    %v2506 = vadd.f32 %v2505, %v2495
    %v2507 = vadd.f32 %v2506, %v2499
    %v2508 = vrot.slane %v2507, 4
    %v2509 = vadd.f32 %v2507, %v2508
    %v2510 = vrot.slane %v2509, 2
    %v2511 = vadd.f32 %v2509, %v2510
    %v2512 = vrot.slane %v2511, 1
    %v2513 = vadd.f32 %v2511, %v2512
    %v2514 = vadd.f32 %v2488, %v2492
    %v2515 = vadd.f32 %v2514, %v2496
    %v2516 = vadd.f32 %v2515, %v2500
    %v2517 = vrot.slane %v2516, 4
    %v2518 = vadd.f32 %v2516, %v2517
    %v2519 = vrot.slane %v2518, 2
    %v2520 = vadd.f32 %v2518, %v2519
    %v2521 = vrot.slane %v2520, 1
    %v2522 = vadd.f32 %v2520, %v2521
    %v2523 = vadd.f32 %v2489, %v2493
    %v2524 = vadd.f32 %v2523, %v2497
    %v2525 = vadd.f32 %v2524, %v2501
    %v2526 = vrot.slane %v2525, 4
    %v2527 = vadd.f32 %v2525, %v2526
    %v2528 = vrot.slane %v2527, 2
    %v2529 = vadd.f32 %v2527, %v2528
    %v2530 = vrot.slane %v2529, 1
    %v2531 = vadd.f32 %v2529, %v2530
    %v2532 = vadd.f32 %v2490, %v2494
    %v2533 = vadd.f32 %v2532, %v2498
    %v2534 = vadd.f32 %v2533, %v2502
    %v2535 = vrot.slane %v2534, 4
    %v2536 = vadd.f32 %v2534, %v2535
    %v2537 = vrot.slane %v2536, 2
    %v2538 = vadd.f32 %v2536, %v2537
    %v2539 = vrot.slane %v2538, 1
    %v2540 = vadd.f32 %v2538, %v2539
    %v2545 = vcombine.low %v2513, %v2522
    %v2546 = vcombine.low %v2531, %v2540
    %v2548 = vunpack.c.l.s4 1966171168
    %v2549 = vunpack.c.0.s8 %v2548
    %v2550 = vlaneseq
    %v2551 = vshrl.u32 %v2550, 7
    %v2552 = vsub.s32 %v2549, %v2551
    %v2553 = vrot.slane %v2545, %v2552
    %v2555 = vunpack.c.l.s4 1966171168
    %v2556 = vunpack.c.0.s8 %v2555
    %v2557 = vlaneseq
    %v2558 = vshrl.u32 %v2557, 7
    %v2559 = vsub.s32 %v2556, %v2558
    %v2560 = vrot.slane %v2546, %v2559
    %v2561 = vcombine.low %v2553, %v2560
    %v2563 = vunpack.c.l.s4 1966171168
    %v2564 = vunpack.c.0.s8 %v2563
    %v2565 = vlaneseq
    %v2566 = vshrl.u32 %v2565, 7
    %v2567 = vsub.s32 %v2564, %v2566
    %v2568 = vrot.slane %v2561, %v2567
    %v2570 = vadd.f32 %v2504, %v2568
    %2571 = vst.msk [vmem:[%s2503] ss:$8 sm:$0xf] %vm905, %v2570
    %2572 = vst.msk [vmem:[%s2503] ss:$8 sm:$0x0] %vm905, %v2570
    // Predicated region
    $region130: #{tpu_custom_call.1} parent=1 // pred_check
      _
    $region131: #{tpu_custom_call.1} parent=1 // pred_check_branch
      %2574 = sbr.rel (0) target = $region133
    $region132: #{tpu_custom_call.1} parent=1 // pred_region
      %s2575 = sadd.s32 0, 0
      %s2576 = smul.u32 4, %s2575
      %s2578 = ssub.s32 2048, 2048
      %2579 = vsyncadd [#allocation4], %s2578
      %s2580 = smul.addr %s2576, 4
      %s2581 = smul.addr %s2580, 128
      %s2582 = scalar_lea.hbm %s16, %s2581
      %s2583 = sshll.u32 [#allocation26], 4
      %s2584 = int_to_ptr.vmem [resolvable:$true] %s2583
      %2589 = dma.vmem_to_hbm [thread:$0]  %s2584, 2048, %s2582, [#allocation4], 512, 512, 32
    $region133: #{tpu_custom_call.1} parent=1 // pred_fallthru
      _
    // Predicated region
    $region134: #{tpu_custom_call.1} parent=1 // pred_check
      _
    $region135: #{tpu_custom_call.1} parent=1 // pred_check_branch
      %2591 = sbr.rel (0) target = $region137
    $region136: #{tpu_custom_call.1} parent=1 // pred_region
      %s2593 = ssub.s32 1024, 1024
      %2594 = vsyncadd [#allocation28], %s2593
      %s2595 = sshll.u32 [#allocation27], 4
      %s2596 = int_to_ptr.vmem [resolvable:$true] %s2595
      %2601 = dma.vmem_to_hbm [thread:$0]  %s2596, 1024, %s17, [#allocation28], 512, 512, 32
    $region137: #{tpu_custom_call.1} parent=1 // pred_fallthru
      _
    // Predicated region
    $region138: #{tpu_custom_call.1} parent=1 // pred_check
      _
    $region139: #{tpu_custom_call.1} parent=1 // pred_check_branch
      %2603 = sbr.rel (0) target = $region141
    $region140: #{tpu_custom_call.1} parent=1 // pred_region
      %2604 = dma.done [#allocation4], 2048
    $region141: #{tpu_custom_call.1} parent=1 // pred_fallthru
      _
    // Predicated region
    $region142: #{tpu_custom_call.1} parent=1 // pred_check
      _
    $region143: #{tpu_custom_call.1} parent=1 // pred_check_branch
      %2606 = sbr.rel (0) target = $region145
    $region144: #{tpu_custom_call.1} parent=1 // pred_region
      %2607 = dma.done [#allocation28], 1024
    $region145: #{tpu_custom_call.1} parent=1 // pred_fallthru
      _
    %2608 = vsyncpa [#allocation3], 1
    %2609 = vsyncpa [#allocation6], 1
    %2610 = vsyncpa [#allocation9], 1
    %2611 = vsyncpa [#allocation12], 1
    %2612 = vsyncpa [#allocation15], 1
    %2613 = vsyncpa [#allocation18], 1
    %2614 = vsyncpa [#allocation21], 1
    %2615 = vsyncpa [#allocation24], 1
    %2616 = vsyncpa [#allocation4], 1
    %2617 = vsyncpa [#allocation28], 1

</llo_original>
